<compile_context>
chip_gen: v7x
topology: tpu7x:2x2x1
jax: 0.10.0
libtpu: 0.0.40
codegen_flags: <defaults>
</compile_context>

<pallas_src>
import jax
import jax.numpy as jnp
from jax.experimental import pallas as pl
from jax.experimental.pallas import tpu as pltpu


_VMEM_LIMIT = 32 * 1024 * 1024      # v5e default scoped VMEM is only 16 MiB
P_BLK = 7                           # conv2 spatial positions handled per grid step (49 = 7*7)


# ----------------------------------------------------------------------------
# Pallas kernel #1 (conv1): out = relu(x @ w + b), bf16 operands, f32 acc.
# Output is padded to 128 lanes (lane-dense store); grid over M rows.
# ----------------------------------------------------------------------------
def _matmul_bias_relu_kernel(x_ref, w_ref, b_ref, o_ref):
    acc = jnp.dot(x_ref[...], w_ref[...], preferred_element_type=jnp.float32)
    o_ref[...] = jnp.maximum(acc + b_ref[...], 0.0).astype(o_ref.dtype)


def pallas_matmul_bias_relu(x, w, b2):
    """x: (M, K) bf16, w: (K, N) bf16, b2: (1, N) f32 -> (M, N) bf16."""
    M, K = x.shape
    _, N = w.shape
    tile_m = min(M, 512)                       # full block at small batch
    grid = (pl.cdiv(M, tile_m),)
    return pl.pallas_call(
        _matmul_bias_relu_kernel,
        out_shape=jax.ShapeDtypeStruct((M, N), jnp.bfloat16),
        grid_spec=pltpu.PrefetchScalarGridSpec(
            num_scalar_prefetch=0,
            grid=grid,
            in_specs=[
                pl.BlockSpec((tile_m, K), lambda i: (i, 0)),
                pl.BlockSpec((K, N), lambda i: (0, 0)),       # resident
                pl.BlockSpec((1, N), lambda i: (0, 0)),       # resident
            ],
            out_specs=pl.BlockSpec((tile_m, N), lambda i: (i, 0)),
        ),
        compiler_params=pltpu.CompilerParams(
            dimension_semantics=("parallel",),
            vmem_limit_bytes=_VMEM_LIMIT),
    )(x, w, b2)


# ----------------------------------------------------------------------------
# Pallas kernel #2 (fused tail): conv2 + fc1(int8 weights) + ReLU + fc2.
# Grid = (batch blocks, 7 position blocks).  For each position block of 7 conv2
# output positions we do: h = relu(patches @ W2 + b2)  ->  acc += h @ W1q[p]
# (fc1 partial sum).  W1q is streamed block-by-block through the pipeline, so
# its DMA overlaps the conv2/fc1 compute.  On the last position block the fc1
# dequant-scale + bias + ReLU and the fc2 matmul run; Dropout(p=0.8) is
# identity at inference.  fc2 weights/bias are zero-padded to 128 output lanes
# (lane-dense store); caller slices [:, :10].
# ----------------------------------------------------------------------------
def _conv2_dense_tail_kernel(patches_ref, w2_ref, b2_ref, w1q_ref, s1_ref,
                             b1_ref, w3_ref, b3_ref, o_ref, acc_ref):
    p = pl.program_id(1)

    @pl.when(p == 0)
    def _():
        acc_ref[...] = jnp.zeros_like(acc_ref)

    w2 = w2_ref[...]                    # (1152, 128) bf16, resident
    b2 = b2_ref[...]                    # (1, 128) f32

    acc = acc_ref[...]                  # (tile_b, 512) f32
    for i in range(P_BLK):              # static unroll: 7 conv2 spatial positions
        h = jnp.dot(patches_ref[i], w2, preferred_element_type=jnp.float32)
        h = jnp.maximum(h + b2, 0.0).astype(jnp.bfloat16)          # (tile_b, 128)
        w1_i = w1q_ref[i].astype(jnp.bfloat16)                     # int8 -> bf16 dequant (exact)
        acc = acc + jnp.dot(h, w1_i, preferred_element_type=jnp.float32)
    acc_ref[...] = acc

    @pl.when(p == pl.num_programs(1) - 1)
    def _():
        # fc1: per-column dequant scale + bias + ReLU.  Dropout(0.8) = identity (eval).
        h1 = jnp.maximum(acc_ref[...] * s1_ref[...] + b1_ref[...], 0.0)
        out = jnp.dot(h1.astype(jnp.bfloat16), w3_ref[...],
                      preferred_element_type=jnp.float32)
        o_ref[...] = out + b3_ref[...]


def pallas_conv2_dense_tail(patches_pm, w2, b2, w1q, s1, b1, w3p, b3p):
    """patches_pm: (49, N, 1152) bf16 position-major conv2 im2col patches.
       w2: (1152, 128) bf16, b2: (1, 128) f32,
       w1q: (49, 128, 512) int8, s1/b1: (1, 512) f32,
       w3p: (512, 128) bf16 zero-padded, b3p: (1, 128) f32 -> (N, 128) f32."""
    P, N, K = patches_pm.shape
    H = w1q.shape[-1]
    NP = w3p.shape[-1]
    tile_b = min(N, 256)                        # full batch block at small batch
    m_blocks = pl.cdiv(N, tile_b)
    p_blocks = P // P_BLK
    return pl.pallas_call(
        _conv2_dense_tail_kernel,
        out_shape=jax.ShapeDtypeStruct((N, NP), jnp.float32),
        grid_spec=pltpu.PrefetchScalarGridSpec(
            num_scalar_prefetch=0,
            grid=(m_blocks, p_blocks),
            in_specs=[
                pl.BlockSpec((P_BLK, tile_b, K), lambda m, p: (p, m, 0)),
                pl.BlockSpec((K, 128), lambda m, p: (0, 0)),          # conv2_w resident
                pl.BlockSpec((1, 128), lambda m, p: (0, 0)),          # conv2_b resident
                pl.BlockSpec((P_BLK, 128, H), lambda m, p: (p, 0, 0)),  # fc1_w int8 streamed
                pl.BlockSpec((1, H), lambda m, p: (0, 0)),            # fc1 dequant scale
                pl.BlockSpec((1, H), lambda m, p: (0, 0)),            # fc1_b
                pl.BlockSpec((H, NP), lambda m, p: (0, 0)),           # fc2_w (padded)
                pl.BlockSpec((1, NP), lambda m, p: (0, 0)),           # fc2_b (padded)
            ],
            out_specs=pl.BlockSpec((tile_b, NP), lambda m, p: (m, 0)),
            scratch_shapes=[pltpu.VMEM((tile_b, H), jnp.float32)],    # fc1 accumulator
        ),
        compiler_params=pltpu.CompilerParams(
            dimension_semantics=("parallel", "arbitrary"),
            vmem_limit_bytes=_VMEM_LIMIT),
    )(patches_pm, w2, b2, w1q, s1, b1, w3p, b3p)


# ----------------------------------------------------------------------------
# im2col patch extraction (cheap XLA strided slices; the hot matmuls run in the
# Pallas kernels above).
# ----------------------------------------------------------------------------
def _im2col(x_nhwc, k, stride, pad):
    N, H, W, C = x_nhwc.shape
    xp = jnp.pad(x_nhwc, ((0, 0), (pad, pad), (pad, pad), (0, 0)))
    OH = (H + 2 * pad - k) // stride + 1
    OW = (W + 2 * pad - k) // stride + 1
    cols = []
    for di in range(k):        # kernel row (kh)
        for dj in range(k):    # kernel col (kw)
            cols.append(
                xp[:, di:di + stride * OH:stride, dj:dj + stride * OW:stride, :]
            )
    patches = jnp.concatenate(cols, axis=-1)    # (N, OH, OW, k*k*C), order (kh, kw, cin)
    return patches, OH, OW


# ----------------------------------------------------------------------------
# Parameters: PyTorch-layout f32 init, then a one-time offline prep doing all
# transposes / permutations / padding / quantization (none at runtime).
# ----------------------------------------------------------------------------
def init_torch_params(key):
    """Deterministic params in the exact layouts Model.state_dict() would have."""
    ks = jax.random.split(key, 4)

    def he(k, shape, fan_in):
        return jax.random.normal(k, shape, jnp.float32) * jnp.sqrt(2.0 / fan_in)

    return {
        "conv1_w": he(ks[0], (64, 1, 3, 3), 1 * 3 * 3),
        "conv1_b": jnp.zeros((64,), jnp.float32),
        "conv2_w": he(ks[1], (128, 64, 3, 3), 64 * 3 * 3),
        "conv2_b": jnp.zeros((128,), jnp.float32),
        "fc1_w": he(ks[2], (512, 7 * 7 * 128), 7 * 7 * 128),   # (out, in), in = c*49+h*7+w
        "fc1_b": jnp.zeros((512,), jnp.float32),
        "fc2_w": he(ks[3], (10, 512), 512),
        "fc2_b": jnp.zeros((10,), jnp.float32),
    }


def prepare_params(tp):
    """One-time offline weight prep:
       * conv weights -> (kh*kw*Cin, Cout) bf16 matching the patch order;
         conv1 Cout padded 64->128 (lane-dense output), conv2 Cin padded 64->128
         with zero rows (K = 1152, multiple of 128).
       * fc1_w: (512, 6272 [C,H,W]) -> (49, 128, 512) in (p=h*7+w, c) row order,
         symmetric per-output-column int8 quant + f32 scale.
       * fc2_w/b transposed and zero-padded to 128 output lanes.
    """
    def conv_mat(w, cin_pad=None):
        Cout, Cin, kh, kw = w.shape
        wm = jnp.transpose(w, (2, 3, 1, 0))                    # (kh, kw, Cin, Cout)
        if cin_pad is not None and cin_pad > Cin:
            wm = jnp.pad(wm, ((0, 0), (0, 0), (0, cin_pad - Cin), (0, 0)))
            Cin = cin_pad
        return wm.reshape(kh * kw * Cin, Cout).astype(jnp.bfloat16)

    # conv1: pad Cout 64 -> 128; padded channels carry exact zeros into conv2.
    c1 = jnp.pad(conv_mat(tp["conv1_w"]), ((0, 0), (0, 64)))              # (9, 128)
    c1_b = jnp.zeros((1, 128), jnp.float32).at[0, :64].set(tp["conv1_b"])

    c2 = conv_mat(tp["conv2_w"], cin_pad=128)                             # (1152, 128)
    c2_b = tp["conv2_b"].reshape(1, 128)

    # fc1: permute rows (C,H,W) -> (H,W,C) so the NHWC conv2 output contracts
    # directly; then int8 per-output-column symmetric quantization.
    fc1 = tp["fc1_w"].reshape(512, 128, 7, 7)                             # (out, C, H, W)
    fc1 = jnp.transpose(fc1, (2, 3, 1, 0)).reshape(49 * 128, 512)         # (p*128+c, out)
    absmax = jnp.max(jnp.abs(fc1), axis=0, keepdims=True)                 # (1, 512)
    fc1_scale = jnp.maximum(absmax, 1e-8) / 127.0
    fc1_q = jnp.clip(jnp.round(fc1 / fc1_scale), -127, 127).astype(jnp.int8)
    fc1_q = fc1_q.reshape(49, 128, 512)

    fc2 = jnp.zeros((512, 128), jnp.float32).at[:, :10].set(tp["fc2_w"].T)
    fc2_b = jnp.zeros((1, 128), jnp.float32).at[0, :10].set(tp["fc2_b"])

    return {
        "conv1_w": c1,
        "conv1_b": c1_b,
        "conv2_w": c2,
        "conv2_b": c2_b,
        "fc1_wq": fc1_q,                               # int8
        "fc1_scale": fc1_scale,                        # (1, 512) f32
        "fc1_b": tp["fc1_b"].reshape(1, 512),
        "fc2_w": fc2.astype(jnp.bfloat16),
        "fc2_b": fc2_b,
    }


# ----------------------------------------------------------------------------
# Forward pass (2 pallas_calls: conv1, fused conv2+fc1+fc2 tail).
# ----------------------------------------------------------------------------
def model_forward(x_nchw, params):
    N = x_nchw.shape[0]
    # NCHW -> NHWC (C=1, free reshape) and cast once to bf16.
    x = jnp.transpose(x_nchw, (0, 2, 3, 1)).astype(jnp.bfloat16)      # (N, 28, 28, 1)

    # conv1 (+ReLU), output lane-padded to 128 channels (last 64 are zero).
    p1, oh1, ow1 = _im2col(x, 3, 2, 1)                                # (N, 14, 14, 9)
    h1 = pallas_matmul_bias_relu(p1.reshape(N * oh1 * ow1, 9),
                                 params["conv1_w"], params["conv1_b"])  # (N*196, 128) bf16
    h1 = h1.reshape(N, oh1, ow1, 128)

    # conv2 im2col (K = 9*128 = 1152), laid out position-major for the fused tail.
    p2, oh2, ow2 = _im2col(h1, 3, 2, 1)                               # (N, 7, 7, 1152)
    p2 = p2.reshape(N, oh2 * ow2, 1152).transpose(1, 0, 2)            # (49, N, 1152)

    logits_padded = pallas_conv2_dense_tail(
        p2, params["conv2_w"], params["conv2_b"],
        params["fc1_wq"], params["fc1_scale"], params["fc1_b"],
        params["fc2_w"], params["fc2_b"])                             # (N, 128) f32
    return logits_padded[:, :10]


if __name__ == "__main__":
    key = jax.random.PRNGKey(0)
    pkey, xkey = jax.random.split(key)
    params = prepare_params(init_torch_params(pkey))
    # MNIST-shaped input required by the 7*7*128 flatten; small batch.
    x = jax.random.normal(xkey, (2, 1, 28, 28), jnp.float32)

    fwd = jax.jit(model_forward)
    out = fwd(x, params)
    jax.block_until_ready(out)
    assert out.shape == (2, 10) and out.dtype == jnp.float32
    print("KERNEL_OK")
</pallas_src>

<mosaic_0001>
module attributes {stable_mosaic.version = 11 : i64} {
  func.func @_matmul_bias_relu_kernel(%arg0: i32, %arg1: memref<392x9xbf16, #tpu.memory_space<vmem>>, %arg2: memref<9x128xbf16, #tpu.memory_space<vmem>>, %arg3: memref<1x128xf32, #tpu.memory_space<vmem>>, %arg4: memref<392x128xbf16, #tpu.memory_space<vmem>>) attributes {dimension_semantics = [#tpu.dimension_semantics<parallel>], iteration_bounds = array<i64: 1>, scalar_prefetch = 0 : i64, scratch_operands = 0 : i64, tpu.core_type = #tpu.core_type<tc>, window_params = [{transform_indices = @transform_0, window_bounds = array<i64: 392, 9>}, {pipeline_mode = #tpu.pipeline_mode<synchronous>, transform_indices = @transform_1, window_bounds = array<i64: 9, 128>}, {pipeline_mode = #tpu.pipeline_mode<synchronous>, transform_indices = @transform_2, window_bounds = array<i64: 1, 128>}, {transform_indices = @transform_3, window_bounds = array<i64: 392, 128>}]} {
    %c0 = arith.constant 0 : index
    %c0_0 = arith.constant 0 : index
    %0 = vector.load %arg1[%c0, %c0_0] : memref<392x9xbf16, #tpu.memory_space<vmem>>, vector<392x9xbf16>
    %c0_1 = arith.constant 0 : index
    %c0_2 = arith.constant 0 : index
    %1 = vector.load %arg2[%c0_1, %c0_2] : memref<9x128xbf16, #tpu.memory_space<vmem>>, vector<9x128xbf16>
    %cst = arith.constant dense<0.000000e+00> : vector<392x128xf32>
    %2 = tpu.matmul %0, %1, %cst {dimension_numbers = #tpu.dot_dimension_numbers<[1], [0], [0], [1], [0, 0, 1, 1], [], []>} : vector<392x9xbf16>, vector<9x128xbf16>, vector<392x128xf32> -> vector<392x128xf32>
    %c0_3 = arith.constant 0 : index
    %c0_4 = arith.constant 0 : index
    %3 = vector.load %arg3[%c0_3, %c0_4] : memref<1x128xf32, #tpu.memory_space<vmem>>, vector<1x128xf32>
    %4 = vector.broadcast %3 : vector<1x128xf32> to vector<392x128xf32>
    %5 = arith.addf %2, %4 : vector<392x128xf32>
    %cst_5 = arith.constant 0.000000e+00 : f32
    %6 = vector.broadcast %cst_5 : f32 to vector<392x128xf32>
    %7 = arith.maximumf %5, %6 : vector<392x128xf32>
    %8 = arith.truncf %7 : vector<392x128xf32> to vector<392x128xbf16>
    %c0_6 = arith.constant 0 : index
    %c0_7 = arith.constant 0 : index
    %9 = vector.load %arg4[%c0_6, %c0_7] : memref<392x128xbf16, #tpu.memory_space<vmem>>, vector<392x128xbf16>
    tpu.vector_store %arg4[%c0_6, %c0_7], %8 {strides = array<i32>} : memref<392x128xbf16, #tpu.memory_space<vmem>>, vector<392x128xbf16>,
    return
  }
  func.func @transform_0(%arg0: i32) -> (i32, i32) {
    %c0_i32 = arith.constant 0 : i32
    %c0_i32_0 = arith.constant 0 : i32
    return %arg0, %c0_i32 : i32, i32
  }
  func.func @transform_1(%arg0: i32) -> (i32, i32) {
    %c0_i32 = arith.constant 0 : i32
    %c0_i32_0 = arith.constant 0 : i32
    %c0_i32_1 = arith.constant 0 : i32
    return %c0_i32, %c0_i32_0 : i32, i32
  }
  func.func @transform_2(%arg0: i32) -> (i32, i32) {
    %c0_i32 = arith.constant 0 : i32
    %c0_i32_0 = arith.constant 0 : i32
    %c0_i32_1 = arith.constant 0 : i32
    return %c0_i32, %c0_i32_0 : i32, i32
  }
  func.func @transform_3(%arg0: i32) -> (i32, i32) {
    %c0_i32 = arith.constant 0 : i32
    %c0_i32_0 = arith.constant 0 : i32
    return %arg0, %c0_i32 : i32, i32
  }
}

module attributes {stable_mosaic.version = 11 : i64} {
  func.func @_conv2_dense_tail_kernel(%arg0: i32, %arg1: i32, %arg2: memref<7x2x1152xbf16, #tpu.memory_space<vmem>>, %arg3: memref<1152x128xbf16, #tpu.memory_space<vmem>>, %arg4: memref<1x128xf32, #tpu.memory_space<vmem>>, %arg5: memref<7x128x512xi8, #tpu.memory_space<vmem>>, %arg6: memref<1x512xf32, #tpu.memory_space<vmem>>, %arg7: memref<1x512xf32, #tpu.memory_space<vmem>>, %arg8: memref<512x128xbf16, #tpu.memory_space<vmem>>, %arg9: memref<1x128xf32, #tpu.memory_space<vmem>>, %arg10: memref<2x128xf32, #tpu.memory_space<vmem>>, %arg11: memref<2x512xf32, #tpu.memory_space<vmem>>) attributes {dimension_semantics = [#tpu.dimension_semantics<parallel>, #tpu.dimension_semantics<arbitrary>], iteration_bounds = array<i64: 1, 7>, scalar_prefetch = 0 : i64, scratch_operands = 1 : i64, tpu.core_type = #tpu.core_type<tc>, window_params = [{transform_indices = @transform_0, window_bounds = array<i64: 7, 2, 1152>}, {pipeline_mode = #tpu.pipeline_mode<synchronous>, transform_indices = @transform_1, window_bounds = array<i64: 1152, 128>}, {pipeline_mode = #tpu.pipeline_mode<synchronous>, transform_indices = @transform_2, window_bounds = array<i64: 1, 128>}, {transform_indices = @transform_3, window_bounds = array<i64: 7, 128, 512>}, {pipeline_mode = #tpu.pipeline_mode<synchronous>, transform_indices = @transform_4, window_bounds = array<i64: 1, 512>}, {pipeline_mode = #tpu.pipeline_mode<synchronous>, transform_indices = @transform_5, window_bounds = array<i64: 1, 512>}, {pipeline_mode = #tpu.pipeline_mode<synchronous>, transform_indices = @transform_6, window_bounds = array<i64: 512, 128>}, {pipeline_mode = #tpu.pipeline_mode<synchronous>, transform_indices = @transform_7, window_bounds = array<i64: 1, 128>}, {transform_indices = @transform_8, window_bounds = array<i64: 2, 128>}]} {
    %c0_i32 = arith.constant 0 : i32
    %0 = arith.cmpi eq, %arg1, %c0_i32 : i32
    %1 = arith.extui %0 : i1 to i32
    %c0_i32_0 = arith.constant 0 : i32
    %2 = arith.cmpi ne, %1, %c0_i32_0 : i32
    scf.if %2 {
      %cst_65 = arith.constant 0.000000e+00 : f32
      %101 = vector.broadcast %cst_65 : f32 to vector<2x512xf32>
      %c0_66 = arith.constant 0 : index
      %c0_67 = arith.constant 0 : index
      %102 = vector.load %arg11[%c0_66, %c0_67] : memref<2x512xf32, #tpu.memory_space<vmem>>, vector<2x512xf32>
      tpu.vector_store %arg11[%c0_66, %c0_67], %101 {strides = array<i32>} : memref<2x512xf32, #tpu.memory_space<vmem>>, vector<2x512xf32>,
    } else {
    }
    %c0 = arith.constant 0 : index
    %c0_1 = arith.constant 0 : index
    %3 = vector.load %arg3[%c0, %c0_1] : memref<1152x128xbf16, #tpu.memory_space<vmem>>, vector<1152x128xbf16>
    %c0_2 = arith.constant 0 : index
    %c0_3 = arith.constant 0 : index
    %4 = vector.load %arg4[%c0_2, %c0_3] : memref<1x128xf32, #tpu.memory_space<vmem>>, vector<1x128xf32>
    %c0_4 = arith.constant 0 : index
    %c0_5 = arith.constant 0 : index
    %5 = vector.load %arg11[%c0_4, %c0_5] : memref<2x512xf32, #tpu.memory_space<vmem>>, vector<2x512xf32>
    %c0_6 = arith.constant 0 : index
    %c0_7 = arith.constant 0 : index
    %c0_8 = arith.constant 0 : index
    %6 = vector.load %arg2[%c0_6, %c0_7, %c0_8] : memref<7x2x1152xbf16, #tpu.memory_space<vmem>>, vector<1x2x1152xbf16>
    %7 = vector.shape_cast %6 : vector<1x2x1152xbf16> to vector<2x1152xbf16>
    %cst = arith.constant dense<0.000000e+00> : vector<2x128xf32>
    %8 = tpu.matmul %7, %3, %cst {dimension_numbers = #tpu.dot_dimension_numbers<[1], [0], [0], [1], [0, 0, 1, 1], [], []>} : vector<2x1152xbf16>, vector<1152x128xbf16>, vector<2x128xf32> -> vector<2x128xf32>
    %9 = vector.broadcast %4 : vector<1x128xf32> to vector<2x128xf32>
    %10 = arith.addf %8, %9 : vector<2x128xf32>
    %cst_9 = arith.constant 0.000000e+00 : f32
    %11 = vector.broadcast %cst_9 : f32 to vector<2x128xf32>
    %12 = arith.maximumf %10, %11 : vector<2x128xf32>
    %13 = arith.truncf %12 : vector<2x128xf32> to vector<2x128xbf16>
    %c0_10 = arith.constant 0 : index
    %c0_11 = arith.constant 0 : index
    %c0_12 = arith.constant 0 : index
    %14 = vector.load %arg5[%c0_10, %c0_11, %c0_12] : memref<7x128x512xi8, #tpu.memory_space<vmem>>, vector<1x128x512xi8>
    %15 = vector.shape_cast %14 : vector<1x128x512xi8> to vector<128x512xi8>
    %16 = arith.sitofp %15 : vector<128x512xi8> to vector<128x512xbf16>
    %cst_13 = arith.constant dense<0.000000e+00> : vector<2x512xf32>
    %17 = tpu.matmul %13, %16, %cst_13 {dimension_numbers = #tpu.dot_dimension_numbers<[1], [0], [0], [1], [0, 0, 1, 1], [], []>} : vector<2x128xbf16>, vector<128x512xbf16>, vector<2x512xf32> -> vector<2x512xf32>
    %18 = arith.addf %5, %17 : vector<2x512xf32>
    %c1 = arith.constant 1 : index
    %c0_14 = arith.constant 0 : index
    %c0_15 = arith.constant 0 : index
    %19 = vector.load %arg2[%c1, %c0_14, %c0_15] : memref<7x2x1152xbf16, #tpu.memory_space<vmem>>, vector<1x2x1152xbf16>
    %20 = vector.shape_cast %19 : vector<1x2x1152xbf16> to vector<2x1152xbf16>
    %cst_16 = arith.constant dense<0.000000e+00> : vector<2x128xf32>
    %21 = tpu.matmul %20, %3, %cst_16 {dimension_numbers = #tpu.dot_dimension_numbers<[1], [0], [0], [1], [0, 0, 1, 1], [], []>} : vector<2x1152xbf16>, vector<1152x128xbf16>, vector<2x128xf32> -> vector<2x128xf32>
    %22 = vector.broadcast %4 : vector<1x128xf32> to vector<2x128xf32>
    %23 = arith.addf %21, %22 : vector<2x128xf32>
    %cst_17 = arith.constant 0.000000e+00 : f32
    %24 = vector.broadcast %cst_17 : f32 to vector<2x128xf32>
    %25 = arith.maximumf %23, %24 : vector<2x128xf32>
    %26 = arith.truncf %25 : vector<2x128xf32> to vector<2x128xbf16>
    %c1_18 = arith.constant 1 : index
    %c0_19 = arith.constant 0 : index
    %c0_20 = arith.constant 0 : index
    %27 = vector.load %arg5[%c1_18, %c0_19, %c0_20] : memref<7x128x512xi8, #tpu.memory_space<vmem>>, vector<1x128x512xi8>
    %28 = vector.shape_cast %27 : vector<1x128x512xi8> to vector<128x512xi8>
    %29 = arith.sitofp %28 : vector<128x512xi8> to vector<128x512xbf16>
    %cst_21 = arith.constant dense<0.000000e+00> : vector<2x512xf32>
    %30 = tpu.matmul %26, %29, %cst_21 {dimension_numbers = #tpu.dot_dimension_numbers<[1], [0], [0], [1], [0, 0, 1, 1], [], []>} : vector<2x128xbf16>, vector<128x512xbf16>, vector<2x512xf32> -> vector<2x512xf32>
    %31 = arith.addf %18, %30 : vector<2x512xf32>
    %c2 = arith.constant 2 : index
    %c0_22 = arith.constant 0 : index
    %c0_23 = arith.constant 0 : index
    %32 = vector.load %arg2[%c2, %c0_22, %c0_23] : memref<7x2x1152xbf16, #tpu.memory_space<vmem>>, vector<1x2x1152xbf16>
    %33 = vector.shape_cast %32 : vector<1x2x1152xbf16> to vector<2x1152xbf16>
    %cst_24 = arith.constant dense<0.000000e+00> : vector<2x128xf32>
    %34 = tpu.matmul %33, %3, %cst_24 {dimension_numbers = #tpu.dot_dimension_numbers<[1], [0], [0], [1], [0, 0, 1, 1], [], []>} : vector<2x1152xbf16>, vector<1152x128xbf16>, vector<2x128xf32> -> vector<2x128xf32>
    %35 = vector.broadcast %4 : vector<1x128xf32> to vector<2x128xf32>
    %36 = arith.addf %34, %35 : vector<2x128xf32>
    %cst_25 = arith.constant 0.000000e+00 : f32
    %37 = vector.broadcast %cst_25 : f32 to vector<2x128xf32>
    %38 = arith.maximumf %36, %37 : vector<2x128xf32>
    %39 = arith.truncf %38 : vector<2x128xf32> to vector<2x128xbf16>
    %c2_26 = arith.constant 2 : index
    %c0_27 = arith.constant 0 : index
    %c0_28 = arith.constant 0 : index
    %40 = vector.load %arg5[%c2_26, %c0_27, %c0_28] : memref<7x128x512xi8, #tpu.memory_space<vmem>>, vector<1x128x512xi8>
    %41 = vector.shape_cast %40 : vector<1x128x512xi8> to vector<128x512xi8>
    %42 = arith.sitofp %41 : vector<128x512xi8> to vector<128x512xbf16>
    %cst_29 = arith.constant dense<0.000000e+00> : vector<2x512xf32>
    %43 = tpu.matmul %39, %42, %cst_29 {dimension_numbers = #tpu.dot_dimension_numbers<[1], [0], [0], [1], [0, 0, 1, 1], [], []>} : vector<2x128xbf16>, vector<128x512xbf16>, vector<2x512xf32> -> vector<2x512xf32>
    %44 = arith.addf %31, %43 : vector<2x512xf32>
    %c3 = arith.constant 3 : index
    %c0_30 = arith.constant 0 : index
    %c0_31 = arith.constant 0 : index
    %45 = vector.load %arg2[%c3, %c0_30, %c0_31] : memref<7x2x1152xbf16, #tpu.memory_space<vmem>>, vector<1x2x1152xbf16>
    %46 = vector.shape_cast %45 : vector<1x2x1152xbf16> to vector<2x1152xbf16>
    %cst_32 = arith.constant dense<0.000000e+00> : vector<2x128xf32>
    %47 = tpu.matmul %46, %3, %cst_32 {dimension_numbers = #tpu.dot_dimension_numbers<[1], [0], [0], [1], [0, 0, 1, 1], [], []>} : vector<2x1152xbf16>, vector<1152x128xbf16>, vector<2x128xf32> -> vector<2x128xf32>
    %48 = vector.broadcast %4 : vector<1x128xf32> to vector<2x128xf32>
    %49 = arith.addf %47, %48 : vector<2x128xf32>
    %cst_33 = arith.constant 0.000000e+00 : f32
    %50 = vector.broadcast %cst_33 : f32 to vector<2x128xf32>
    %51 = arith.maximumf %49, %50 : vector<2x128xf32>
    %52 = arith.truncf %51 : vector<2x128xf32> to vector<2x128xbf16>
    %c3_34 = arith.constant 3 : index
    %c0_35 = arith.constant 0 : index
    %c0_36 = arith.constant 0 : index
    %53 = vector.load %arg5[%c3_34, %c0_35, %c0_36] : memref<7x128x512xi8, #tpu.memory_space<vmem>>, vector<1x128x512xi8>
    %54 = vector.shape_cast %53 : vector<1x128x512xi8> to vector<128x512xi8>
    %55 = arith.sitofp %54 : vector<128x512xi8> to vector<128x512xbf16>
    %cst_37 = arith.constant dense<0.000000e+00> : vector<2x512xf32>
    %56 = tpu.matmul %52, %55, %cst_37 {dimension_numbers = #tpu.dot_dimension_numbers<[1], [0], [0], [1], [0, 0, 1, 1], [], []>} : vector<2x128xbf16>, vector<128x512xbf16>, vector<2x512xf32> -> vector<2x512xf32>
    %57 = arith.addf %44, %56 : vector<2x512xf32>
    %c4 = arith.constant 4 : index
    %c0_38 = arith.constant 0 : index
    %c0_39 = arith.constant 0 : index
    %58 = vector.load %arg2[%c4, %c0_38, %c0_39] : memref<7x2x1152xbf16, #tpu.memory_space<vmem>>, vector<1x2x1152xbf16>
    %59 = vector.shape_cast %58 : vector<1x2x1152xbf16> to vector<2x1152xbf16>
    %cst_40 = arith.constant dense<0.000000e+00> : vector<2x128xf32>
    %60 = tpu.matmul %59, %3, %cst_40 {dimension_numbers = #tpu.dot_dimension_numbers<[1], [0], [0], [1], [0, 0, 1, 1], [], []>} : vector<2x1152xbf16>, vector<1152x128xbf16>, vector<2x128xf32> -> vector<2x128xf32>
    %61 = vector.broadcast %4 : vector<1x128xf32> to vector<2x128xf32>
    %62 = arith.addf %60, %61 : vector<2x128xf32>
    %cst_41 = arith.constant 0.000000e+00 : f32
    %63 = vector.broadcast %cst_41 : f32 to vector<2x128xf32>
    %64 = arith.maximumf %62, %63 : vector<2x128xf32>
    %65 = arith.truncf %64 : vector<2x128xf32> to vector<2x128xbf16>
    %c4_42 = arith.constant 4 : index
    %c0_43 = arith.constant 0 : index
    %c0_44 = arith.constant 0 : index
    %66 = vector.load %arg5[%c4_42, %c0_43, %c0_44] : memref<7x128x512xi8, #tpu.memory_space<vmem>>, vector<1x128x512xi8>
    %67 = vector.shape_cast %66 : vector<1x128x512xi8> to vector<128x512xi8>
    %68 = arith.sitofp %67 : vector<128x512xi8> to vector<128x512xbf16>
    %cst_45 = arith.constant dense<0.000000e+00> : vector<2x512xf32>
    %69 = tpu.matmul %65, %68, %cst_45 {dimension_numbers = #tpu.dot_dimension_numbers<[1], [0], [0], [1], [0, 0, 1, 1], [], []>} : vector<2x128xbf16>, vector<128x512xbf16>, vector<2x512xf32> -> vector<2x512xf32>
    %70 = arith.addf %57, %69 : vector<2x512xf32>
    %c5 = arith.constant 5 : index
    %c0_46 = arith.constant 0 : index
    %c0_47 = arith.constant 0 : index
    %71 = vector.load %arg2[%c5, %c0_46, %c0_47] : memref<7x2x1152xbf16, #tpu.memory_space<vmem>>, vector<1x2x1152xbf16>
    %72 = vector.shape_cast %71 : vector<1x2x1152xbf16> to vector<2x1152xbf16>
    %cst_48 = arith.constant dense<0.000000e+00> : vector<2x128xf32>
    %73 = tpu.matmul %72, %3, %cst_48 {dimension_numbers = #tpu.dot_dimension_numbers<[1], [0], [0], [1], [0, 0, 1, 1], [], []>} : vector<2x1152xbf16>, vector<1152x128xbf16>, vector<2x128xf32> -> vector<2x128xf32>
    %74 = vector.broadcast %4 : vector<1x128xf32> to vector<2x128xf32>
    %75 = arith.addf %73, %74 : vector<2x128xf32>
    %cst_49 = arith.constant 0.000000e+00 : f32
    %76 = vector.broadcast %cst_49 : f32 to vector<2x128xf32>
    %77 = arith.maximumf %75, %76 : vector<2x128xf32>
    %78 = arith.truncf %77 : vector<2x128xf32> to vector<2x128xbf16>
    %c5_50 = arith.constant 5 : index
    %c0_51 = arith.constant 0 : index
    %c0_52 = arith.constant 0 : index
    %79 = vector.load %arg5[%c5_50, %c0_51, %c0_52] : memref<7x128x512xi8, #tpu.memory_space<vmem>>, vector<1x128x512xi8>
    %80 = vector.shape_cast %79 : vector<1x128x512xi8> to vector<128x512xi8>
    %81 = arith.sitofp %80 : vector<128x512xi8> to vector<128x512xbf16>
    %cst_53 = arith.constant dense<0.000000e+00> : vector<2x512xf32>
    %82 = tpu.matmul %78, %81, %cst_53 {dimension_numbers = #tpu.dot_dimension_numbers<[1], [0], [0], [1], [0, 0, 1, 1], [], []>} : vector<2x128xbf16>, vector<128x512xbf16>, vector<2x512xf32> -> vector<2x512xf32>
    %83 = arith.addf %70, %82 : vector<2x512xf32>
    %c6 = arith.constant 6 : index
    %c0_54 = arith.constant 0 : index
    %c0_55 = arith.constant 0 : index
    %84 = vector.load %arg2[%c6, %c0_54, %c0_55] : memref<7x2x1152xbf16, #tpu.memory_space<vmem>>, vector<1x2x1152xbf16>
    %85 = vector.shape_cast %84 : vector<1x2x1152xbf16> to vector<2x1152xbf16>
    %cst_56 = arith.constant dense<0.000000e+00> : vector<2x128xf32>
    %86 = tpu.matmul %85, %3, %cst_56 {dimension_numbers = #tpu.dot_dimension_numbers<[1], [0], [0], [1], [0, 0, 1, 1], [], []>} : vector<2x1152xbf16>, vector<1152x128xbf16>, vector<2x128xf32> -> vector<2x128xf32>
    %87 = vector.broadcast %4 : vector<1x128xf32> to vector<2x128xf32>
    %88 = arith.addf %86, %87 : vector<2x128xf32>
    %cst_57 = arith.constant 0.000000e+00 : f32
    %89 = vector.broadcast %cst_57 : f32 to vector<2x128xf32>
    %90 = arith.maximumf %88, %89 : vector<2x128xf32>
    %91 = arith.truncf %90 : vector<2x128xf32> to vector<2x128xbf16>
    %c6_58 = arith.constant 6 : index
    %c0_59 = arith.constant 0 : index
    %c0_60 = arith.constant 0 : index
    %92 = vector.load %arg5[%c6_58, %c0_59, %c0_60] : memref<7x128x512xi8, #tpu.memory_space<vmem>>, vector<1x128x512xi8>
    %93 = vector.shape_cast %92 : vector<1x128x512xi8> to vector<128x512xi8>
    %94 = arith.sitofp %93 : vector<128x512xi8> to vector<128x512xbf16>
    %cst_61 = arith.constant dense<0.000000e+00> : vector<2x512xf32>
    %95 = tpu.matmul %91, %94, %cst_61 {dimension_numbers = #tpu.dot_dimension_numbers<[1], [0], [0], [1], [0, 0, 1, 1], [], []>} : vector<2x128xbf16>, vector<128x512xbf16>, vector<2x512xf32> -> vector<2x512xf32>
    %96 = arith.addf %83, %95 : vector<2x512xf32>
    %c0_62 = arith.constant 0 : index
    %c0_63 = arith.constant 0 : index
    %97 = vector.load %arg11[%c0_62, %c0_63] : memref<2x512xf32, #tpu.memory_space<vmem>>, vector<2x512xf32>
    tpu.vector_store %arg11[%c0_62, %c0_63], %96 {strides = array<i32>} : memref<2x512xf32, #tpu.memory_space<vmem>>, vector<2x512xf32>,
    %c6_i32 = arith.constant 6 : i32
    %98 = arith.cmpi eq, %arg1, %c6_i32 : i32
    %99 = arith.extui %98 : i1 to i32
    %c0_i32_64 = arith.constant 0 : i32
    %100 = arith.cmpi ne, %99, %c0_i32_64 : i32
    scf.if %100 {
      %c0_65 = arith.constant 0 : index
      %c0_66 = arith.constant 0 : index
      %101 = vector.load %arg11[%c0_65, %c0_66] : memref<2x512xf32, #tpu.memory_space<vmem>>, vector<2x512xf32>
      %c0_67 = arith.constant 0 : index
      %c0_68 = arith.constant 0 : index
      %102 = vector.load %arg6[%c0_67, %c0_68] : memref<1x512xf32, #tpu.memory_space<vmem>>, vector<1x512xf32>
      %103 = vector.broadcast %102 : vector<1x512xf32> to vector<2x512xf32>
      %104 = arith.mulf %101, %103 : vector<2x512xf32>
      %c0_69 = arith.constant 0 : index
      %c0_70 = arith.constant 0 : index
      %105 = vector.load %arg7[%c0_69, %c0_70] : memref<1x512xf32, #tpu.memory_space<vmem>>, vector<1x512xf32>
      %106 = vector.broadcast %105 : vector<1x512xf32> to vector<2x512xf32>
      %107 = arith.addf %104, %106 : vector<2x512xf32>
      %cst_71 = arith.constant 0.000000e+00 : f32
      %108 = vector.broadcast %cst_71 : f32 to vector<2x512xf32>
      %109 = arith.maximumf %107, %108 : vector<2x512xf32>
      %110 = arith.truncf %109 : vector<2x512xf32> to vector<2x512xbf16>
      %c0_72 = arith.constant 0 : index
      %c0_73 = arith.constant 0 : index
      %111 = vector.load %arg8[%c0_72, %c0_73] : memref<512x128xbf16, #tpu.memory_space<vmem>>, vector<512x128xbf16>
      %cst_74 = arith.constant dense<0.000000e+00> : vector<2x128xf32>
      %112 = tpu.matmul %110, %111, %cst_74 {dimension_numbers = #tpu.dot_dimension_numbers<[1], [0], [0], [1], [0, 0, 1, 1], [], []>} : vector<2x512xbf16>, vector<512x128xbf16>, vector<2x128xf32> -> vector<2x128xf32>
      %c0_75 = arith.constant 0 : index
      %c0_76 = arith.constant 0 : index
      %113 = vector.load %arg9[%c0_75, %c0_76] : memref<1x128xf32, #tpu.memory_space<vmem>>, vector<1x128xf32>
      %114 = vector.broadcast %113 : vector<1x128xf32> to vector<2x128xf32>
      %115 = arith.addf %112, %114 : vector<2x128xf32>
      %c0_77 = arith.constant 0 : index
      %c0_78 = arith.constant 0 : index
      %116 = vector.load %arg10[%c0_77, %c0_78] : memref<2x128xf32, #tpu.memory_space<vmem>>, vector<2x128xf32>
      tpu.vector_store %arg10[%c0_77, %c0_78], %115 {strides = array<i32>} : memref<2x128xf32, #tpu.memory_space<vmem>>, vector<2x128xf32>,
    } else {
    }
    return
  }
  func.func @transform_0(%arg0: i32, %arg1: i32) -> (i32, i32, i32) {
    %c0_i32 = arith.constant 0 : i32
    %c0_i32_0 = arith.constant 0 : i32
    return %arg1, %arg0, %c0_i32 : i32, i32, i32
  }
  func.func @transform_1(%arg0: i32, %arg1: i32) -> (i32, i32) {
    %c0_i32 = arith.constant 0 : i32
    %c0_i32_0 = arith.constant 0 : i32
    %c0_i32_1 = arith.constant 0 : i32
    return %c0_i32, %c0_i32_0 : i32, i32
  }
  func.func @transform_2(%arg0: i32, %arg1: i32) -> (i32, i32) {
    %c0_i32 = arith.constant 0 : i32
    %c0_i32_0 = arith.constant 0 : i32
    %c0_i32_1 = arith.constant 0 : i32
    return %c0_i32, %c0_i32_0 : i32, i32
  }
  func.func @transform_3(%arg0: i32, %arg1: i32) -> (i32, i32, i32) {
    %c0_i32 = arith.constant 0 : i32
    %c0_i32_0 = arith.constant 0 : i32
    %c0_i32_1 = arith.constant 0 : i32
    return %arg1, %c0_i32, %c0_i32_0 : i32, i32, i32
  }
  func.func @transform_4(%arg0: i32, %arg1: i32) -> (i32, i32) {
    %c0_i32 = arith.constant 0 : i32
    %c0_i32_0 = arith.constant 0 : i32
    %c0_i32_1 = arith.constant 0 : i32
    return %c0_i32, %c0_i32_0 : i32, i32
  }
  func.func @transform_5(%arg0: i32, %arg1: i32) -> (i32, i32) {
    %c0_i32 = arith.constant 0 : i32
    %c0_i32_0 = arith.constant 0 : i32
    %c0_i32_1 = arith.constant 0 : i32
    return %c0_i32, %c0_i32_0 : i32, i32
  }
  func.func @transform_6(%arg0: i32, %arg1: i32) -> (i32, i32) {
    %c0_i32 = arith.constant 0 : i32
    %c0_i32_0 = arith.constant 0 : i32
    %c0_i32_1 = arith.constant 0 : i32
    return %c0_i32, %c0_i32_0 : i32, i32
  }
  func.func @transform_7(%arg0: i32, %arg1: i32) -> (i32, i32) {
    %c0_i32 = arith.constant 0 : i32
    %c0_i32_0 = arith.constant 0 : i32
    %c0_i32_1 = arith.constant 0 : i32
    return %c0_i32, %c0_i32_0 : i32, i32
  }
  func.func @transform_8(%arg0: i32, %arg1: i32) -> (i32, i32) {
    %c0_i32 = arith.constant 0 : i32
    %c0_i32_0 = arith.constant 0 : i32
    return %arg0, %c0_i32 : i32, i32
  }
}

</mosaic_0001>

<llo_original>
// kernel: model_forward.2
$region0: #{model_forward.2}
  #allocation0 [shape = 'u32[]', space=smem, size = 0x4, offset = 0x4, fixed_abs, tag = 'smem constant byte address 0x4 - core index']
  #allocation1 [shape = 'u32[144,128]{1,0:T(1,128)}', space=vmem, size = 0x12000, scoped, tag = 'internal scratch']
  %s0 = inlined_call_operand.vmem [shape: bf16[392,9], index: 0, kind: input, shape index: {}]
  %s1 = inlined_call_operand.hbm [shape: bf16[9,128], index: 1, kind: input, shape index: {}]
  %s2 = inlined_call_operand.hbm [shape: f32[1,128], index: 2, kind: input, shape index: {}]
  %s3 = inlined_call_operand.vmem [shape: bf16[392,128], index: 3, kind: output, shape index: {}]
  %s4 = sld [smem:[#allocation0]]
  $region30: #{model_forward.2} parent=0
    _
  %s6 = ssub.s32 1, %s4
  %s7 = scalar_select 0, %s6, %s4
  $region1: #{model_forward.2} parent=0
    #allocation2 [shape = 'u8[4096]{0}', space=vmem, size = 0x1000, scoped, tag = 'input window, operand 1, single buffered']
    #allocation3 [shape = 's32[1]{0}', space=sflag, size = 0x4, scoped, tag = 'scoped memory for model_forward.2']
    #allocation4 [shape = 'u8[512]{0}', space=vmem, size = 0x400, scoped, tag = 'input window, operand 2, single buffered']
    #allocation5 [shape = 's32[1]{0}', space=sflag, size = 0x4, scoped, tag = 'scoped memory for model_forward.2']
    %8 = vsyncpa [#allocation3], 0
    %9 = vsyncpa [#allocation5], 0
    // Predicated region
    $region2: #{model_forward.2} parent=1 // pred_check
      _
    $region3: #{model_forward.2} parent=1 // pred_check_branch
      %11 = sbr.rel (0) target = $region5
    $region4: #{model_forward.2} parent=1 // pred_region
      _
    $region5: #{model_forward.2} parent=1 // pred_fallthru
      _
    // Predicated region
    $region6: #{model_forward.2} parent=1 // pred_check
      _
    $region7: #{model_forward.2} parent=1 // pred_check_branch
      %13 = sbr.rel (0) target = $region9
    $region8: #{model_forward.2} parent=1 // pred_region
      %s15 = ssub.s32 128, 128
      %16 = vsyncadd [#allocation3], %s15
      %s17 = sshll.u32 [#allocation2], 4
      %s18 = int_to_ptr.vmem [resolvable:$true] %s17
      %23 = dma.hbm_to_vmem [thread:$0]  %s1, 128, %s18, [#allocation3], 64, 64, 4
    $region9: #{model_forward.2} parent=1 // pred_fallthru
      _
    // Predicated region
    $region10: #{model_forward.2} parent=1 // pred_check
      _
    $region11: #{model_forward.2} parent=1 // pred_check_branch
      %25 = sbr.rel (0) target = $region13
    $region12: #{model_forward.2} parent=1 // pred_region
      %s27 = ssub.s32 16, 16
      %28 = vsyncadd [#allocation5], %s27
      %s30 = sshll.u32 [#allocation4], 4
      %s31 = int_to_ptr.vmem [resolvable:$true] %s30
      %33 = dma.hbm_to_vmem [thread:$0]  %s2, 16, %s31, [#allocation5]
    $region13: #{model_forward.2} parent=1 // pred_fallthru
      _
    // Predicated region
    $region14: #{model_forward.2} parent=1 // pred_check
      _
    $region15: #{model_forward.2} parent=1 // pred_check_branch
      %35 = sbr.rel (0) target = $region17
    $region16: #{model_forward.2} parent=1 // pred_region
      %36 = dma.done [#allocation3], 128
    $region17: #{model_forward.2} parent=1 // pred_fallthru
      _
    // Predicated region
    $region18: #{model_forward.2} parent=1 // pred_check
      _
    $region19: #{model_forward.2} parent=1 // pred_check_branch
      %38 = sbr.rel (0) target = $region21
    $region20: #{model_forward.2} parent=1 // pred_region
      %39 = dma.done [#allocation5], 16
    $region21: #{model_forward.2} parent=1 // pred_fallthru
      _
    %v41 = vld [vmem:[%s0] sm:$0xf]
    %v42 = vld [vmem:[%s0 + $0x4] sm:$0xf]
    %v43 = vld [vmem:[%s0 + $0x8] sm:$0xf]
    %v44 = vld [vmem:[%s0 + $0xc] sm:$0xf]
    %v45 = vld [vmem:[%s0 + $0x10] sm:$0xf]
    %v46 = vld [vmem:[%s0 + $0x14] sm:$0xf]
    %v47 = vld [vmem:[%s0 + $0x18] sm:$0xf]
    %v48 = vld [vmem:[%s0 + $0x1c] sm:$0xf]
    %v49 = vld [vmem:[%s0 + $0x20] sm:$0xf]
    %v50 = vld [vmem:[%s0 + $0x24] sm:$0xf]
    %v51 = vld [vmem:[%s0 + $0x28] sm:$0xf]
    %v52 = vld [vmem:[%s0 + $0x2c] sm:$0xf]
    %v53 = vld [vmem:[%s0 + $0x30] sm:$0xf]
    %v54 = vld [vmem:[%s0 + $0x34] sm:$0xf]
    %v55 = vld [vmem:[%s0 + $0x38] sm:$0xf]
    %v56 = vld [vmem:[%s0 + $0x3c] sm:$0xf]
    %v57 = vld [vmem:[%s0 + $0x40] sm:$0xf]
    %v58 = vld [vmem:[%s0 + $0x44] sm:$0xf]
    %v59 = vld [vmem:[%s0 + $0x48] sm:$0xf]
    %v60 = vld [vmem:[%s0 + $0x4c] sm:$0xf]
    %v61 = vld [vmem:[%s0 + $0x50] sm:$0xf]
    %v62 = vld [vmem:[%s0 + $0x54] sm:$0xf]
    %v63 = vld [vmem:[%s0 + $0x58] sm:$0xf]
    %v64 = vld [vmem:[%s0 + $0x5c] sm:$0xf]
    %v65 = vld [vmem:[%s0 + $0x60] sm:$0xf]
    %v66 = vld [vmem:[%s0 + $0x64] sm:$0xf]
    %v67 = vld [vmem:[%s0 + $0x68] sm:$0xf]
    %v68 = vld [vmem:[%s0 + $0x6c] sm:$0xf]
    %v69 = vld [vmem:[%s0 + $0x70] sm:$0xf]
    %v70 = vld [vmem:[%s0 + $0x74] sm:$0xf]
    %v71 = vld [vmem:[%s0 + $0x78] sm:$0xf]
    %v72 = vld [vmem:[%s0 + $0x7c] sm:$0xf]
    %v73 = vld [vmem:[%s0 + $0x80] sm:$0xf]
    %v74 = vld [vmem:[%s0 + $0x84] sm:$0xf]
    %v75 = vld [vmem:[%s0 + $0x88] sm:$0xf]
    %v76 = vld [vmem:[%s0 + $0x8c] sm:$0xf]
    %v77 = vld [vmem:[%s0 + $0x90] sm:$0xf]
    %v78 = vld [vmem:[%s0 + $0x94] sm:$0xf]
    %v79 = vld [vmem:[%s0 + $0x98] sm:$0xf]
    %v80 = vld [vmem:[%s0 + $0x9c] sm:$0xf]
    %v81 = vld [vmem:[%s0 + $0xa0] sm:$0xf]
    %v82 = vld [vmem:[%s0 + $0xa4] sm:$0xf]
    %v83 = vld [vmem:[%s0 + $0xa8] sm:$0xf]
    %v84 = vld [vmem:[%s0 + $0xac] sm:$0xf]
    %v85 = vld [vmem:[%s0 + $0xb0] sm:$0xf]
    %v86 = vld [vmem:[%s0 + $0xb4] sm:$0xf]
    %v87 = vld [vmem:[%s0 + $0xb8] sm:$0xf]
    %v88 = vld [vmem:[%s0 + $0xbc] sm:$0xf]
    %v89 = vld [vmem:[%s0 + $0xc0] sm:$0xf]
    %v90 = vld [vmem:[#allocation2] sm:$0xf]
    %v91 = vld [vmem:[#allocation2 + $0x4] sm:$0x1]
    %v92 = vld [vmem:[#allocation4] sm:$0x1]
    %v94 = vlaneseq
    %v95 = vshrl.u32 %v94, 7
    %v96 = vsub.s32 0, %v95
    %v97 = vrot.slane %v92, %v96
    %v148 = vunpack.c.l.b16 %v41
    %v149 = vunpack.c.l.b16 %v42
    %v150 = vunpack.c.l.b16 %v43
    %v151 = vunpack.c.l.b16 %v44
    %v152 = vunpack.c.l.b16 %v45
    %v153 = vunpack.c.l.b16 %v46
    %v154 = vunpack.c.l.b16 %v47
    %v155 = vunpack.c.l.b16 %v48
    %v156 = vunpack.c.l.b16 %v49
    %v157 = vunpack.c.l.b16 %v50
    %v158 = vunpack.c.l.b16 %v51
    %v159 = vunpack.c.l.b16 %v52
    %v160 = vunpack.c.l.b16 %v53
    %v161 = vunpack.c.l.b16 %v54
    %v162 = vunpack.c.l.b16 %v55
    %v163 = vunpack.c.l.b16 %v56
    %v164 = vunpack.c.l.b16 %v57
    %v165 = vunpack.c.l.b16 %v58
    %v166 = vunpack.c.l.b16 %v59
    %v167 = vunpack.c.l.b16 %v60
    %v168 = vunpack.c.l.b16 %v61
    %v169 = vunpack.c.l.b16 %v62
    %v170 = vunpack.c.l.b16 %v63
    %v171 = vunpack.c.l.b16 %v64
    %v172 = vunpack.c.l.b16 %v65
    %v173 = vunpack.c.l.b16 %v66
    %v174 = vunpack.c.l.b16 %v67
    %v175 = vunpack.c.l.b16 %v68
    %v176 = vunpack.c.l.b16 %v69
    %v177 = vunpack.c.l.b16 %v70
    %v178 = vunpack.c.l.b16 %v71
    %v179 = vunpack.c.l.b16 %v72
    %v180 = vunpack.c.l.b16 %v73
    %v181 = vunpack.c.l.b16 %v74
    %v182 = vunpack.c.l.b16 %v75
    %v183 = vunpack.c.l.b16 %v76
    %v184 = vunpack.c.l.b16 %v77
    %v185 = vunpack.c.l.b16 %v78
    %v186 = vunpack.c.l.b16 %v79
    %v187 = vunpack.c.l.b16 %v80
    %v188 = vunpack.c.l.b16 %v81
    %v189 = vunpack.c.l.b16 %v82
    %v190 = vunpack.c.l.b16 %v83
    %v191 = vunpack.c.l.b16 %v84
    %v192 = vunpack.c.l.b16 %v85
    %v193 = vunpack.c.l.b16 %v86
    %v194 = vunpack.c.l.b16 %v87
    %v195 = vunpack.c.l.b16 %v88
    %v196 = vunpack.c.l.b16 %v89
    %v197 = vpack.c.b16 %v149, %v148
    %v198 = vpack.c.b16 %v151, %v150
    %v199 = vpack.c.b16 %v153, %v152
    %v200 = vpack.c.b16 %v155, %v154
    %v201 = vpack.c.b16 %v157, %v156
    %v202 = vpack.c.b16 %v159, %v158
    %v203 = vpack.c.b16 %v161, %v160
    %v204 = vpack.c.b16 %v163, %v162
    %v205 = vpack.c.b16 %v165, %v164
    %v206 = vpack.c.b16 %v167, %v166
    %v207 = vpack.c.b16 %v169, %v168
    %v208 = vpack.c.b16 %v171, %v170
    %v209 = vpack.c.b16 %v173, %v172
    %v210 = vpack.c.b16 %v175, %v174
    %v211 = vpack.c.b16 %v177, %v176
    %v212 = vpack.c.b16 %v179, %v178
    %v213 = vpack.c.b16 %v181, %v180
    %v214 = vpack.c.b16 %v183, %v182
    %v215 = vpack.c.b16 %v185, %v184
    %v216 = vpack.c.b16 %v187, %v186
    %v217 = vpack.c.b16 %v189, %v188
    %v218 = vpack.c.b16 %v191, %v190
    %v219 = vpack.c.b16 %v193, %v192
    %v220 = vpack.c.b16 %v195, %v194
    %v221 = vpack.c.b16 %v196, %v196
    %v224 = vunpack.c.l.b16 %v90
    %v225 = vunpack.c.l.b16 %v91
    %v226 = vpack.c.b16 %v225, %v224
    %vm227 = vcmask 72704
    %v229 = vsel %vm227, %v197, 0
    %v232 = vsel %vm227, %v198, 0
    %v235 = vsel %vm227, %v199, 0
    %v238 = vsel %vm227, %v200, 0
    %v241 = vsel %vm227, %v201, 0
    %v244 = vsel %vm227, %v202, 0
    %v247 = vsel %vm227, %v203, 0
    %v250 = vsel %vm227, %v204, 0
    %v253 = vsel %vm227, %v205, 0
    %v256 = vsel %vm227, %v206, 0
    %v259 = vsel %vm227, %v207, 0
    %v262 = vsel %vm227, %v208, 0
    %v265 = vsel %vm227, %v209, 0
    %v268 = vsel %vm227, %v210, 0
    %v271 = vsel %vm227, %v211, 0
    %v274 = vsel %vm227, %v212, 0
    %v277 = vsel %vm227, %v213, 0
    %v280 = vsel %vm227, %v214, 0
    %v283 = vsel %vm227, %v215, 0
    %v286 = vsel %vm227, %v216, 0
    %v289 = vsel %vm227, %v217, 0
    %v292 = vsel %vm227, %v218, 0
    %v295 = vsel %vm227, %v219, 0
    %v298 = vsel %vm227, %v220, 0
    %v301 = vsel %vm227, %v221, 0
    %vm303 = vcmask 1043456
    %vm304 = vcmask 1044480
    %v305 = vsel %vm303, 4294967295, 65535
    %v306 = vsel %vm304, %v305, 0
    %v308 = vand.u32 %v226, %v306
    %310 = vmatprep.subr.bf16.mxu0 0
    %311 = vmatpush1.bf16.msra.mxu0 %v308
    %312 = vmatprep.subr.bf16.mxu0 0
    %313 = vmatpush1.bf16.msra.mxu0 0
    %314 = vmatprep.subr.bf16.mxu0 0
    %315 = vmatpush1.bf16.msra.mxu0 0
    %316 = vmatprep.subr.bf16.mxu0 0
    %317 = vmatpush1.bf16.msra.mxu0 0
    %318 = vmatprep.subr.bf16.mxu0 0
    %319 = vmatpush1.bf16.msra.mxu0 0
    %320 = vmatprep.subr.bf16.mxu0 0
    %321 = vmatpush1.bf16.msra.mxu0 0
    %322 = vmatprep.subr.bf16.mxu0 0
    %323 = vmatpush1.bf16.msra.mxu0 0
    %324 = vmatprep.subr.bf16.mxu0 0
    %325 = vmatpush1.bf16.msra.mxu0 0
    %326 = vmatprep.subr.bf16.mxu0 0
    %327 = vmatpush1.bf16.msra.mxu0 0
    %328 = vmatprep.subr.bf16.mxu0 0
    %329 = vmatpush1.bf16.msra.mxu0 0
    %330 = vmatprep.subr.bf16.mxu0 0
    %331 = vmatpush1.bf16.msra.mxu0 0
    %332 = vmatprep.subr.bf16.mxu0 0
    %333 = vmatpush1.bf16.msra.mxu0 0
    %334 = vmatprep.subr.bf16.mxu0 0
    %335 = vmatpush1.bf16.msra.mxu0 0
    %336 = vmatprep.subr.bf16.mxu0 0
    %337 = vmatpush1.bf16.msra.mxu0 0
    %338 = vmatprep.subr.bf16.mxu0 0
    %339 = vmatpush1.bf16.msra.mxu0 0
    %340 = vmatprep.subr.bf16.mxu0 0
    %341 = vmatpush1.bf16.msra.mxu0 0
    %342 = vmatprep.mubr.bf16.mxu0 0
    %343 = vmatmul.mubr.bf16.gmra.mrb[0].mxu0 %v229
    %v344 = vpop.f32.mrb[0].mxu0
    %v345 = vadd.f32 %v97, %v344
    %v346 = vpop.f32.mrb[0].mxu0
    %v347 = vpop.f32.mrb[0].mxu0
    %v348 = vadd.f32 %v97, %v347
    %v349 = vpop.f32.mrb[0].mxu0
    %350 = vmatprep.mubr.bf16.mxu0 0
    %351 = vmatmul.mubr.bf16.gmra.mrb[0].mxu0 %v232
    %v352 = vpop.f32.mrb[0].mxu0
    %v353 = vadd.f32 %v97, %v352
    %v354 = vpop.f32.mrb[0].mxu0
    %v355 = vpop.f32.mrb[0].mxu0
    %v356 = vadd.f32 %v97, %v355
    %v357 = vpop.f32.mrb[0].mxu0
    %358 = vmatprep.mubr.bf16.mxu0 0
    %359 = vmatmul.mubr.bf16.gmra.mrb[0].mxu0 %v235
    %v360 = vpop.f32.mrb[0].mxu0
    %v361 = vadd.f32 %v97, %v360
    %v362 = vpop.f32.mrb[0].mxu0
    %v363 = vpop.f32.mrb[0].mxu0
    %v364 = vadd.f32 %v97, %v363
    %v365 = vpop.f32.mrb[0].mxu0
    %366 = vmatprep.mubr.bf16.mxu0 0
    %367 = vmatmul.mubr.bf16.gmra.mrb[0].mxu0 %v238
    %v368 = vpop.f32.mrb[0].mxu0
    %v369 = vadd.f32 %v97, %v368
    %v370 = vpop.f32.mrb[0].mxu0
    %v371 = vpop.f32.mrb[0].mxu0
    %v372 = vadd.f32 %v97, %v371
    %v373 = vpop.f32.mrb[0].mxu0
    %374 = vmatprep.mubr.bf16.mxu0 0
    %375 = vmatmul.mubr.bf16.gmra.mrb[0].mxu0 %v241
    %v376 = vpop.f32.mrb[0].mxu0
    %v377 = vadd.f32 %v97, %v376
    %v378 = vpop.f32.mrb[0].mxu0
    %v379 = vpop.f32.mrb[0].mxu0
    %v380 = vadd.f32 %v97, %v379
    %v381 = vpop.f32.mrb[0].mxu0
    %382 = vmatprep.mubr.bf16.mxu0 0
    %383 = vmatmul.mubr.bf16.gmra.mrb[0].mxu0 %v244
    %v384 = vpop.f32.mrb[0].mxu0
    %v385 = vadd.f32 %v97, %v384
    %v386 = vpop.f32.mrb[0].mxu0
    %v387 = vpop.f32.mrb[0].mxu0
    %v388 = vadd.f32 %v97, %v387
    %v389 = vpop.f32.mrb[0].mxu0
    %390 = vmatprep.mubr.bf16.mxu0 0
    %391 = vmatmul.mubr.bf16.gmra.mrb[0].mxu0 %v247
    %v392 = vpop.f32.mrb[0].mxu0
    %v393 = vadd.f32 %v97, %v392
    %v394 = vpop.f32.mrb[0].mxu0
    %v395 = vpop.f32.mrb[0].mxu0
    %v396 = vadd.f32 %v97, %v395
    %v397 = vpop.f32.mrb[0].mxu0
    %398 = vmatprep.mubr.bf16.mxu0 0
    %399 = vmatmul.mubr.bf16.gmra.mrb[0].mxu0 %v250
    %v400 = vpop.f32.mrb[0].mxu0
    %v401 = vadd.f32 %v97, %v400
    %v402 = vpop.f32.mrb[0].mxu0
    %v403 = vpop.f32.mrb[0].mxu0
    %v404 = vadd.f32 %v97, %v403
    %v405 = vpop.f32.mrb[0].mxu0
    %406 = vmatprep.mubr.bf16.mxu0 0
    %407 = vmatmul.mubr.bf16.gmra.mrb[0].mxu0 %v253
    %v408 = vpop.f32.mrb[0].mxu0
    %v409 = vadd.f32 %v97, %v408
    %v410 = vpop.f32.mrb[0].mxu0
    %v411 = vpop.f32.mrb[0].mxu0
    %v412 = vadd.f32 %v97, %v411
    %v413 = vpop.f32.mrb[0].mxu0
    %414 = vmatprep.mubr.bf16.mxu0 0
    %415 = vmatmul.mubr.bf16.gmra.mrb[0].mxu0 %v256
    %v416 = vpop.f32.mrb[0].mxu0
    %v417 = vadd.f32 %v97, %v416
    %v418 = vpop.f32.mrb[0].mxu0
    %v419 = vpop.f32.mrb[0].mxu0
    %v420 = vadd.f32 %v97, %v419
    %v421 = vpop.f32.mrb[0].mxu0
    %422 = vmatprep.mubr.bf16.mxu0 0
    %423 = vmatmul.mubr.bf16.gmra.mrb[0].mxu0 %v259
    %v424 = vpop.f32.mrb[0].mxu0
    %v425 = vadd.f32 %v97, %v424
    %v426 = vpop.f32.mrb[0].mxu0
    %v427 = vpop.f32.mrb[0].mxu0
    %v428 = vadd.f32 %v97, %v427
    %v429 = vpop.f32.mrb[0].mxu0
    %430 = vmatprep.mubr.bf16.mxu0 0
    %431 = vmatmul.mubr.bf16.gmra.mrb[0].mxu0 %v262
    %v432 = vpop.f32.mrb[0].mxu0
    %v433 = vadd.f32 %v97, %v432
    %v434 = vpop.f32.mrb[0].mxu0
    %v435 = vpop.f32.mrb[0].mxu0
    %v436 = vadd.f32 %v97, %v435
    %v437 = vpop.f32.mrb[0].mxu0
    %438 = vmatprep.mubr.bf16.mxu0 0
    %439 = vmatmul.mubr.bf16.gmra.mrb[0].mxu0 %v265
    %v440 = vpop.f32.mrb[0].mxu0
    %v441 = vadd.f32 %v97, %v440
    %v442 = vpop.f32.mrb[0].mxu0
    %v443 = vpop.f32.mrb[0].mxu0
    %v444 = vadd.f32 %v97, %v443
    %v445 = vpop.f32.mrb[0].mxu0
    %446 = vmatprep.mubr.bf16.mxu0 0
    %447 = vmatmul.mubr.bf16.gmra.mrb[0].mxu0 %v268
    %v448 = vpop.f32.mrb[0].mxu0
    %v449 = vadd.f32 %v97, %v448
    %v450 = vpop.f32.mrb[0].mxu0
    %v451 = vpop.f32.mrb[0].mxu0
    %v452 = vadd.f32 %v97, %v451
    %v453 = vpop.f32.mrb[0].mxu0
    %454 = vmatprep.mubr.bf16.mxu0 0
    %455 = vmatmul.mubr.bf16.gmra.mrb[0].mxu0 %v271
    %v456 = vpop.f32.mrb[0].mxu0
    %v457 = vadd.f32 %v97, %v456
    %v458 = vpop.f32.mrb[0].mxu0
    %v459 = vpop.f32.mrb[0].mxu0
    %v460 = vadd.f32 %v97, %v459
    %v461 = vpop.f32.mrb[0].mxu0
    %462 = vmatprep.mubr.bf16.mxu0 0
    %463 = vmatmul.mubr.bf16.gmra.mrb[0].mxu0 %v274
    %v464 = vpop.f32.mrb[0].mxu0
    %v465 = vadd.f32 %v97, %v464
    %v466 = vpop.f32.mrb[0].mxu0
    %v467 = vpop.f32.mrb[0].mxu0
    %v468 = vadd.f32 %v97, %v467
    %v469 = vpop.f32.mrb[0].mxu0
    %470 = vmatprep.mubr.bf16.mxu0 0
    %471 = vmatmul.mubr.bf16.gmra.mrb[0].mxu0 %v277
    %v472 = vpop.f32.mrb[0].mxu0
    %v473 = vadd.f32 %v97, %v472
    %v474 = vpop.f32.mrb[0].mxu0
    %v475 = vpop.f32.mrb[0].mxu0
    %v476 = vadd.f32 %v97, %v475
    %v477 = vpop.f32.mrb[0].mxu0
    %478 = vmatprep.mubr.bf16.mxu0 0
    %479 = vmatmul.mubr.bf16.gmra.mrb[0].mxu0 %v280
    %v480 = vpop.f32.mrb[0].mxu0
    %v481 = vadd.f32 %v97, %v480
    %v482 = vpop.f32.mrb[0].mxu0
    %v483 = vpop.f32.mrb[0].mxu0
    %v484 = vadd.f32 %v97, %v483
    %v485 = vpop.f32.mrb[0].mxu0
    %486 = vmatprep.mubr.bf16.mxu0 0
    %487 = vmatmul.mubr.bf16.gmra.mrb[0].mxu0 %v283
    %v488 = vpop.f32.mrb[0].mxu0
    %v489 = vadd.f32 %v97, %v488
    %v490 = vpop.f32.mrb[0].mxu0
    %v491 = vpop.f32.mrb[0].mxu0
    %v492 = vadd.f32 %v97, %v491
    %v493 = vpop.f32.mrb[0].mxu0
    %494 = vmatprep.mubr.bf16.mxu0 0
    %495 = vmatmul.mubr.bf16.gmra.mrb[0].mxu0 %v286
    %v496 = vpop.f32.mrb[0].mxu0
    %v497 = vadd.f32 %v97, %v496
    %v498 = vpop.f32.mrb[0].mxu0
    %v499 = vpop.f32.mrb[0].mxu0
    %v500 = vadd.f32 %v97, %v499
    %v501 = vpop.f32.mrb[0].mxu0
    %502 = vmatprep.mubr.bf16.mxu0 0
    %503 = vmatmul.mubr.bf16.gmra.mrb[0].mxu0 %v289
    %v504 = vpop.f32.mrb[0].mxu0
    %v505 = vadd.f32 %v97, %v504
    %v506 = vpop.f32.mrb[0].mxu0
    %v507 = vpop.f32.mrb[0].mxu0
    %v508 = vadd.f32 %v97, %v507
    %v509 = vpop.f32.mrb[0].mxu0
    %510 = vmatprep.mubr.bf16.mxu0 0
    %511 = vmatmul.mubr.bf16.gmra.mrb[0].mxu0 %v292
    %v512 = vpop.f32.mrb[0].mxu0
    %v513 = vadd.f32 %v97, %v512
    %v514 = vpop.f32.mrb[0].mxu0
    %v515 = vpop.f32.mrb[0].mxu0
    %v516 = vadd.f32 %v97, %v515
    %v517 = vpop.f32.mrb[0].mxu0
    %518 = vmatprep.mubr.bf16.mxu0 0
    %519 = vmatmul.mubr.bf16.gmra.mrb[0].mxu0 %v295
    %v520 = vpop.f32.mrb[0].mxu0
    %v521 = vadd.f32 %v97, %v520
    %v522 = vpop.f32.mrb[0].mxu0
    %v523 = vpop.f32.mrb[0].mxu0
    %v524 = vadd.f32 %v97, %v523
    %v525 = vpop.f32.mrb[0].mxu0
    %526 = vmatprep.mubr.bf16.mxu0 0
    %527 = vmatmul.mubr.bf16.gmra.mrb[0].mxu0 %v298
    %v528 = vpop.f32.mrb[0].mxu0
    %v529 = vadd.f32 %v97, %v528
    %v530 = vpop.f32.mrb[0].mxu0
    %v531 = vpop.f32.mrb[0].mxu0
    %v532 = vadd.f32 %v97, %v531
    %v533 = vpop.f32.mrb[0].mxu0
    %534 = vmatprep.mubr.bf16.mxu0 0
    %535 = vmatmul.mubr.bf16.gmra.mrb[0].mxu0 %v301
    %v536 = vpop.f32.mrb[0].mxu0
    %v537 = vadd.f32 %v97, %v536
    %v538 = vpop.f32.mrb[0].mxu0
    %v539 = vpop.f32.mrb[0].mxu0
    %v540 = vpop.f32.mrb[0].mxu0
    %541 = vdwg.mxu0
    %v542 = vmax.f32 %v345, 0.0
    %v543 = vmax.f32 %v348, 0.0
    %v544 = vmax.f32 %v353, 0.0
    %v545 = vmax.f32 %v356, 0.0
    %v546 = vmax.f32 %v361, 0.0
    %v547 = vmax.f32 %v364, 0.0
    %v548 = vmax.f32 %v369, 0.0
    %v549 = vmax.f32 %v372, 0.0
    %v550 = vmax.f32 %v377, 0.0
    %v551 = vmax.f32 %v380, 0.0
    %v552 = vmax.f32 %v385, 0.0
    %v553 = vmax.f32 %v388, 0.0
    %v554 = vmax.f32 %v393, 0.0
    %v555 = vmax.f32 %v396, 0.0
    %v556 = vmax.f32 %v401, 0.0
    %v557 = vmax.f32 %v404, 0.0
    %v558 = vmax.f32 %v409, 0.0
    %v559 = vmax.f32 %v412, 0.0
    %v560 = vmax.f32 %v417, 0.0
    %v561 = vmax.f32 %v420, 0.0
    %v562 = vmax.f32 %v425, 0.0
    %v563 = vmax.f32 %v428, 0.0
    %v564 = vmax.f32 %v433, 0.0
    %v565 = vmax.f32 %v436, 0.0
    %v566 = vmax.f32 %v441, 0.0
    %v567 = vmax.f32 %v444, 0.0
    %v568 = vmax.f32 %v449, 0.0
    %v569 = vmax.f32 %v452, 0.0
    %v570 = vmax.f32 %v457, 0.0
    %v571 = vmax.f32 %v460, 0.0
    %v572 = vmax.f32 %v465, 0.0
    %v573 = vmax.f32 %v468, 0.0
    %v574 = vmax.f32 %v473, 0.0
    %v575 = vmax.f32 %v476, 0.0
    %v576 = vmax.f32 %v481, 0.0
    %v577 = vmax.f32 %v484, 0.0
    %v578 = vmax.f32 %v489, 0.0
    %v579 = vmax.f32 %v492, 0.0
    %v580 = vmax.f32 %v497, 0.0
    %v581 = vmax.f32 %v500, 0.0
    %v582 = vmax.f32 %v505, 0.0
    %v583 = vmax.f32 %v508, 0.0
    %v584 = vmax.f32 %v513, 0.0
    %v585 = vmax.f32 %v516, 0.0
    %v586 = vmax.f32 %v521, 0.0
    %v587 = vmax.f32 %v524, 0.0
    %v588 = vmax.f32 %v529, 0.0
    %v589 = vmax.f32 %v532, 0.0
    %v590 = vmax.f32 %v537, 0.0
    %v591 = vpack.c.bf16 %v543, %v542
    %v592 = vpack.c.bf16 %v545, %v544
    %v593 = vpack.c.bf16 %v547, %v546
    %v594 = vpack.c.bf16 %v549, %v548
    %v595 = vpack.c.bf16 %v551, %v550
    %v596 = vpack.c.bf16 %v553, %v552
    %v597 = vpack.c.bf16 %v555, %v554
    %v598 = vpack.c.bf16 %v557, %v556
    %v599 = vpack.c.bf16 %v559, %v558
    %v600 = vpack.c.bf16 %v561, %v560
    %v601 = vpack.c.bf16 %v563, %v562
    %v602 = vpack.c.bf16 %v565, %v564
    %v603 = vpack.c.bf16 %v567, %v566
    %v604 = vpack.c.bf16 %v569, %v568
    %v605 = vpack.c.bf16 %v571, %v570
    %v606 = vpack.c.bf16 %v573, %v572
    %v607 = vpack.c.bf16 %v575, %v574
    %v608 = vpack.c.bf16 %v577, %v576
    %v609 = vpack.c.bf16 %v579, %v578
    %v610 = vpack.c.bf16 %v581, %v580
    %v611 = vpack.c.bf16 %v583, %v582
    %v612 = vpack.c.bf16 %v585, %v584
    %v613 = vpack.c.bf16 %v587, %v586
    %v614 = vpack.c.bf16 %v589, %v588
    %v615 = vpack.c.bf16 %v590, %v590
    %v641 = vunpack.c.l.b16 %v591
    %v642 = vunpack.c.h.b16 %v591
    %v643 = vunpack.c.l.b16 %v592
    %v644 = vunpack.c.h.b16 %v592
    %v645 = vunpack.c.l.b16 %v593
    %v646 = vunpack.c.h.b16 %v593
    %v647 = vunpack.c.l.b16 %v594
    %v648 = vunpack.c.h.b16 %v594
    %v649 = vunpack.c.l.b16 %v595
    %v650 = vunpack.c.h.b16 %v595
    %v651 = vunpack.c.l.b16 %v596
    %v652 = vunpack.c.h.b16 %v596
    %v653 = vunpack.c.l.b16 %v597
    %v654 = vunpack.c.h.b16 %v597
    %v655 = vunpack.c.l.b16 %v598
    %v656 = vunpack.c.h.b16 %v598
    %v657 = vunpack.c.l.b16 %v599
    %v658 = vunpack.c.h.b16 %v599
    %v659 = vunpack.c.l.b16 %v600
    %v660 = vunpack.c.h.b16 %v600
    %v661 = vunpack.c.l.b16 %v601
    %v662 = vunpack.c.h.b16 %v601
    %v663 = vunpack.c.l.b16 %v602
    %v664 = vunpack.c.h.b16 %v602
    %v665 = vunpack.c.l.b16 %v603
    %v666 = vunpack.c.h.b16 %v603
    %v667 = vunpack.c.l.b16 %v604
    %v668 = vunpack.c.h.b16 %v604
    %v669 = vunpack.c.l.b16 %v605
    %v670 = vunpack.c.h.b16 %v605
    %v671 = vunpack.c.l.b16 %v606
    %v672 = vunpack.c.h.b16 %v606
    %v673 = vunpack.c.l.b16 %v607
    %v674 = vunpack.c.h.b16 %v607
    %v675 = vunpack.c.l.b16 %v608
    %v676 = vunpack.c.h.b16 %v608
    %v677 = vunpack.c.l.b16 %v609
    %v678 = vunpack.c.h.b16 %v609
    %v679 = vunpack.c.l.b16 %v610
    %v680 = vunpack.c.h.b16 %v610
    %v681 = vunpack.c.l.b16 %v611
    %v682 = vunpack.c.h.b16 %v611
    %v683 = vunpack.c.l.b16 %v612
    %v684 = vunpack.c.h.b16 %v612
    %v685 = vunpack.c.l.b16 %v613
    %v686 = vunpack.c.h.b16 %v613
    %v687 = vunpack.c.l.b16 %v614
    %v688 = vunpack.c.h.b16 %v614
    %v689 = vunpack.c.l.b16 %v615
    %v690 = vpack.c.b16 %v641, %v641
    %v691 = vpack.c.b16 %v642, %v642
    %v692 = vpack.c.b16 %v643, %v643
    %v693 = vpack.c.b16 %v644, %v644
    %v694 = vpack.c.b16 %v645, %v645
    %v695 = vpack.c.b16 %v646, %v646
    %v696 = vpack.c.b16 %v647, %v647
    %v697 = vpack.c.b16 %v648, %v648
    %v698 = vpack.c.b16 %v649, %v649
    %v699 = vpack.c.b16 %v650, %v650
    %v700 = vpack.c.b16 %v651, %v651
    %v701 = vpack.c.b16 %v652, %v652
    %v702 = vpack.c.b16 %v653, %v653
    %v703 = vpack.c.b16 %v654, %v654
    %v704 = vpack.c.b16 %v655, %v655
    %v705 = vpack.c.b16 %v656, %v656
    %v706 = vpack.c.b16 %v657, %v657
    %v707 = vpack.c.b16 %v658, %v658
    %v708 = vpack.c.b16 %v659, %v659
    %v709 = vpack.c.b16 %v660, %v660
    %v710 = vpack.c.b16 %v661, %v661
    %v711 = vpack.c.b16 %v662, %v662
    %v712 = vpack.c.b16 %v663, %v663
    %v713 = vpack.c.b16 %v664, %v664
    %v714 = vpack.c.b16 %v665, %v665
    %v715 = vpack.c.b16 %v666, %v666
    %v716 = vpack.c.b16 %v667, %v667
    %v717 = vpack.c.b16 %v668, %v668
    %v718 = vpack.c.b16 %v669, %v669
    %v719 = vpack.c.b16 %v670, %v670
    %v720 = vpack.c.b16 %v671, %v671
    %v721 = vpack.c.b16 %v672, %v672
    %v722 = vpack.c.b16 %v673, %v673
    %v723 = vpack.c.b16 %v674, %v674
    %v724 = vpack.c.b16 %v675, %v675
    %v725 = vpack.c.b16 %v676, %v676
    %v726 = vpack.c.b16 %v677, %v677
    %v727 = vpack.c.b16 %v678, %v678
    %v728 = vpack.c.b16 %v679, %v679
    %v729 = vpack.c.b16 %v680, %v680
    %v730 = vpack.c.b16 %v681, %v681
    %v731 = vpack.c.b16 %v682, %v682
    %v732 = vpack.c.b16 %v683, %v683
    %v733 = vpack.c.b16 %v684, %v684
    %v734 = vpack.c.b16 %v685, %v685
    %v735 = vpack.c.b16 %v686, %v686
    %v736 = vpack.c.b16 %v687, %v687
    %v737 = vpack.c.b16 %v688, %v688
    %v738 = vpack.c.b16 %v689, %v689
    %788 = vst [vmem:[%s3] sm:$0xf] %v690
    %789 = vst [vmem:[%s3 + $0x4] sm:$0xf] %v691
    %790 = vst [vmem:[%s3 + $0x8] sm:$0xf] %v692
    %791 = vst [vmem:[%s3 + $0xc] sm:$0xf] %v693
    %792 = vst [vmem:[%s3 + $0x10] sm:$0xf] %v694
    %793 = vst [vmem:[%s3 + $0x14] sm:$0xf] %v695
    %794 = vst [vmem:[%s3 + $0x18] sm:$0xf] %v696
    %795 = vst [vmem:[%s3 + $0x1c] sm:$0xf] %v697
    %796 = vst [vmem:[%s3 + $0x20] sm:$0xf] %v698
    %797 = vst [vmem:[%s3 + $0x24] sm:$0xf] %v699
    %798 = vst [vmem:[%s3 + $0x28] sm:$0xf] %v700
    %799 = vst [vmem:[%s3 + $0x2c] sm:$0xf] %v701
    %800 = vst [vmem:[%s3 + $0x30] sm:$0xf] %v702
    %801 = vst [vmem:[%s3 + $0x34] sm:$0xf] %v703
    %802 = vst [vmem:[%s3 + $0x38] sm:$0xf] %v704
    %803 = vst [vmem:[%s3 + $0x3c] sm:$0xf] %v705
    %804 = vst [vmem:[%s3 + $0x40] sm:$0xf] %v706
    %805 = vst [vmem:[%s3 + $0x44] sm:$0xf] %v707
    %806 = vst [vmem:[%s3 + $0x48] sm:$0xf] %v708
    %807 = vst [vmem:[%s3 + $0x4c] sm:$0xf] %v709
    %808 = vst [vmem:[%s3 + $0x50] sm:$0xf] %v710
    %809 = vst [vmem:[%s3 + $0x54] sm:$0xf] %v711
    %810 = vst [vmem:[%s3 + $0x58] sm:$0xf] %v712
    %811 = vst [vmem:[%s3 + $0x5c] sm:$0xf] %v713
    %812 = vst [vmem:[%s3 + $0x60] sm:$0xf] %v714
    %813 = vst [vmem:[%s3 + $0x64] sm:$0xf] %v715
    %814 = vst [vmem:[%s3 + $0x68] sm:$0xf] %v716
    %815 = vst [vmem:[%s3 + $0x6c] sm:$0xf] %v717
    %816 = vst [vmem:[%s3 + $0x70] sm:$0xf] %v718
    %817 = vst [vmem:[%s3 + $0x74] sm:$0xf] %v719
    %818 = vst [vmem:[%s3 + $0x78] sm:$0xf] %v720
    %819 = vst [vmem:[%s3 + $0x7c] sm:$0xf] %v721
    %820 = vst [vmem:[%s3 + $0x80] sm:$0xf] %v722
    %821 = vst [vmem:[%s3 + $0x84] sm:$0xf] %v723
    %822 = vst [vmem:[%s3 + $0x88] sm:$0xf] %v724
    %823 = vst [vmem:[%s3 + $0x8c] sm:$0xf] %v725
    %824 = vst [vmem:[%s3 + $0x90] sm:$0xf] %v726
    %825 = vst [vmem:[%s3 + $0x94] sm:$0xf] %v727
    %826 = vst [vmem:[%s3 + $0x98] sm:$0xf] %v728
    %827 = vst [vmem:[%s3 + $0x9c] sm:$0xf] %v729
    %828 = vst [vmem:[%s3 + $0xa0] sm:$0xf] %v730
    %829 = vst [vmem:[%s3 + $0xa4] sm:$0xf] %v731
    %830 = vst [vmem:[%s3 + $0xa8] sm:$0xf] %v732
    %831 = vst [vmem:[%s3 + $0xac] sm:$0xf] %v733
    %832 = vst [vmem:[%s3 + $0xb0] sm:$0xf] %v734
    %833 = vst [vmem:[%s3 + $0xb4] sm:$0xf] %v735
    %834 = vst [vmem:[%s3 + $0xb8] sm:$0xf] %v736
    %835 = vst [vmem:[%s3 + $0xbc] sm:$0xf] %v737
    %836 = vst [vmem:[%s3 + $0xc0] sm:$0xf] %v738
    // Predicated region
    $region22: #{model_forward.2} parent=1 // pred_check
      _
    $region23: #{model_forward.2} parent=1 // pred_check_branch
      %838 = sbr.rel (0) target = $region25
    $region24: #{model_forward.2} parent=1 // pred_region
      _
    $region25: #{model_forward.2} parent=1 // pred_fallthru
      _
    // Predicated region
    $region26: #{model_forward.2} parent=1 // pred_check
      _
    $region27: #{model_forward.2} parent=1 // pred_check_branch
      %840 = sbr.rel (0) target = $region29
    $region28: #{model_forward.2} parent=1 // pred_region
      _
    $region29: #{model_forward.2} parent=1 // pred_fallthru
      _
    %841 = vsyncpa [#allocation3], 1
    %842 = vsyncpa [#allocation5], 1

// kernel: model_forward.3
$region0: #{model_forward.3}
  #allocation0 [shape = 'u32[]', space=smem, size = 0x4, offset = 0x4, fixed_abs, tag = 'smem constant byte address 0x4 - core index']
  #allocation1 [shape = 'u32[144,128]{1,0:T(1,128)}', space=vmem, size = 0x12000, scoped, tag = 'internal scratch']
  #allocation2 [shape = 'f32[2,512]{1,0:T(2,128)}', space=vmem, size = 0x1000, scoped, tag = 'scratch operand']
  %s0 = inlined_call_operand.vmem [shape: bf16[49,2,1152], index: 0, kind: input, shape index: {}]
  %s1 = inlined_call_operand.hbm [shape: bf16[1152,128], index: 1, kind: input, shape index: {}]
  %s2 = inlined_call_operand.hbm [shape: f32[1,128], index: 2, kind: input, shape index: {}]
  %s3 = inlined_call_operand.hbm [shape: s8[49,128,512], index: 3, kind: input, shape index: {}]
  %s4 = inlined_call_operand.hbm [shape: f32[1,512], index: 4, kind: input, shape index: {}]
  %s5 = inlined_call_operand.hbm [shape: f32[1,512], index: 5, kind: input, shape index: {}]
  %s6 = inlined_call_operand.hbm [shape: bf16[512,128], index: 6, kind: input, shape index: {}]
  %s7 = inlined_call_operand.hbm [shape: f32[1,128], index: 7, kind: input, shape index: {}]
  %s8 = inlined_call_operand.hbm [shape: f32[2,128], index: 8, kind: output, shape index: {}]
  %s9 = sld [smem:[#allocation0]]
  $region101: #{model_forward.3} parent=0
    _
  %s11 = ssub.s32 1, %s9
  %s12 = scalar_select 0, %s11, %s9
  $region1: #{model_forward.3} parent=0
    #allocation3 [shape = 'u8[294912]{0}', space=vmem, size = 0x48000, scoped, tag = 'input window, operand 1, single buffered']
    #allocation4 [shape = 's32[2]{0}', space=sflag, size = 0x8, scoped, tag = 'scoped memory for model_forward.3']
    #allocation5 [shape = 's32[2]{0}', space=sflag, size = 0x8, scoped, tag = 'scoped memory for model_forward.3']
    #allocation6 [shape = 'u8[512]{0}', space=vmem, size = 0x400, scoped, tag = 'input window, operand 2, single buffered']
    #allocation7 [shape = 's32[1]{0}', space=sflag, size = 0x4, scoped, tag = 'scoped memory for model_forward.3']
    #allocation8 [shape = 'u8[917504]{0}', space=vmem, size = 0xe0000, scoped, tag = 'input window, operand 3']
    #allocation9 [shape = 'u8[2048]{0}', space=vmem, size = 0x800, scoped, tag = 'input window, operand 4, single buffered']
    #allocation10 [shape = 'u8[2048]{0}', space=vmem, size = 0x800, scoped, tag = 'input window, operand 5, single buffered']
    #allocation11 [shape = 's32[1]{0}', space=sflag, size = 0x4, scoped, tag = 'scoped memory for model_forward.3']
    #allocation12 [shape = 'u8[131072]{0}', space=vmem, size = 0x20000, scoped, tag = 'input window, operand 6, single buffered']
    #allocation13 [shape = 'u8[512]{0}', space=vmem, size = 0x400, scoped, tag = 'input window, operand 7, single buffered']
    #allocation14 [shape = 's32[1]{0}', space=sflag, size = 0x4, scoped, tag = 'scoped memory for model_forward.3']
    #allocation15 [shape = 'u8[1024]{0}', space=vmem, size = 0x400, scoped, tag = 'output window, operand 0, single buffered']
    %13 = vsyncpa [#allocation4], 0
    %14 = vsyncpa [#allocation7], 0
    %15 = vsyncpa [#allocation11], 0
    %16 = vsyncpa [#allocation14], 0
    %17 = vsyncpa [#allocation5], 0
    loop: start=0, step=1, limit=9
    $region2: #{model_forward.3} parent=1 // loop_pre_header
      _
    $region3: #{model_forward.3} parent=1 // loop_header
      %s19 = sphi 0, %s23
      %p20 = scmp.ge.s32.totalorder %s19, 9
      %s26 = sphi 0, %s38
      %s27 = sphi 0, %s34
      %s28 = sphi 0, %s26
      %s29 = sphi 0, %s27
      %s30 = sphi 0, %s28
      %s31 = sphi 0, %s29
      %s43 = sphi 0, %s45
      %s46 = sphi 0, %s43
      %s47 = sphi 0, %s46
      %s63 = sphi 0, %s47
      %s67 = sphi 0, %s67
      %s69 = sphi 0, %s67
      %s70 = sphi 0, %s69
      %s84 = sphi 0, %s70
      %s88 = sphi 0, %s88
      %s90 = sphi 0, %s88
      %s91 = sphi 0, %s90
      %s105 = sphi 0, %s91
      %s111 = sphi 0, %s113
      %s114 = sphi 0, %s111
      %s115 = sphi 0, %s114
      %s131 = sphi 0, %s115
      %s135 = sphi 0, %s135
      %s137 = sphi 0, %s135
      %s138 = sphi 0, %s137
      %s152 = sphi 0, %s138
      %s156 = sphi 0, %s156
      %s158 = sphi 0, %s156
      %s159 = sphi 0, %s158
      %s173 = sphi 0, %s159
      %s177 = sphi 0, %s177
      %s179 = sphi 0, %s177
      %s180 = sphi 0, %s179
      %s194 = sphi 0, %s180
      %s198 = sphi 0, %s198
      %s200 = sphi 0, %s198
      %s201 = sphi 0, %s200
      %s215 = sphi 0, %s201
      %s221 = sphi 0, %s223
      %s224 = sphi 0, %s221
      %s225 = sphi 0, %s224
      %s241 = sphi 0, %s225
    $region4: #{model_forward.3} parent=1 // loop_header_branch
      %22 = sbr.rel (%p20) target = $region8
    $region5: #{model_forward.3} parent=1 // loop_body
      %s24 = ssub.s32 %s19, 1
      %s25 = ssub.s32 %s19, 2
      %s32 = sadd.s32 1, %s27
      %p33 = scmp.ge.s32.totalorder %s32, 7
      %s34 = scalar_select %p33, 0, %s32
      %s35 = sadd.s32 1, %s26
      %s36 = scalar_select %p33, %s35, %s26
      %p37 = scmp.ge.s32.totalorder %s36, 1
      %s38 = scalar_select %p37, 0, %s36
      %s39 = ssub.s32 %s27, %s34
      %s40 = ssub.s32 %s26, %s38
      %s41 = sor.u32 %s39, %s40
      %p42 = scmp.eq.s32.totalorder %s41, 0
      %s44 = sadd.s32 %s43, 1
      %s45 = scalar_select %p42, %s43, %s44
      %p48 = pneg %p42
      %p49 = scmp.eq.s32.totalorder %s19, 6
      %p50 = por %p48, %p49
      %p51 = scmp.ne.s32.totalorder %s43, %s46
      %p52 = scmp.eq.s32.totalorder %s19, 0
      %p53 = por %p51, %p52
      %p54 = scmp.ne.s32.totalorder %s43, %s46
      %p55 = scmp.eq.s32.totalorder %s24, 6
      %p56 = por %p54, %p55
      %p57 = scmp.ne.s32.totalorder %s46, %s47
      %p58 = scmp.eq.s32.totalorder %s24, 0
      %p59 = por %p57, %p58
      %p60 = scmp.ne.s32.totalorder %s46, %s47
      %p61 = scmp.eq.s32.totalorder %s25, 6
      %p62 = por %p60, %p61
      %p64 = scmp.ne.s32.totalorder %s47, %s63
      %p65 = scmp.eq.s32.totalorder %s25, 0
      %p66 = por %p64, %p65
      %s68 = sadd.s32 %s67, 1
      %p71 = scmp.eq.s32.totalorder %s19, 6
      %p72 = scmp.ne.s32.totalorder %s67, %s69
      %p73 = scmp.eq.s32.totalorder %s19, 0
      %p74 = por %p72, %p73
      %p75 = scmp.ne.s32.totalorder %s67, %s69
      %p76 = scmp.eq.s32.totalorder %s24, 6
      %p77 = por %p75, %p76
      %p78 = scmp.ne.s32.totalorder %s69, %s70
      %p79 = scmp.eq.s32.totalorder %s24, 0
      %p80 = por %p78, %p79
      %p81 = scmp.ne.s32.totalorder %s69, %s70
      %p82 = scmp.eq.s32.totalorder %s25, 6
      %p83 = por %p81, %p82
      %p85 = scmp.ne.s32.totalorder %s70, %s84
      %p86 = scmp.eq.s32.totalorder %s25, 0
      %p87 = por %p85, %p86
      %s89 = sadd.s32 %s88, 1
      %p92 = scmp.eq.s32.totalorder %s19, 6
      %p93 = scmp.ne.s32.totalorder %s88, %s90
      %p94 = scmp.eq.s32.totalorder %s19, 0
      %p95 = por %p93, %p94
      %p96 = scmp.ne.s32.totalorder %s88, %s90
      %p97 = scmp.eq.s32.totalorder %s24, 6
      %p98 = por %p96, %p97
      %p99 = scmp.ne.s32.totalorder %s90, %s91
      %p100 = scmp.eq.s32.totalorder %s24, 0
      %p101 = por %p99, %p100
      %p102 = scmp.ne.s32.totalorder %s90, %s91
      %p103 = scmp.eq.s32.totalorder %s25, 6
      %p104 = por %p102, %p103
      %p106 = scmp.ne.s32.totalorder %s91, %s105
      %p107 = scmp.eq.s32.totalorder %s25, 0
      %p108 = por %p106, %p107
      %s109 = ssub.s32 %s27, %s34
      %p110 = scmp.eq.s32.totalorder %s109, 0
      %s112 = sadd.s32 %s111, 1
      %s113 = scalar_select %p110, %s111, %s112
      %p116 = pneg %p110
      %p117 = scmp.eq.s32.totalorder %s19, 6
      %p118 = por %p116, %p117
      %p119 = scmp.ne.s32.totalorder %s111, %s114
      %p120 = scmp.eq.s32.totalorder %s19, 0
      %p121 = por %p119, %p120
      %p122 = scmp.ne.s32.totalorder %s111, %s114
      %p123 = scmp.eq.s32.totalorder %s24, 6
      %p124 = por %p122, %p123
      %p125 = scmp.ne.s32.totalorder %s114, %s115
      %p126 = scmp.eq.s32.totalorder %s24, 0
      %p127 = por %p125, %p126
      %p128 = scmp.ne.s32.totalorder %s114, %s115
      %p129 = scmp.eq.s32.totalorder %s25, 6
      %p130 = por %p128, %p129
      %p132 = scmp.ne.s32.totalorder %s115, %s131
      %p133 = scmp.eq.s32.totalorder %s25, 0
      %p134 = por %p132, %p133
      %s136 = sadd.s32 %s135, 1
      %p139 = scmp.eq.s32.totalorder %s19, 6
      %p140 = scmp.ne.s32.totalorder %s135, %s137
      %p141 = scmp.eq.s32.totalorder %s19, 0
      %p142 = por %p140, %p141
      %p143 = scmp.ne.s32.totalorder %s135, %s137
      %p144 = scmp.eq.s32.totalorder %s24, 6
      %p145 = por %p143, %p144
      %p146 = scmp.ne.s32.totalorder %s137, %s138
      %p147 = scmp.eq.s32.totalorder %s24, 0
      %p148 = por %p146, %p147
      %p149 = scmp.ne.s32.totalorder %s137, %s138
      %p150 = scmp.eq.s32.totalorder %s25, 6
      %p151 = por %p149, %p150
      %p153 = scmp.ne.s32.totalorder %s138, %s152
      %p154 = scmp.eq.s32.totalorder %s25, 0
      %p155 = por %p153, %p154
      %s157 = sadd.s32 %s156, 1
      %p160 = scmp.eq.s32.totalorder %s19, 6
      %p161 = scmp.ne.s32.totalorder %s156, %s158
      %p162 = scmp.eq.s32.totalorder %s19, 0
      %p163 = por %p161, %p162
      %p164 = scmp.ne.s32.totalorder %s156, %s158
      %p165 = scmp.eq.s32.totalorder %s24, 6
      %p166 = por %p164, %p165
      %p167 = scmp.ne.s32.totalorder %s158, %s159
      %p168 = scmp.eq.s32.totalorder %s24, 0
      %p169 = por %p167, %p168
      %p170 = scmp.ne.s32.totalorder %s158, %s159
      %p171 = scmp.eq.s32.totalorder %s25, 6
      %p172 = por %p170, %p171
      %p174 = scmp.ne.s32.totalorder %s159, %s173
      %p175 = scmp.eq.s32.totalorder %s25, 0
      %p176 = por %p174, %p175
      %s178 = sadd.s32 %s177, 1
      %p181 = scmp.eq.s32.totalorder %s19, 6
      %p182 = scmp.ne.s32.totalorder %s177, %s179
      %p183 = scmp.eq.s32.totalorder %s19, 0
      %p184 = por %p182, %p183
      %p185 = scmp.ne.s32.totalorder %s177, %s179
      %p186 = scmp.eq.s32.totalorder %s24, 6
      %p187 = por %p185, %p186
      %p188 = scmp.ne.s32.totalorder %s179, %s180
      %p189 = scmp.eq.s32.totalorder %s24, 0
      %p190 = por %p188, %p189
      %p191 = scmp.ne.s32.totalorder %s179, %s180
      %p192 = scmp.eq.s32.totalorder %s25, 6
      %p193 = por %p191, %p192
      %p195 = scmp.ne.s32.totalorder %s180, %s194
      %p196 = scmp.eq.s32.totalorder %s25, 0
      %p197 = por %p195, %p196
      %s199 = sadd.s32 %s198, 1
      %p202 = scmp.eq.s32.totalorder %s19, 6
      %p203 = scmp.ne.s32.totalorder %s198, %s200
      %p204 = scmp.eq.s32.totalorder %s19, 0
      %p205 = por %p203, %p204
      %p206 = scmp.ne.s32.totalorder %s198, %s200
      %p207 = scmp.eq.s32.totalorder %s24, 6
      %p208 = por %p206, %p207
      %p209 = scmp.ne.s32.totalorder %s200, %s201
      %p210 = scmp.eq.s32.totalorder %s24, 0
      %p211 = por %p209, %p210
      %p212 = scmp.ne.s32.totalorder %s200, %s201
      %p213 = scmp.eq.s32.totalorder %s25, 6
      %p214 = por %p212, %p213
      %p216 = scmp.ne.s32.totalorder %s201, %s215
      %p217 = scmp.eq.s32.totalorder %s25, 0
      %p218 = por %p216, %p217
      %s219 = ssub.s32 %s26, %s38
      %p220 = scmp.eq.s32.totalorder %s219, 0
      %s222 = sadd.s32 %s221, 1
      %s223 = scalar_select %p220, %s221, %s222
      %p226 = pneg %p220
      %p227 = scmp.eq.s32.totalorder %s19, 6
      %p228 = por %p226, %p227
      %p229 = scmp.ne.s32.totalorder %s221, %s224
      %p230 = scmp.eq.s32.totalorder %s19, 0
      %p231 = por %p229, %p230
      %p232 = scmp.ne.s32.totalorder %s221, %s224
      %p233 = scmp.eq.s32.totalorder %s24, 6
      %p234 = por %p232, %p233
      %p235 = scmp.ne.s32.totalorder %s224, %s225
      %p236 = scmp.eq.s32.totalorder %s24, 0
      %p237 = por %p235, %p236
      %p238 = scmp.ne.s32.totalorder %s224, %s225
      %p239 = scmp.eq.s32.totalorder %s25, 6
      %p240 = por %p238, %p239
      %p242 = scmp.ne.s32.totalorder %s225, %s241
      %p243 = scmp.eq.s32.totalorder %s25, 0
      %p244 = por %p242, %p243
      %p245 = scmp.le.s32.totalorder 1, %s19
      %p246 = scmp.lt.s32.totalorder %s19, 8
      %p247 = pnand %p245, %p246
      %p248 = pneg %p247
      // Predicated region
      $region9: #{model_forward.3} parent=5 // pred_check
        _
      $region10: #{model_forward.3} parent=5 // pred_check_branch
        %250 = sbr.rel (%p247) target = $region12
      $region11: #{model_forward.3} parent=5 // pred_region
        %s251 = ssub.s32 %s19, 1
        // Predicated region
        $region13: #{model_forward.3} parent=11 // pred_check
          %p252 = pneg %p80
        $region14: #{model_forward.3} parent=11 // pred_check_branch
          %254 = sbr.rel (%p252) target = $region16
        $region15: #{model_forward.3} parent=11 // pred_region
          %s256 = ssub.s32 9216, 9216
          %257 = vsyncadd [#allocation4], %s256
          %s258 = sshll.u32 [#allocation3], 4
          %s259 = int_to_ptr.vmem [resolvable:$true] %s258
          %264 = dma.hbm_to_vmem [thread:$0]  %s1, 9216, %s259, [#allocation4], 64, 64, 4
        $region16: #{model_forward.3} parent=11 // pred_fallthru
          _
        // Predicated region
        $region17: #{model_forward.3} parent=11 // pred_check
          %p265 = pneg %p101
        $region18: #{model_forward.3} parent=11 // pred_check_branch
          %267 = sbr.rel (%p265) target = $region20
        $region19: #{model_forward.3} parent=11 // pred_region
          %s269 = ssub.s32 16, 16
          %270 = vsyncadd [#allocation7], %s269
          %s272 = sshll.u32 [#allocation6], 4
          %s273 = int_to_ptr.vmem [resolvable:$true] %s272
          %275 = dma.hbm_to_vmem [thread:$0]  %s2, 16, %s273, [#allocation7]
        $region20: #{model_forward.3} parent=11 // pred_fallthru
          _
        // Predicated region
        $region21: #{model_forward.3} parent=11 // pred_check
          %p276 = pneg %p148
        $region22: #{model_forward.3} parent=11 // pred_check_branch
          %278 = sbr.rel (%p276) target = $region24
        $region23: #{model_forward.3} parent=11 // pred_region
          %s280 = ssub.s32 64, 64
          %281 = vsyncadd [#allocation7], %s280
          %s283 = sshll.u32 [#allocation9], 4
          %s284 = int_to_ptr.vmem [resolvable:$true] %s283
          %286 = dma.hbm_to_vmem [thread:$0]  %s4, 64, %s284, [#allocation7]
        $region24: #{model_forward.3} parent=11 // pred_fallthru
          _
        // Predicated region
        $region25: #{model_forward.3} parent=11 // pred_check
          %p287 = pneg %p169
        $region26: #{model_forward.3} parent=11 // pred_check_branch
          %289 = sbr.rel (%p287) target = $region28
        $region27: #{model_forward.3} parent=11 // pred_region
          %s291 = ssub.s32 64, 64
          %292 = vsyncadd [#allocation11], %s291
          %s294 = sshll.u32 [#allocation10], 4
          %s295 = int_to_ptr.vmem [resolvable:$true] %s294
          %297 = dma.hbm_to_vmem [thread:$0]  %s5, 64, %s295, [#allocation11]
        $region28: #{model_forward.3} parent=11 // pred_fallthru
          _
        // Predicated region
        $region29: #{model_forward.3} parent=11 // pred_check
          %p298 = pneg %p190
        $region30: #{model_forward.3} parent=11 // pred_check_branch
          %300 = sbr.rel (%p298) target = $region32
        $region31: #{model_forward.3} parent=11 // pred_region
          %s302 = ssub.s32 4096, 4096
          %303 = vsyncadd [#allocation11], %s302
          %s304 = sshll.u32 [#allocation12], 4
          %s305 = int_to_ptr.vmem [resolvable:$true] %s304
          %310 = dma.hbm_to_vmem [thread:$0]  %s6, 4096, %s305, [#allocation11], 64, 64, 4
        $region32: #{model_forward.3} parent=11 // pred_fallthru
          _
        // Predicated region
        $region33: #{model_forward.3} parent=11 // pred_check
          %p311 = pneg %p211
        $region34: #{model_forward.3} parent=11 // pred_check_branch
          %313 = sbr.rel (%p311) target = $region36
        $region35: #{model_forward.3} parent=11 // pred_region
          %s315 = ssub.s32 16, 16
          %316 = vsyncadd [#allocation14], %s315
          %s318 = sshll.u32 [#allocation13], 4
          %s319 = int_to_ptr.vmem [resolvable:$true] %s318
          %321 = dma.hbm_to_vmem [thread:$0]  %s7, 16, %s319, [#allocation14]
        $region36: #{model_forward.3} parent=11 // pred_fallthru
          _
      $region12: #{model_forward.3} parent=5 // pred_fallthru
        _
      %p322 = scmp.lt.s32.totalorder %s19, 7
      // Predicated region
      $region37: #{model_forward.3} parent=5 // pred_check
        %p323 = pneg %p322
      $region38: #{model_forward.3} parent=5 // pred_check_branch
        %325 = sbr.rel (%p323) target = $region40
      $region39: #{model_forward.3} parent=5 // pred_region
        // Predicated region
        $region41: #{model_forward.3} parent=39 // pred_check
          %p326 = pneg %p53
        $region42: #{model_forward.3} parent=39 // pred_check_branch
          %328 = sbr.rel (%p326) target = $region44
        $region43: #{model_forward.3} parent=39 // pred_region
          %s329 = smul.u32 7, %s27
          %p330 = scmp.lt.s32.totalorder %s329, 48
          %s331 = scalar_select %p330, %s329, 48
          %p332 = scmp.lt.s32.totalorder %s26, 0
          %s333 = scalar_select %p332, %s26, 0
          %s334 = smul.addr %s333, 9
          %s335 = smul.addr %s331, 9
          %s336 = sadd.s32 %s334, %s335
          %s337 = scalar_lea.vmem %s0, %s336
          %s338 = smul.u32 7, %s27
        $region44: #{model_forward.3} parent=39 // pred_fallthru
          _
        // Predicated region
        $region45: #{model_forward.3} parent=39 // pred_check
          %p339 = pneg %p121
        $region46: #{model_forward.3} parent=39 // pred_check_branch
          %341 = sbr.rel (%p339) target = $region48
        $region47: #{model_forward.3} parent=39 // pred_region
          %s342 = sand.u32 %s19, 1
          %s343 = scalar_lea.sflag [#allocation4], %s342
          %s344 = sand.u32 %s111, 1
          %s345 = smul.addr %s344, 896
          %s346 = scalar_lea.vmem [#allocation8], %s345
          %s347 = smul.u32 7, %s27
          %s349 = ssub.s32 14336, 14336
          %350 = vsyncadd %s343, %s349
          %s351 = smul.addr %s347, 16
          %s352 = smul.addr %s351, 128
          %s353 = scalar_lea.hbm %s3, %s352
          %s354 = sshll.u32 %s346, 4
          %s355 = int_to_ptr.vmem [resolvable:$true] %s354
          %360 = dma.hbm_to_vmem [thread:$0]  %s353, 14336, %s355, %s343, 512, 512, 32
        $region48: #{model_forward.3} parent=39 // pred_fallthru
          _
      $region40: #{model_forward.3} parent=5 // pred_fallthru
        _
      %p361 = scmp.le.s32.totalorder 1, %s19
      %p362 = scmp.lt.s32.totalorder %s19, 8
      %p363 = pnand %p361, %p362
      %p364 = pneg %p363
      // Predicated region
      $region49: #{model_forward.3} parent=5 // pred_check
        _
      $region50: #{model_forward.3} parent=5 // pred_check_branch
        %366 = sbr.rel (%p363) target = $region52
      $region51: #{model_forward.3} parent=5 // pred_region
        %s367 = ssub.s32 %s19, 1
        // Predicated region
        $region53: #{model_forward.3} parent=51 // pred_check
          %p368 = pneg %p80
        $region54: #{model_forward.3} parent=51 // pred_check_branch
          %370 = sbr.rel (%p368) target = $region56
        $region55: #{model_forward.3} parent=51 // pred_region
          %371 = dma.done [#allocation4], 9216
        $region56: #{model_forward.3} parent=51 // pred_fallthru
          _
        // Predicated region
        $region57: #{model_forward.3} parent=51 // pred_check
          %p372 = pneg %p101
        $region58: #{model_forward.3} parent=51 // pred_check_branch
          %374 = sbr.rel (%p372) target = $region60
        $region59: #{model_forward.3} parent=51 // pred_region
          %375 = dma.done [#allocation7], 16
        $region60: #{model_forward.3} parent=51 // pred_fallthru
          _
        %s376 = sand.u32 %s24, 1
        %s377 = scalar_lea.sflag [#allocation4], %s376
        %s378 = sand.u32 %s114, 1
        %s379 = smul.addr %s378, 896
        %s380 = scalar_lea.vmem [#allocation8], %s379
        // Predicated region
        $region61: #{model_forward.3} parent=51 // pred_check
          %p381 = pneg %p127
        $region62: #{model_forward.3} parent=51 // pred_check_branch
          %383 = sbr.rel (%p381) target = $region64
        $region63: #{model_forward.3} parent=51 // pred_region
          %384 = dma.done %s377, 14336
        $region64: #{model_forward.3} parent=51 // pred_fallthru
          _
        // Predicated region
        $region65: #{model_forward.3} parent=51 // pred_check
          %p385 = pneg %p148
        $region66: #{model_forward.3} parent=51 // pred_check_branch
          %387 = sbr.rel (%p385) target = $region68
        $region67: #{model_forward.3} parent=51 // pred_region
          %388 = dma.done [#allocation7], 64
        $region68: #{model_forward.3} parent=51 // pred_fallthru
          _
        // Predicated region
        $region69: #{model_forward.3} parent=51 // pred_check
          %p389 = pneg %p169
        $region70: #{model_forward.3} parent=51 // pred_check_branch
          %391 = sbr.rel (%p389) target = $region72
        $region71: #{model_forward.3} parent=51 // pred_region
          %392 = dma.done [#allocation11], 64
        $region72: #{model_forward.3} parent=51 // pred_fallthru
          _
        // Predicated region
        $region73: #{model_forward.3} parent=51 // pred_check
          %p393 = pneg %p190
        $region74: #{model_forward.3} parent=51 // pred_check_branch
          %395 = sbr.rel (%p393) target = $region76
        $region75: #{model_forward.3} parent=51 // pred_region
          %396 = dma.done [#allocation11], 4096
        $region76: #{model_forward.3} parent=51 // pred_fallthru
          _
        // Predicated region
        $region77: #{model_forward.3} parent=51 // pred_check
          %p397 = pneg %p211
        $region78: #{model_forward.3} parent=51 // pred_check_branch
          %399 = sbr.rel (%p397) target = $region80
        $region79: #{model_forward.3} parent=51 // pred_region
          %400 = dma.done [#allocation14], 16
        $region80: #{model_forward.3} parent=51 // pred_fallthru
          _
        %s401 = smul.u32 7, %s29
        %p402 = scmp.lt.s32.totalorder %s401, 48
        %s403 = scalar_select %p402, %s401, 48
        %p404 = scmp.lt.s32.totalorder %s28, 0
        %s405 = scalar_select %p404, %s28, 0
        %s406 = smul.addr %s405, 9
        %s407 = smul.addr %s403, 9
        %s408 = sadd.s32 %s406, %s407
        %s409 = scalar_lea.vmem %s0, %s408
        %p410 = pneg %p59
        %p411 = pneg %p56
        %p412 = pneg %p80
        %p413 = pneg %p77
        %p414 = pneg %p101
        %p415 = pneg %p98
        %s416 = sand.u32 %s24, 1
        %s417 = scalar_lea.sflag [#allocation4], %s416
        %s418 = sand.u32 %s114, 1
        %s419 = smul.addr %s418, 896
        %s420 = scalar_lea.vmem [#allocation8], %s419
        %p421 = pneg %p127
        %p422 = pneg %p124
        %p423 = pneg %p148
        %p424 = pneg %p145
        %p425 = pneg %p169
        %p426 = pneg %p166
        %p427 = pneg %p190
        %p428 = pneg %p187
        %p429 = pneg %p211
        %p430 = pneg %p208
        %p431 = pneg %p237
        %p432 = pneg %p234
        %s433 = smul.u32 7, %s29
        %p434 = scmp.lt.s32.totalorder %s433, 48
        %s435 = scalar_select %p434, %s433, 48
        %p436 = scmp.lt.s32.totalorder %s28, 0
        %s437 = scalar_select %p436, %s28, 0
        %s438 = smul.addr %s437, 9
        %s439 = smul.addr %s435, 9
        %s440 = sadd.s32 %s438, %s439
        %s441 = scalar_lea.vmem %s0, %s440
        %s442 = smul.u32 7, %s29
        %s443 = smul.u32 7, %s29
        %p445 = scmp.eq.s32.totalorder %s29, 0
        // Predicated region
        $region81: #{model_forward.3} parent=51 // pred_check
          %p446 = pneg %p445
        $region82: #{model_forward.3} parent=51 // pred_check_branch
          %448 = sbr.rel (%p446) target = $region84
        $region83: #{model_forward.3} parent=51 // pred_region
          %449 = vst [vmem:[#allocation2] sm:$0xff] 0.0
        $region84: #{model_forward.3} parent=51 // pred_fallthru
          _
        %v450 = vld [vmem:[#allocation3] sm:$0xf]
        %v451 = vld [vmem:[#allocation3 + $0x4] sm:$0xf]
        %v452 = vld [vmem:[#allocation3 + $0x8] sm:$0xf]
        %v453 = vld [vmem:[#allocation3 + $0xc] sm:$0xf]
        %v454 = vld [vmem:[#allocation3 + $0x10] sm:$0xf]
        %v455 = vld [vmem:[#allocation3 + $0x14] sm:$0xf]
        %v456 = vld [vmem:[#allocation3 + $0x18] sm:$0xf]
        %v457 = vld [vmem:[#allocation3 + $0x1c] sm:$0xf]
        %v458 = vld [vmem:[#allocation3 + $0x20] sm:$0xf]
        %v459 = vld [vmem:[#allocation3 + $0x24] sm:$0xf]
        %v460 = vld [vmem:[#allocation3 + $0x28] sm:$0xf]
        %v461 = vld [vmem:[#allocation3 + $0x2c] sm:$0xf]
        %v462 = vld [vmem:[#allocation3 + $0x30] sm:$0xf]
        %v463 = vld [vmem:[#allocation3 + $0x34] sm:$0xf]
        %v464 = vld [vmem:[#allocation3 + $0x38] sm:$0xf]
        %v465 = vld [vmem:[#allocation3 + $0x3c] sm:$0xf]
        %v466 = vld [vmem:[#allocation3 + $0x40] sm:$0xf]
        %v467 = vld [vmem:[#allocation3 + $0x44] sm:$0xf]
        %v468 = vld [vmem:[#allocation3 + $0x48] sm:$0xf]
        %v469 = vld [vmem:[#allocation3 + $0x4c] sm:$0xf]
        %v470 = vld [vmem:[#allocation3 + $0x50] sm:$0xf]
        %v471 = vld [vmem:[#allocation3 + $0x54] sm:$0xf]
        %v472 = vld [vmem:[#allocation3 + $0x58] sm:$0xf]
        %v473 = vld [vmem:[#allocation3 + $0x5c] sm:$0xf]
        %v474 = vld [vmem:[#allocation3 + $0x60] sm:$0xf]
        %v475 = vld [vmem:[#allocation3 + $0x64] sm:$0xf]
        %v476 = vld [vmem:[#allocation3 + $0x68] sm:$0xf]
        %v477 = vld [vmem:[#allocation3 + $0x6c] sm:$0xf]
        %v478 = vld [vmem:[#allocation3 + $0x70] sm:$0xf]
        %v479 = vld [vmem:[#allocation3 + $0x74] sm:$0xf]
        %v480 = vld [vmem:[#allocation3 + $0x78] sm:$0xf]
        %v481 = vld [vmem:[#allocation3 + $0x7c] sm:$0xf]
        %v482 = vld [vmem:[#allocation3 + $0x80] sm:$0xf]
        %v483 = vld [vmem:[#allocation3 + $0x84] sm:$0xf]
        %v484 = vld [vmem:[#allocation3 + $0x88] sm:$0xf]
        %v485 = vld [vmem:[#allocation3 + $0x8c] sm:$0xf]
        %v486 = vld [vmem:[#allocation3 + $0x90] sm:$0xf]
        %v487 = vld [vmem:[#allocation3 + $0x94] sm:$0xf]
        %v488 = vld [vmem:[#allocation3 + $0x98] sm:$0xf]
        %v489 = vld [vmem:[#allocation3 + $0x9c] sm:$0xf]
        %v490 = vld [vmem:[#allocation3 + $0xa0] sm:$0xf]
        %v491 = vld [vmem:[#allocation3 + $0xa4] sm:$0xf]
        %v492 = vld [vmem:[#allocation3 + $0xa8] sm:$0xf]
        %v493 = vld [vmem:[#allocation3 + $0xac] sm:$0xf]
        %v494 = vld [vmem:[#allocation3 + $0xb0] sm:$0xf]
        %v495 = vld [vmem:[#allocation3 + $0xb4] sm:$0xf]
        %v496 = vld [vmem:[#allocation3 + $0xb8] sm:$0xf]
        %v497 = vld [vmem:[#allocation3 + $0xbc] sm:$0xf]
        %v498 = vld [vmem:[#allocation3 + $0xc0] sm:$0xf]
        %v499 = vld [vmem:[#allocation3 + $0xc4] sm:$0xf]
        %v500 = vld [vmem:[#allocation3 + $0xc8] sm:$0xf]
        %v501 = vld [vmem:[#allocation3 + $0xcc] sm:$0xf]
        %v502 = vld [vmem:[#allocation3 + $0xd0] sm:$0xf]
        %v503 = vld [vmem:[#allocation3 + $0xd4] sm:$0xf]
        %v504 = vld [vmem:[#allocation3 + $0xd8] sm:$0xf]
        %v505 = vld [vmem:[#allocation3 + $0xdc] sm:$0xf]
        %v506 = vld [vmem:[#allocation3 + $0xe0] sm:$0xf]
        %v507 = vld [vmem:[#allocation3 + $0xe4] sm:$0xf]
        %v508 = vld [vmem:[#allocation3 + $0xe8] sm:$0xf]
        %v509 = vld [vmem:[#allocation3 + $0xec] sm:$0xf]
        %v510 = vld [vmem:[#allocation3 + $0xf0] sm:$0xf]
        %v511 = vld [vmem:[#allocation3 + $0xf4] sm:$0xf]
        %v512 = vld [vmem:[#allocation3 + $0xf8] sm:$0xf]
        %v513 = vld [vmem:[#allocation3 + $0xfc] sm:$0xf]
        %v514 = vld [vmem:[#allocation3 + $0x100] sm:$0xf]
        %v515 = vld [vmem:[#allocation3 + $0x104] sm:$0xf]
        %v516 = vld [vmem:[#allocation3 + $0x108] sm:$0xf]
        %v517 = vld [vmem:[#allocation3 + $0x10c] sm:$0xf]
        %v518 = vld [vmem:[#allocation3 + $0x110] sm:$0xf]
        %v519 = vld [vmem:[#allocation3 + $0x114] sm:$0xf]
        %v520 = vld [vmem:[#allocation3 + $0x118] sm:$0xf]
        %v521 = vld [vmem:[#allocation3 + $0x11c] sm:$0xf]
        %v522 = vld [vmem:[#allocation3 + $0x120] sm:$0xf]
        %v523 = vld [vmem:[#allocation3 + $0x124] sm:$0xf]
        %v524 = vld [vmem:[#allocation3 + $0x128] sm:$0xf]
        %v525 = vld [vmem:[#allocation3 + $0x12c] sm:$0xf]
        %v526 = vld [vmem:[#allocation3 + $0x130] sm:$0xf]
        %v527 = vld [vmem:[#allocation3 + $0x134] sm:$0xf]
        %v528 = vld [vmem:[#allocation3 + $0x138] sm:$0xf]
        %v529 = vld [vmem:[#allocation3 + $0x13c] sm:$0xf]
        %v530 = vld [vmem:[#allocation3 + $0x140] sm:$0xf]
        %v531 = vld [vmem:[#allocation3 + $0x144] sm:$0xf]
        %v532 = vld [vmem:[#allocation3 + $0x148] sm:$0xf]
        %v533 = vld [vmem:[#allocation3 + $0x14c] sm:$0xf]
        %v534 = vld [vmem:[#allocation3 + $0x150] sm:$0xf]
        %v535 = vld [vmem:[#allocation3 + $0x154] sm:$0xf]
        %v536 = vld [vmem:[#allocation3 + $0x158] sm:$0xf]
        %v537 = vld [vmem:[#allocation3 + $0x15c] sm:$0xf]
        %v538 = vld [vmem:[#allocation3 + $0x160] sm:$0xf]
        %v539 = vld [vmem:[#allocation3 + $0x164] sm:$0xf]
        %v540 = vld [vmem:[#allocation3 + $0x168] sm:$0xf]
        %v541 = vld [vmem:[#allocation3 + $0x16c] sm:$0xf]
        %v542 = vld [vmem:[#allocation3 + $0x170] sm:$0xf]
        %v543 = vld [vmem:[#allocation3 + $0x174] sm:$0xf]
        %v544 = vld [vmem:[#allocation3 + $0x178] sm:$0xf]
        %v545 = vld [vmem:[#allocation3 + $0x17c] sm:$0xf]
        %v546 = vld [vmem:[#allocation3 + $0x180] sm:$0xf]
        %v547 = vld [vmem:[#allocation3 + $0x184] sm:$0xf]
        %v548 = vld [vmem:[#allocation3 + $0x188] sm:$0xf]
        %v549 = vld [vmem:[#allocation3 + $0x18c] sm:$0xf]
        %v550 = vld [vmem:[#allocation3 + $0x190] sm:$0xf]
        %v551 = vld [vmem:[#allocation3 + $0x194] sm:$0xf]
        %v552 = vld [vmem:[#allocation3 + $0x198] sm:$0xf]
        %v553 = vld [vmem:[#allocation3 + $0x19c] sm:$0xf]
        %v554 = vld [vmem:[#allocation3 + $0x1a0] sm:$0xf]
        %v555 = vld [vmem:[#allocation3 + $0x1a4] sm:$0xf]
        %v556 = vld [vmem:[#allocation3 + $0x1a8] sm:$0xf]
        %v557 = vld [vmem:[#allocation3 + $0x1ac] sm:$0xf]
        %v558 = vld [vmem:[#allocation3 + $0x1b0] sm:$0xf]
        %v559 = vld [vmem:[#allocation3 + $0x1b4] sm:$0xf]
        %v560 = vld [vmem:[#allocation3 + $0x1b8] sm:$0xf]
        %v561 = vld [vmem:[#allocation3 + $0x1bc] sm:$0xf]
        %v562 = vld [vmem:[#allocation3 + $0x1c0] sm:$0xf]
        %v563 = vld [vmem:[#allocation3 + $0x1c4] sm:$0xf]
        %v564 = vld [vmem:[#allocation3 + $0x1c8] sm:$0xf]
        %v565 = vld [vmem:[#allocation3 + $0x1cc] sm:$0xf]
        %v566 = vld [vmem:[#allocation3 + $0x1d0] sm:$0xf]
        %v567 = vld [vmem:[#allocation3 + $0x1d4] sm:$0xf]
        %v568 = vld [vmem:[#allocation3 + $0x1d8] sm:$0xf]
        %v569 = vld [vmem:[#allocation3 + $0x1dc] sm:$0xf]
        %v570 = vld [vmem:[#allocation3 + $0x1e0] sm:$0xf]
        %v571 = vld [vmem:[#allocation3 + $0x1e4] sm:$0xf]
        %v572 = vld [vmem:[#allocation3 + $0x1e8] sm:$0xf]
        %v573 = vld [vmem:[#allocation3 + $0x1ec] sm:$0xf]
        %v574 = vld [vmem:[#allocation3 + $0x1f0] sm:$0xf]
        %v575 = vld [vmem:[#allocation3 + $0x1f4] sm:$0xf]
        %v576 = vld [vmem:[#allocation3 + $0x1f8] sm:$0xf]
        %v577 = vld [vmem:[#allocation3 + $0x1fc] sm:$0xf]
        %v578 = vld [vmem:[#allocation3 + $0x200] sm:$0xf]
        %v579 = vld [vmem:[#allocation3 + $0x204] sm:$0xf]
        %v580 = vld [vmem:[#allocation3 + $0x208] sm:$0xf]
        %v581 = vld [vmem:[#allocation3 + $0x20c] sm:$0xf]
        %v582 = vld [vmem:[#allocation3 + $0x210] sm:$0xf]
        %v583 = vld [vmem:[#allocation3 + $0x214] sm:$0xf]
        %v584 = vld [vmem:[#allocation3 + $0x218] sm:$0xf]
        %v585 = vld [vmem:[#allocation3 + $0x21c] sm:$0xf]
        %v586 = vld [vmem:[#allocation3 + $0x220] sm:$0xf]
        %v587 = vld [vmem:[#allocation3 + $0x224] sm:$0xf]
        %v588 = vld [vmem:[#allocation3 + $0x228] sm:$0xf]
        %v589 = vld [vmem:[#allocation3 + $0x22c] sm:$0xf]
        %v590 = vld [vmem:[#allocation3 + $0x230] sm:$0xf]
        %v591 = vld [vmem:[#allocation3 + $0x234] sm:$0xf]
        %v592 = vld [vmem:[#allocation3 + $0x238] sm:$0xf]
        %v593 = vld [vmem:[#allocation3 + $0x23c] sm:$0xf]
        %v594 = vld [vmem:[#allocation6] sm:$0x1]
        %v595 = vld [vmem:[#allocation2] sm:$0xff]
        %v596 = vld [vmem:[%s441] sm:$0xff]
        %v597 = vld [vmem:[%s441 + $0x8] sm:$0x1]
        %v599 = vlaneseq
        %v600 = vshrl.u32 %v599, 7
        %v601 = vsub.s32 0, %v600
        %v602 = vrot.slane %v594, %v601
        %v606 = vcombine.high %v596, %v596
        %v608 = vunpack.c.l.s4 1966171168
        %v609 = vunpack.c.0.s8 %v608
        %v610 = vlaneseq
        %v611 = vshrl.u32 %v610, 7
        %v612 = vsub.s32 %v609, %v611
        %v613 = vrot.slane %v596, %v612
        %v615 = vunpack.c.l.s4 1966171168
        %v616 = vunpack.c.0.s8 %v615
        %v617 = vlaneseq
        %v618 = vshrl.u32 %v617, 7
        %v619 = vsub.s32 %v616, %v618
        %v620 = vrot.slane %v606, %v619
        %v621 = vcombine.high %v613, %v613
        %v622 = vcombine.high %v620, %v620
        %v624 = vunpack.c.l.s4 1966171168
        %v625 = vunpack.c.0.s8 %v624
        %v626 = vlaneseq
        %v627 = vshrl.u32 %v626, 7
        %v628 = vsub.s32 %v625, %v627
        %v629 = vrot.slane %v613, %v628
        %v631 = vunpack.c.l.s4 1966171168
        %v632 = vunpack.c.0.s8 %v631
        %v633 = vlaneseq
        %v634 = vshrl.u32 %v633, 7
        %v635 = vsub.s32 %v632, %v634
        %v636 = vrot.slane %v620, %v635
        %v638 = vunpack.c.l.s4 1966171168
        %v639 = vunpack.c.0.s8 %v638
        %v640 = vlaneseq
        %v641 = vshrl.u32 %v640, 7
        %v642 = vsub.s32 %v639, %v641
        %v643 = vrot.slane %v621, %v642
        %v645 = vunpack.c.l.s4 1966171168
        %v646 = vunpack.c.0.s8 %v645
        %v647 = vlaneseq
        %v648 = vshrl.u32 %v647, 7
        %v649 = vsub.s32 %v646, %v648
        %v650 = vrot.slane %v622, %v649
        %v651 = vcombine.high %v629, %v629
        %v652 = vcombine.high %v636, %v636
        %v653 = vcombine.high %v643, %v643
        %v654 = vcombine.high %v650, %v650
        %v656 = vunpack.c.l.s4 1966171168
        %v657 = vunpack.c.0.s8 %v656
        %v658 = vlaneseq
        %v659 = vshrl.u32 %v658, 7
        %v660 = vsub.s32 %v657, %v659
        %v661 = vrot.slane %v597, %v660
        %v663 = vunpack.c.l.s4 1966171168
        %v664 = vunpack.c.0.s8 %v663
        %v665 = vlaneseq
        %v666 = vshrl.u32 %v665, 7
        %v667 = vsub.s32 %v664, %v666
        %v668 = vrot.slane %v661, %v667
        %v822 = vunpack.c.l.b16 %v450
        %v823 = vunpack.c.l.b16 %v451
        %v824 = vunpack.c.l.b16 %v452
        %v825 = vunpack.c.l.b16 %v453
        %v826 = vunpack.c.l.b16 %v454
        %v827 = vunpack.c.l.b16 %v455
        %v828 = vunpack.c.l.b16 %v456
        %v829 = vunpack.c.l.b16 %v457
        %v830 = vunpack.c.l.b16 %v458
        %v831 = vunpack.c.l.b16 %v459
        %v832 = vunpack.c.l.b16 %v460
        %v833 = vunpack.c.l.b16 %v461
        %v834 = vunpack.c.l.b16 %v462
        %v835 = vunpack.c.l.b16 %v463
        %v836 = vunpack.c.l.b16 %v464
        %v837 = vunpack.c.l.b16 %v465
        %v838 = vunpack.c.l.b16 %v466
        %v839 = vunpack.c.l.b16 %v467
        %v840 = vunpack.c.l.b16 %v468
        %v841 = vunpack.c.l.b16 %v469
        %v842 = vunpack.c.l.b16 %v470
        %v843 = vunpack.c.l.b16 %v471
        %v844 = vunpack.c.l.b16 %v472
        %v845 = vunpack.c.l.b16 %v473
        %v846 = vunpack.c.l.b16 %v474
        %v847 = vunpack.c.l.b16 %v475
        %v848 = vunpack.c.l.b16 %v476
        %v849 = vunpack.c.l.b16 %v477
        %v850 = vunpack.c.l.b16 %v478
        %v851 = vunpack.c.l.b16 %v479
        %v852 = vunpack.c.l.b16 %v480
        %v853 = vunpack.c.l.b16 %v481
        %v854 = vunpack.c.l.b16 %v482
        %v855 = vunpack.c.l.b16 %v483
        %v856 = vunpack.c.l.b16 %v484
        %v857 = vunpack.c.l.b16 %v485
        %v858 = vunpack.c.l.b16 %v486
        %v859 = vunpack.c.l.b16 %v487
        %v860 = vunpack.c.l.b16 %v488
        %v861 = vunpack.c.l.b16 %v489
        %v862 = vunpack.c.l.b16 %v490
        %v863 = vunpack.c.l.b16 %v491
        %v864 = vunpack.c.l.b16 %v492
        %v865 = vunpack.c.l.b16 %v493
        %v866 = vunpack.c.l.b16 %v494
        %v867 = vunpack.c.l.b16 %v495
        %v868 = vunpack.c.l.b16 %v496
        %v869 = vunpack.c.l.b16 %v497
        %v870 = vunpack.c.l.b16 %v498
        %v871 = vunpack.c.l.b16 %v499
        %v872 = vunpack.c.l.b16 %v500
        %v873 = vunpack.c.l.b16 %v501
        %v874 = vunpack.c.l.b16 %v502
        %v875 = vunpack.c.l.b16 %v503
        %v876 = vunpack.c.l.b16 %v504
        %v877 = vunpack.c.l.b16 %v505
        %v878 = vunpack.c.l.b16 %v506
        %v879 = vunpack.c.l.b16 %v507
        %v880 = vunpack.c.l.b16 %v508
        %v881 = vunpack.c.l.b16 %v509
        %v882 = vunpack.c.l.b16 %v510
        %v883 = vunpack.c.l.b16 %v511
        %v884 = vunpack.c.l.b16 %v512
        %v885 = vunpack.c.l.b16 %v513
        %v886 = vunpack.c.l.b16 %v514
        %v887 = vunpack.c.l.b16 %v515
        %v888 = vunpack.c.l.b16 %v516
        %v889 = vunpack.c.l.b16 %v517
        %v890 = vunpack.c.l.b16 %v518
        %v891 = vunpack.c.l.b16 %v519
        %v892 = vunpack.c.l.b16 %v520
        %v893 = vunpack.c.l.b16 %v521
        %v894 = vunpack.c.l.b16 %v522
        %v895 = vunpack.c.l.b16 %v523
        %v896 = vunpack.c.l.b16 %v524
        %v897 = vunpack.c.l.b16 %v525
        %v898 = vunpack.c.l.b16 %v526
        %v899 = vunpack.c.l.b16 %v527
        %v900 = vunpack.c.l.b16 %v528
        %v901 = vunpack.c.l.b16 %v529
        %v902 = vunpack.c.l.b16 %v530
        %v903 = vunpack.c.l.b16 %v531
        %v904 = vunpack.c.l.b16 %v532
        %v905 = vunpack.c.l.b16 %v533
        %v906 = vunpack.c.l.b16 %v534
        %v907 = vunpack.c.l.b16 %v535
        %v908 = vunpack.c.l.b16 %v536
        %v909 = vunpack.c.l.b16 %v537
        %v910 = vunpack.c.l.b16 %v538
        %v911 = vunpack.c.l.b16 %v539
        %v912 = vunpack.c.l.b16 %v540
        %v913 = vunpack.c.l.b16 %v541
        %v914 = vunpack.c.l.b16 %v542
        %v915 = vunpack.c.l.b16 %v543
        %v916 = vunpack.c.l.b16 %v544
        %v917 = vunpack.c.l.b16 %v545
        %v918 = vunpack.c.l.b16 %v546
        %v919 = vunpack.c.l.b16 %v547
        %v920 = vunpack.c.l.b16 %v548
        %v921 = vunpack.c.l.b16 %v549
        %v922 = vunpack.c.l.b16 %v550
        %v923 = vunpack.c.l.b16 %v551
        %v924 = vunpack.c.l.b16 %v552
        %v925 = vunpack.c.l.b16 %v553
        %v926 = vunpack.c.l.b16 %v554
        %v927 = vunpack.c.l.b16 %v555
        %v928 = vunpack.c.l.b16 %v556
        %v929 = vunpack.c.l.b16 %v557
        %v930 = vunpack.c.l.b16 %v558
        %v931 = vunpack.c.l.b16 %v559
        %v932 = vunpack.c.l.b16 %v560
        %v933 = vunpack.c.l.b16 %v561
        %v934 = vunpack.c.l.b16 %v562
        %v935 = vunpack.c.l.b16 %v563
        %v936 = vunpack.c.l.b16 %v564
        %v937 = vunpack.c.l.b16 %v565
        %v938 = vunpack.c.l.b16 %v566
        %v939 = vunpack.c.l.b16 %v567
        %v940 = vunpack.c.l.b16 %v568
        %v941 = vunpack.c.l.b16 %v569
        %v942 = vunpack.c.l.b16 %v570
        %v943 = vunpack.c.l.b16 %v571
        %v944 = vunpack.c.l.b16 %v572
        %v945 = vunpack.c.l.b16 %v573
        %v946 = vunpack.c.l.b16 %v574
        %v947 = vunpack.c.l.b16 %v575
        %v948 = vunpack.c.l.b16 %v576
        %v949 = vunpack.c.l.b16 %v577
        %v950 = vunpack.c.l.b16 %v578
        %v951 = vunpack.c.l.b16 %v579
        %v952 = vunpack.c.l.b16 %v580
        %v953 = vunpack.c.l.b16 %v581
        %v954 = vunpack.c.l.b16 %v582
        %v955 = vunpack.c.l.b16 %v583
        %v956 = vunpack.c.l.b16 %v584
        %v957 = vunpack.c.l.b16 %v585
        %v958 = vunpack.c.l.b16 %v586
        %v959 = vunpack.c.l.b16 %v587
        %v960 = vunpack.c.l.b16 %v588
        %v961 = vunpack.c.l.b16 %v589
        %v962 = vunpack.c.l.b16 %v590
        %v963 = vunpack.c.l.b16 %v591
        %v964 = vunpack.c.l.b16 %v592
        %v965 = vunpack.c.l.b16 %v593
        %v966 = vpack.c.b16 %v823, %v822
        %v967 = vpack.c.b16 %v825, %v824
        %v968 = vpack.c.b16 %v827, %v826
        %v969 = vpack.c.b16 %v829, %v828
        %v970 = vpack.c.b16 %v831, %v830
        %v971 = vpack.c.b16 %v833, %v832
        %v972 = vpack.c.b16 %v835, %v834
        %v973 = vpack.c.b16 %v837, %v836
        %v974 = vpack.c.b16 %v839, %v838
        %v975 = vpack.c.b16 %v841, %v840
        %v976 = vpack.c.b16 %v843, %v842
        %v977 = vpack.c.b16 %v845, %v844
        %v978 = vpack.c.b16 %v847, %v846
        %v979 = vpack.c.b16 %v849, %v848
        %v980 = vpack.c.b16 %v851, %v850
        %v981 = vpack.c.b16 %v853, %v852
        %v982 = vpack.c.b16 %v855, %v854
        %v983 = vpack.c.b16 %v857, %v856
        %v984 = vpack.c.b16 %v859, %v858
        %v985 = vpack.c.b16 %v861, %v860
        %v986 = vpack.c.b16 %v863, %v862
        %v987 = vpack.c.b16 %v865, %v864
        %v988 = vpack.c.b16 %v867, %v866
        %v989 = vpack.c.b16 %v869, %v868
        %v990 = vpack.c.b16 %v871, %v870
        %v991 = vpack.c.b16 %v873, %v872
        %v992 = vpack.c.b16 %v875, %v874
        %v993 = vpack.c.b16 %v877, %v876
        %v994 = vpack.c.b16 %v879, %v878
        %v995 = vpack.c.b16 %v881, %v880
        %v996 = vpack.c.b16 %v883, %v882
        %v997 = vpack.c.b16 %v885, %v884
        %v998 = vpack.c.b16 %v887, %v886
        %v999 = vpack.c.b16 %v889, %v888
        %v1000 = vpack.c.b16 %v891, %v890
        %v1001 = vpack.c.b16 %v893, %v892
        %v1002 = vpack.c.b16 %v895, %v894
        %v1003 = vpack.c.b16 %v897, %v896
        %v1004 = vpack.c.b16 %v899, %v898
        %v1005 = vpack.c.b16 %v901, %v900
        %v1006 = vpack.c.b16 %v903, %v902
        %v1007 = vpack.c.b16 %v905, %v904
        %v1008 = vpack.c.b16 %v907, %v906
        %v1009 = vpack.c.b16 %v909, %v908
        %v1010 = vpack.c.b16 %v911, %v910
        %v1011 = vpack.c.b16 %v913, %v912
        %v1012 = vpack.c.b16 %v915, %v914
        %v1013 = vpack.c.b16 %v917, %v916
        %v1014 = vpack.c.b16 %v919, %v918
        %v1015 = vpack.c.b16 %v921, %v920
        %v1016 = vpack.c.b16 %v923, %v922
        %v1017 = vpack.c.b16 %v925, %v924
        %v1018 = vpack.c.b16 %v927, %v926
        %v1019 = vpack.c.b16 %v929, %v928
        %v1020 = vpack.c.b16 %v931, %v930
        %v1021 = vpack.c.b16 %v933, %v932
        %v1022 = vpack.c.b16 %v935, %v934
        %v1023 = vpack.c.b16 %v937, %v936
        %v1024 = vpack.c.b16 %v939, %v938
        %v1025 = vpack.c.b16 %v941, %v940
        %v1026 = vpack.c.b16 %v943, %v942
        %v1027 = vpack.c.b16 %v945, %v944
        %v1028 = vpack.c.b16 %v947, %v946
        %v1029 = vpack.c.b16 %v949, %v948
        %v1030 = vpack.c.b16 %v951, %v950
        %v1031 = vpack.c.b16 %v953, %v952
        %v1032 = vpack.c.b16 %v955, %v954
        %v1033 = vpack.c.b16 %v957, %v956
        %v1034 = vpack.c.b16 %v959, %v958
        %v1035 = vpack.c.b16 %v961, %v960
        %v1036 = vpack.c.b16 %v963, %v962
        %v1037 = vpack.c.b16 %v965, %v964
        %1110 = vmatprep.subr.bf16.mxu0 0
        %1111 = vmatpush1.bf16.msra.mxu0 %v966
        %1112 = vmatprep.subr.bf16.mxu0 0
        %1113 = vmatpush1.bf16.msra.mxu0 %v967
        %1114 = vmatprep.subr.bf16.mxu0 0
        %1115 = vmatpush1.bf16.msra.mxu0 %v968
        %1116 = vmatprep.subr.bf16.mxu0 0
        %1117 = vmatpush1.bf16.msra.mxu0 %v969
        %1118 = vmatprep.subr.bf16.mxu0 0
        %1119 = vmatpush1.bf16.msra.mxu0 %v970
        %1120 = vmatprep.subr.bf16.mxu0 0
        %1121 = vmatpush1.bf16.msra.mxu0 %v971
        %1122 = vmatprep.subr.bf16.mxu0 0
        %1123 = vmatpush1.bf16.msra.mxu0 %v972
        %1124 = vmatprep.subr.bf16.mxu0 0
        %1125 = vmatpush1.bf16.msra.mxu0 %v973
        %1126 = vmatprep.subr.bf16.mxu0 0
        %1127 = vmatpush1.bf16.msra.mxu0 %v974
        %1128 = vmatprep.subr.bf16.mxu0 0
        %1129 = vmatpush1.bf16.msra.mxu0 %v975
        %1130 = vmatprep.subr.bf16.mxu0 0
        %1131 = vmatpush1.bf16.msra.mxu0 %v976
        %1132 = vmatprep.subr.bf16.mxu0 0
        %1133 = vmatpush1.bf16.msra.mxu0 %v977
        %1134 = vmatprep.subr.bf16.mxu0 0
        %1135 = vmatpush1.bf16.msra.mxu0 %v978
        %1136 = vmatprep.subr.bf16.mxu0 0
        %1137 = vmatpush1.bf16.msra.mxu0 %v979
        %1138 = vmatprep.subr.bf16.mxu0 0
        %1139 = vmatpush1.bf16.msra.mxu0 %v980
        %1140 = vmatprep.subr.bf16.mxu0 0
        %1141 = vmatpush1.bf16.msra.mxu0 %v981
        %1142 = vmatprep.mubr.bf16.mxu0 %v643
        %1143 = vmatmul.mubr.bf16.gmra.mrb[0].mxu0 %v629
        %v1144 = vpop.f32.mrb[0].mxu0
        %v1145 = vadd.f32 %v602, %v1144
        %v1146 = vpop.f32.mrb[0].mxu0
        %v1147 = vpop.f32.mrb[0].mxu0
        %v1148 = vpop.f32.mrb[0].mxu0
        %1149 = vdwg.mxu0
        %1150 = vmatprep.subr.bf16.mxu0 0
        %1151 = vmatpush1.bf16.msra.mxu0 %v982
        %1152 = vmatprep.subr.bf16.mxu0 0
        %1153 = vmatpush1.bf16.msra.mxu0 %v983
        %1154 = vmatprep.subr.bf16.mxu0 0
        %1155 = vmatpush1.bf16.msra.mxu0 %v984
        %1156 = vmatprep.subr.bf16.mxu0 0
        %1157 = vmatpush1.bf16.msra.mxu0 %v985
        %1158 = vmatprep.subr.bf16.mxu0 0
        %1159 = vmatpush1.bf16.msra.mxu0 %v986
        %1160 = vmatprep.subr.bf16.mxu0 0
        %1161 = vmatpush1.bf16.msra.mxu0 %v987
        %1162 = vmatprep.subr.bf16.mxu0 0
        %1163 = vmatpush1.bf16.msra.mxu0 %v988
        %1164 = vmatprep.subr.bf16.mxu0 0
        %1165 = vmatpush1.bf16.msra.mxu0 %v989
        %1166 = vmatprep.subr.bf16.mxu0 0
        %1167 = vmatpush1.bf16.msra.mxu0 %v990
        %1168 = vmatprep.subr.bf16.mxu0 0
        %1169 = vmatpush1.bf16.msra.mxu0 %v991
        %1170 = vmatprep.subr.bf16.mxu0 0
        %1171 = vmatpush1.bf16.msra.mxu0 %v992
        %1172 = vmatprep.subr.bf16.mxu0 0
        %1173 = vmatpush1.bf16.msra.mxu0 %v993
        %1174 = vmatprep.subr.bf16.mxu0 0
        %1175 = vmatpush1.bf16.msra.mxu0 %v994
        %1176 = vmatprep.subr.bf16.mxu0 0
        %1177 = vmatpush1.bf16.msra.mxu0 %v995
        %1178 = vmatprep.subr.bf16.mxu0 0
        %1179 = vmatpush1.bf16.msra.mxu0 %v996
        %1180 = vmatprep.subr.bf16.mxu0 0
        %1181 = vmatpush1.bf16.msra.mxu0 %v997
        %1182 = vmatprep.mubr.bf16.mxu0 %v653
        %1183 = vmatmul.mubr.bf16.gmra.mrb[0].mxu0 %v651
        %v1184 = vpop.f32.mrb[0].mxu0
        %v1185 = vadd.f32 %v1145, %v1184
        %v1186 = vpop.f32.mrb[0].mxu0
        %v1187 = vpop.f32.mrb[0].mxu0
        %v1188 = vpop.f32.mrb[0].mxu0
        %1189 = vdwg.mxu0
        %1190 = vmatprep.subr.bf16.mxu0 0
        %1191 = vmatpush1.bf16.msra.mxu0 %v998
        %1192 = vmatprep.subr.bf16.mxu0 0
        %1193 = vmatpush1.bf16.msra.mxu0 %v999
        %1194 = vmatprep.subr.bf16.mxu0 0
        %1195 = vmatpush1.bf16.msra.mxu0 %v1000
        %1196 = vmatprep.subr.bf16.mxu0 0
        %1197 = vmatpush1.bf16.msra.mxu0 %v1001
        %1198 = vmatprep.subr.bf16.mxu0 0
        %1199 = vmatpush1.bf16.msra.mxu0 %v1002
        %1200 = vmatprep.subr.bf16.mxu0 0
        %1201 = vmatpush1.bf16.msra.mxu0 %v1003
        %1202 = vmatprep.subr.bf16.mxu0 0
        %1203 = vmatpush1.bf16.msra.mxu0 %v1004
        %1204 = vmatprep.subr.bf16.mxu0 0
        %1205 = vmatpush1.bf16.msra.mxu0 %v1005
        %1206 = vmatprep.subr.bf16.mxu0 0
        %1207 = vmatpush1.bf16.msra.mxu0 %v1006
        %1208 = vmatprep.subr.bf16.mxu0 0
        %1209 = vmatpush1.bf16.msra.mxu0 %v1007
        %1210 = vmatprep.subr.bf16.mxu0 0
        %1211 = vmatpush1.bf16.msra.mxu0 %v1008
        %1212 = vmatprep.subr.bf16.mxu0 0
        %1213 = vmatpush1.bf16.msra.mxu0 %v1009
        %1214 = vmatprep.subr.bf16.mxu0 0
        %1215 = vmatpush1.bf16.msra.mxu0 %v1010
        %1216 = vmatprep.subr.bf16.mxu0 0
        %1217 = vmatpush1.bf16.msra.mxu0 %v1011
        %1218 = vmatprep.subr.bf16.mxu0 0
        %1219 = vmatpush1.bf16.msra.mxu0 %v1012
        %1220 = vmatprep.subr.bf16.mxu0 0
        %1221 = vmatpush1.bf16.msra.mxu0 %v1013
        %1222 = vmatprep.mubr.bf16.mxu0 %v650
        %1223 = vmatmul.mubr.bf16.gmra.mrb[0].mxu0 %v636
        %v1224 = vpop.f32.mrb[0].mxu0
        %v1225 = vadd.f32 %v1185, %v1224
        %v1226 = vpop.f32.mrb[0].mxu0
        %v1227 = vpop.f32.mrb[0].mxu0
        %v1228 = vpop.f32.mrb[0].mxu0
        %1229 = vdwg.mxu0
        %1230 = vmatprep.subr.bf16.mxu0 0
        %1231 = vmatpush1.bf16.msra.mxu0 %v1014
        %1232 = vmatprep.subr.bf16.mxu0 0
        %1233 = vmatpush1.bf16.msra.mxu0 %v1015
        %1234 = vmatprep.subr.bf16.mxu0 0
        %1235 = vmatpush1.bf16.msra.mxu0 %v1016
        %1236 = vmatprep.subr.bf16.mxu0 0
        %1237 = vmatpush1.bf16.msra.mxu0 %v1017
        %1238 = vmatprep.subr.bf16.mxu0 0
        %1239 = vmatpush1.bf16.msra.mxu0 %v1018
        %1240 = vmatprep.subr.bf16.mxu0 0
        %1241 = vmatpush1.bf16.msra.mxu0 %v1019
        %1242 = vmatprep.subr.bf16.mxu0 0
        %1243 = vmatpush1.bf16.msra.mxu0 %v1020
        %1244 = vmatprep.subr.bf16.mxu0 0
        %1245 = vmatpush1.bf16.msra.mxu0 %v1021
        %1246 = vmatprep.subr.bf16.mxu0 0
        %1247 = vmatpush1.bf16.msra.mxu0 %v1022
        %1248 = vmatprep.subr.bf16.mxu0 0
        %1249 = vmatpush1.bf16.msra.mxu0 %v1023
        %1250 = vmatprep.subr.bf16.mxu0 0
        %1251 = vmatpush1.bf16.msra.mxu0 %v1024
        %1252 = vmatprep.subr.bf16.mxu0 0
        %1253 = vmatpush1.bf16.msra.mxu0 %v1025
        %1254 = vmatprep.subr.bf16.mxu0 0
        %1255 = vmatpush1.bf16.msra.mxu0 %v1026
        %1256 = vmatprep.subr.bf16.mxu0 0
        %1257 = vmatpush1.bf16.msra.mxu0 %v1027
        %1258 = vmatprep.subr.bf16.mxu0 0
        %1259 = vmatpush1.bf16.msra.mxu0 %v1028
        %1260 = vmatprep.subr.bf16.mxu0 0
        %1261 = vmatpush1.bf16.msra.mxu0 %v1029
        %1262 = vmatprep.mubr.bf16.mxu0 %v654
        %1263 = vmatmul.mubr.bf16.gmra.mrb[0].mxu0 %v652
        %v1264 = vpop.f32.mrb[0].mxu0
        %v1265 = vadd.f32 %v1225, %v1264
        %v1266 = vpop.f32.mrb[0].mxu0
        %v1267 = vpop.f32.mrb[0].mxu0
        %v1268 = vpop.f32.mrb[0].mxu0
        %1269 = vdwg.mxu0
        %1270 = vmatprep.subr.bf16.mxu0 0
        %1271 = vmatpush1.bf16.msra.mxu0 %v1030
        %1272 = vmatprep.subr.bf16.mxu0 0
        %1273 = vmatpush1.bf16.msra.mxu0 %v1031
        %1274 = vmatprep.subr.bf16.mxu0 0
        %1275 = vmatpush1.bf16.msra.mxu0 %v1032
        %1276 = vmatprep.subr.bf16.mxu0 0
        %1277 = vmatpush1.bf16.msra.mxu0 %v1033
        %1278 = vmatprep.subr.bf16.mxu0 0
        %1279 = vmatpush1.bf16.msra.mxu0 %v1034
        %1280 = vmatprep.subr.bf16.mxu0 0
        %1281 = vmatpush1.bf16.msra.mxu0 %v1035
        %1282 = vmatprep.subr.bf16.mxu0 0
        %1283 = vmatpush1.bf16.msra.mxu0 %v1036
        %1284 = vmatprep.subr.bf16.mxu0 0
        %1285 = vmatpush1.bf16.msra.mxu0 %v1037
        %1286 = vmatprep.subr.bf16.mxu0 0
        %1287 = vmatpush1.bf16.msra.mxu0 0
        %1288 = vmatprep.subr.bf16.mxu0 0
        %1289 = vmatpush1.bf16.msra.mxu0 0
        %1290 = vmatprep.subr.bf16.mxu0 0
        %1291 = vmatpush1.bf16.msra.mxu0 0
        %1292 = vmatprep.subr.bf16.mxu0 0
        %1293 = vmatpush1.bf16.msra.mxu0 0
        %1294 = vmatprep.subr.bf16.mxu0 0
        %1295 = vmatpush1.bf16.msra.mxu0 0
        %1296 = vmatprep.subr.bf16.mxu0 0
        %1297 = vmatpush1.bf16.msra.mxu0 0
        %1298 = vmatprep.subr.bf16.mxu0 0
        %1299 = vmatpush1.bf16.msra.mxu0 0
        %1300 = vmatprep.subr.bf16.mxu0 0
        %1301 = vmatpush1.bf16.msra.mxu0 0
        %1302 = vmatprep.mubr.bf16.mxu0 0
        %1303 = vmatmul.mubr.bf16.gmra.mrb[0].mxu0 %v668
        %v1304 = vpop.f32.mrb[0].mxu0
        %v1305 = vadd.f32 %v1265, %v1304
        %v1306 = vpop.f32.mrb[0].mxu0
        %v1307 = vpop.f32.mrb[0].mxu0
        %v1308 = vpop.f32.mrb[0].mxu0
        %1309 = vdwg.mxu0
        %v1310 = vmax.f32 %v1305, 0.0
        %v1311 = vpack.c.bf16 %v1310, %v1310
        %v1312 = vld [vmem:[%s380] sm:$0xff]
        %v1313 = vld [vmem:[%s380 + $0x8] sm:$0xff]
        %v1314 = vld [vmem:[%s380 + $0x10] sm:$0xff]
        %v1315 = vld [vmem:[%s380 + $0x18] sm:$0xff]
        %v1316 = vld [vmem:[%s380 + $0x20] sm:$0xff]
        %v1317 = vld [vmem:[%s380 + $0x28] sm:$0xff]
        %v1318 = vld [vmem:[%s380 + $0x30] sm:$0xff]
        %v1319 = vld [vmem:[%s380 + $0x38] sm:$0xff]
        %v1320 = vld [vmem:[%s380 + $0x40] sm:$0xff]
        %v1321 = vld [vmem:[%s380 + $0x48] sm:$0xff]
        %v1322 = vld [vmem:[%s380 + $0x50] sm:$0xff]
        %v1323 = vld [vmem:[%s380 + $0x58] sm:$0xff]
        %v1324 = vld [vmem:[%s380 + $0x60] sm:$0xff]
        %v1325 = vld [vmem:[%s380 + $0x68] sm:$0xff]
        %v1326 = vld [vmem:[%s380 + $0x70] sm:$0xff]
        %v1327 = vld [vmem:[%s380 + $0x78] sm:$0xff]
        %v1328 = vunpack.c.l.s8.bf16 %v1312
        %v1329 = vunpack.c.l.s8.bf16 %v1313
        %v1330 = vunpack.c.l.s8.bf16 %v1314
        %v1331 = vunpack.c.l.s8.bf16 %v1315
        %v1332 = vunpack.c.h.s8.bf16 %v1312
        %v1333 = vunpack.c.h.s8.bf16 %v1313
        %v1334 = vunpack.c.h.s8.bf16 %v1314
        %v1335 = vunpack.c.h.s8.bf16 %v1315
        %v1336 = vunpack.c.l.s8.bf16 %v1316
        %v1337 = vunpack.c.l.s8.bf16 %v1317
        %v1338 = vunpack.c.l.s8.bf16 %v1318
        %v1339 = vunpack.c.l.s8.bf16 %v1319
        %v1340 = vunpack.c.h.s8.bf16 %v1316
        %v1341 = vunpack.c.h.s8.bf16 %v1317
        %v1342 = vunpack.c.h.s8.bf16 %v1318
        %v1343 = vunpack.c.h.s8.bf16 %v1319
        %v1344 = vunpack.c.l.s8.bf16 %v1320
        %v1345 = vunpack.c.l.s8.bf16 %v1321
        %v1346 = vunpack.c.l.s8.bf16 %v1322
        %v1347 = vunpack.c.l.s8.bf16 %v1323
        %v1348 = vunpack.c.h.s8.bf16 %v1320
        %v1349 = vunpack.c.h.s8.bf16 %v1321
        %v1350 = vunpack.c.h.s8.bf16 %v1322
        %v1351 = vunpack.c.h.s8.bf16 %v1323
        %v1352 = vunpack.c.l.s8.bf16 %v1324
        %v1353 = vunpack.c.l.s8.bf16 %v1325
        %v1354 = vunpack.c.l.s8.bf16 %v1326
        %v1355 = vunpack.c.l.s8.bf16 %v1327
        %v1356 = vunpack.c.h.s8.bf16 %v1324
        %v1357 = vunpack.c.h.s8.bf16 %v1325
        %v1358 = vunpack.c.h.s8.bf16 %v1326
        %v1359 = vunpack.c.h.s8.bf16 %v1327
        %1360 = vmatprep.subr.bf16.mxu0 %v1329
        %1361 = vmatpush1.bf16.msra.mxu0 %v1328
        %1362 = vmatprep.subr.bf16.mxu0 %v1333
        %1363 = vmatpush1.bf16.msra.mxu0 %v1332
        %1364 = vmatprep.subr.bf16.mxu0 %v1337
        %1365 = vmatpush1.bf16.msra.mxu0 %v1336
        %1366 = vmatprep.subr.bf16.mxu0 %v1341
        %1367 = vmatpush1.bf16.msra.mxu0 %v1340
        %1368 = vmatprep.subr.bf16.mxu0 %v1345
        %1369 = vmatpush1.bf16.msra.mxu0 %v1344
        %1370 = vmatprep.subr.bf16.mxu0 %v1349
        %1371 = vmatpush1.bf16.msra.mxu0 %v1348
        %1372 = vmatprep.subr.bf16.mxu0 %v1353
        %1373 = vmatpush1.bf16.msra.mxu0 %v1352
        %1374 = vmatprep.subr.bf16.mxu0 %v1357
        %1375 = vmatpush1.bf16.msra.mxu0 %v1356
        %1376 = vmatprep.subr.bf16.mxu0 0
        %1377 = vmatpush1.bf16.msra.mxu0 0
        %1378 = vmatprep.subr.bf16.mxu0 0
        %1379 = vmatpush1.bf16.msra.mxu0 0
        %1380 = vmatprep.subr.bf16.mxu0 0
        %1381 = vmatpush1.bf16.msra.mxu0 0
        %1382 = vmatprep.subr.bf16.mxu0 0
        %1383 = vmatpush1.bf16.msra.mxu0 0
        %1384 = vmatprep.subr.bf16.mxu0 0
        %1385 = vmatpush1.bf16.msra.mxu0 0
        %1386 = vmatprep.subr.bf16.mxu0 0
        %1387 = vmatpush1.bf16.msra.mxu0 0
        %1388 = vmatprep.subr.bf16.mxu0 0
        %1389 = vmatpush1.bf16.msra.mxu0 0
        %1390 = vmatprep.subr.bf16.mxu0 0
        %1391 = vmatpush1.bf16.msra.mxu0 0
        %1392 = vmatprep.mubr.bf16.mxu0 0
        %1393 = vmatmul.mubr.bf16.gmra.mrb[0].mxu0 %v1311
        %v1394 = vpop.f32.mrb[0].mxu0
        %v1395 = vadd.f32 0.0, %v1394
        %v1396 = vpop.f32.mrb[0].mxu0
        %v1397 = vadd.f32 0.0, %v1396
        %v1398 = vpop.f32.mrb[0].mxu0
        %v1399 = vpop.f32.mrb[0].mxu0
        %1400 = vdwg.mxu0
        %1401 = vmatprep.subr.bf16.mxu0 %v1331
        %1402 = vmatpush1.bf16.msra.mxu0 %v1330
        %1403 = vmatprep.subr.bf16.mxu0 %v1335
        %1404 = vmatpush1.bf16.msra.mxu0 %v1334
        %1405 = vmatprep.subr.bf16.mxu0 %v1339
        %1406 = vmatpush1.bf16.msra.mxu0 %v1338
        %1407 = vmatprep.subr.bf16.mxu0 %v1343
        %1408 = vmatpush1.bf16.msra.mxu0 %v1342
        %1409 = vmatprep.subr.bf16.mxu0 %v1347
        %1410 = vmatpush1.bf16.msra.mxu0 %v1346
        %1411 = vmatprep.subr.bf16.mxu0 %v1351
        %1412 = vmatpush1.bf16.msra.mxu0 %v1350
        %1413 = vmatprep.subr.bf16.mxu0 %v1355
        %1414 = vmatpush1.bf16.msra.mxu0 %v1354
        %1415 = vmatprep.subr.bf16.mxu0 %v1359
        %1416 = vmatpush1.bf16.msra.mxu0 %v1358
        %1417 = vmatprep.subr.bf16.mxu0 0
        %1418 = vmatpush1.bf16.msra.mxu0 0
        %1419 = vmatprep.subr.bf16.mxu0 0
        %1420 = vmatpush1.bf16.msra.mxu0 0
        %1421 = vmatprep.subr.bf16.mxu0 0
        %1422 = vmatpush1.bf16.msra.mxu0 0
        %1423 = vmatprep.subr.bf16.mxu0 0
        %1424 = vmatpush1.bf16.msra.mxu0 0
        %1425 = vmatprep.subr.bf16.mxu0 0
        %1426 = vmatpush1.bf16.msra.mxu0 0
        %1427 = vmatprep.subr.bf16.mxu0 0
        %1428 = vmatpush1.bf16.msra.mxu0 0
        %1429 = vmatprep.subr.bf16.mxu0 0
        %1430 = vmatpush1.bf16.msra.mxu0 0
        %1431 = vmatprep.subr.bf16.mxu0 0
        %1432 = vmatpush1.bf16.msra.mxu0 0
        %1433 = vmatprep.mubr.bf16.mxu0 0
        %1434 = vmatmul.mubr.bf16.gmra.mrb[0].mxu0 %v1311
        %v1435 = vpop.f32.mrb[0].mxu0
        %v1436 = vadd.f32 0.0, %v1435
        %v1437 = vpop.f32.mrb[0].mxu0
        %v1438 = vadd.f32 0.0, %v1437
        %v1439 = vpop.f32.mrb[0].mxu0
        %v1440 = vpop.f32.mrb[0].mxu0
        %1441 = vdwg.mxu0
        %v1446 = vcombine.low %v1395, %v1397
        %v1447 = vcombine.low %v1436, %v1438
        %v1449 = vunpack.c.l.s4 1983009808
        %v1450 = vunpack.c.0.s8 %v1449
        %v1451 = vlaneseq
        %v1452 = vshrl.u32 %v1451, 7
        %v1453 = vsub.s32 %v1450, %v1452
        %v1454 = vrot.slane %v1446, %v1453
        %v1456 = vunpack.c.l.s4 1983009808
        %v1457 = vunpack.c.0.s8 %v1456
        %v1458 = vlaneseq
        %v1459 = vshrl.u32 %v1458, 7
        %v1460 = vsub.s32 %v1457, %v1459
        %v1461 = vrot.slane %v1447, %v1460
        %v1462 = vcombine.low %v1454, %v1461
        %v1464 = vadd.f32 %v595, %v1462
        %s1465 = scalar_lea.vmem %s441, 9
        %v1466 = vld [vmem:[%s1465] sm:$0xff]
        %v1467 = vld [vmem:[%s1465 + $0x8] sm:$0x1]
        %v1470 = vcombine.high %v1466, %v1466
        %v1472 = vunpack.c.l.s4 1966171168
        %v1473 = vunpack.c.0.s8 %v1472
        %v1474 = vlaneseq
        %v1475 = vshrl.u32 %v1474, 7
        %v1476 = vsub.s32 %v1473, %v1475
        %v1477 = vrot.slane %v1466, %v1476
        %v1479 = vunpack.c.l.s4 1966171168
        %v1480 = vunpack.c.0.s8 %v1479
        %v1481 = vlaneseq
        %v1482 = vshrl.u32 %v1481, 7
        %v1483 = vsub.s32 %v1480, %v1482
        %v1484 = vrot.slane %v1470, %v1483
        %v1485 = vcombine.high %v1477, %v1477
        %v1486 = vcombine.high %v1484, %v1484
        %v1488 = vunpack.c.l.s4 1966171168
        %v1489 = vunpack.c.0.s8 %v1488
        %v1490 = vlaneseq
        %v1491 = vshrl.u32 %v1490, 7
        %v1492 = vsub.s32 %v1489, %v1491
        %v1493 = vrot.slane %v1477, %v1492
        %v1495 = vunpack.c.l.s4 1966171168
        %v1496 = vunpack.c.0.s8 %v1495
        %v1497 = vlaneseq
        %v1498 = vshrl.u32 %v1497, 7
        %v1499 = vsub.s32 %v1496, %v1498
        %v1500 = vrot.slane %v1484, %v1499
        %v1502 = vunpack.c.l.s4 1966171168
        %v1503 = vunpack.c.0.s8 %v1502
        %v1504 = vlaneseq
        %v1505 = vshrl.u32 %v1504, 7
        %v1506 = vsub.s32 %v1503, %v1505
        %v1507 = vrot.slane %v1485, %v1506
        %v1509 = vunpack.c.l.s4 1966171168
        %v1510 = vunpack.c.0.s8 %v1509
        %v1511 = vlaneseq
        %v1512 = vshrl.u32 %v1511, 7
        %v1513 = vsub.s32 %v1510, %v1512
        %v1514 = vrot.slane %v1486, %v1513
        %v1515 = vcombine.high %v1493, %v1493
        %v1516 = vcombine.high %v1500, %v1500
        %v1517 = vcombine.high %v1507, %v1507
        %v1518 = vcombine.high %v1514, %v1514
        %v1520 = vunpack.c.l.s4 1966171168
        %v1521 = vunpack.c.0.s8 %v1520
        %v1522 = vlaneseq
        %v1523 = vshrl.u32 %v1522, 7
        %v1524 = vsub.s32 %v1521, %v1523
        %v1525 = vrot.slane %v1467, %v1524
        %v1527 = vunpack.c.l.s4 1966171168
        %v1528 = vunpack.c.0.s8 %v1527
        %v1529 = vlaneseq
        %v1530 = vshrl.u32 %v1529, 7
        %v1531 = vsub.s32 %v1528, %v1530
        %v1532 = vrot.slane %v1525, %v1531
        %1542 = vmatprep.subr.bf16.mxu0 0
        %1543 = vmatpush1.bf16.msra.mxu0 %v966
        %1544 = vmatprep.subr.bf16.mxu0 0
        %1545 = vmatpush1.bf16.msra.mxu0 %v967
        %1546 = vmatprep.subr.bf16.mxu0 0
        %1547 = vmatpush1.bf16.msra.mxu0 %v968
        %1548 = vmatprep.subr.bf16.mxu0 0
        %1549 = vmatpush1.bf16.msra.mxu0 %v969
        %1550 = vmatprep.subr.bf16.mxu0 0
        %1551 = vmatpush1.bf16.msra.mxu0 %v970
        %1552 = vmatprep.subr.bf16.mxu0 0
        %1553 = vmatpush1.bf16.msra.mxu0 %v971
        %1554 = vmatprep.subr.bf16.mxu0 0
        %1555 = vmatpush1.bf16.msra.mxu0 %v972
        %1556 = vmatprep.subr.bf16.mxu0 0
        %1557 = vmatpush1.bf16.msra.mxu0 %v973
        %1558 = vmatprep.subr.bf16.mxu0 0
        %1559 = vmatpush1.bf16.msra.mxu0 %v974
        %1560 = vmatprep.subr.bf16.mxu0 0
        %1561 = vmatpush1.bf16.msra.mxu0 %v975
        %1562 = vmatprep.subr.bf16.mxu0 0
        %1563 = vmatpush1.bf16.msra.mxu0 %v976
        %1564 = vmatprep.subr.bf16.mxu0 0
        %1565 = vmatpush1.bf16.msra.mxu0 %v977
        %1566 = vmatprep.subr.bf16.mxu0 0
        %1567 = vmatpush1.bf16.msra.mxu0 %v978
        %1568 = vmatprep.subr.bf16.mxu0 0
        %1569 = vmatpush1.bf16.msra.mxu0 %v979
        %1570 = vmatprep.subr.bf16.mxu0 0
        %1571 = vmatpush1.bf16.msra.mxu0 %v980
        %1572 = vmatprep.subr.bf16.mxu0 0
        %1573 = vmatpush1.bf16.msra.mxu0 %v981
        %1574 = vmatprep.mubr.bf16.mxu0 %v1507
        %1575 = vmatmul.mubr.bf16.gmra.mrb[0].mxu0 %v1493
        %v1576 = vpop.f32.mrb[0].mxu0
        %v1577 = vadd.f32 %v602, %v1576
        %v1578 = vpop.f32.mrb[0].mxu0
        %v1579 = vpop.f32.mrb[0].mxu0
        %v1580 = vpop.f32.mrb[0].mxu0
        %1581 = vdwg.mxu0
        %1582 = vmatprep.subr.bf16.mxu0 0
        %1583 = vmatpush1.bf16.msra.mxu0 %v982
        %1584 = vmatprep.subr.bf16.mxu0 0
        %1585 = vmatpush1.bf16.msra.mxu0 %v983
        %1586 = vmatprep.subr.bf16.mxu0 0
        %1587 = vmatpush1.bf16.msra.mxu0 %v984
        %1588 = vmatprep.subr.bf16.mxu0 0
        %1589 = vmatpush1.bf16.msra.mxu0 %v985
        %1590 = vmatprep.subr.bf16.mxu0 0
        %1591 = vmatpush1.bf16.msra.mxu0 %v986
        %1592 = vmatprep.subr.bf16.mxu0 0
        %1593 = vmatpush1.bf16.msra.mxu0 %v987
        %1594 = vmatprep.subr.bf16.mxu0 0
        %1595 = vmatpush1.bf16.msra.mxu0 %v988
        %1596 = vmatprep.subr.bf16.mxu0 0
        %1597 = vmatpush1.bf16.msra.mxu0 %v989
        %1598 = vmatprep.subr.bf16.mxu0 0
        %1599 = vmatpush1.bf16.msra.mxu0 %v990
        %1600 = vmatprep.subr.bf16.mxu0 0
        %1601 = vmatpush1.bf16.msra.mxu0 %v991
        %1602 = vmatprep.subr.bf16.mxu0 0
        %1603 = vmatpush1.bf16.msra.mxu0 %v992
        %1604 = vmatprep.subr.bf16.mxu0 0
        %1605 = vmatpush1.bf16.msra.mxu0 %v993
        %1606 = vmatprep.subr.bf16.mxu0 0
        %1607 = vmatpush1.bf16.msra.mxu0 %v994
        %1608 = vmatprep.subr.bf16.mxu0 0
        %1609 = vmatpush1.bf16.msra.mxu0 %v995
        %1610 = vmatprep.subr.bf16.mxu0 0
        %1611 = vmatpush1.bf16.msra.mxu0 %v996
        %1612 = vmatprep.subr.bf16.mxu0 0
        %1613 = vmatpush1.bf16.msra.mxu0 %v997
        %1614 = vmatprep.mubr.bf16.mxu0 %v1517
        %1615 = vmatmul.mubr.bf16.gmra.mrb[0].mxu0 %v1515
        %v1616 = vpop.f32.mrb[0].mxu0
        %v1617 = vadd.f32 %v1577, %v1616
        %v1618 = vpop.f32.mrb[0].mxu0
        %v1619 = vpop.f32.mrb[0].mxu0
        %v1620 = vpop.f32.mrb[0].mxu0
        %1621 = vdwg.mxu0
        %1622 = vmatprep.subr.bf16.mxu0 0
        %1623 = vmatpush1.bf16.msra.mxu0 %v998
        %1624 = vmatprep.subr.bf16.mxu0 0
        %1625 = vmatpush1.bf16.msra.mxu0 %v999
        %1626 = vmatprep.subr.bf16.mxu0 0
        %1627 = vmatpush1.bf16.msra.mxu0 %v1000
        %1628 = vmatprep.subr.bf16.mxu0 0
        %1629 = vmatpush1.bf16.msra.mxu0 %v1001
        %1630 = vmatprep.subr.bf16.mxu0 0
        %1631 = vmatpush1.bf16.msra.mxu0 %v1002
        %1632 = vmatprep.subr.bf16.mxu0 0
        %1633 = vmatpush1.bf16.msra.mxu0 %v1003
        %1634 = vmatprep.subr.bf16.mxu0 0
        %1635 = vmatpush1.bf16.msra.mxu0 %v1004
        %1636 = vmatprep.subr.bf16.mxu0 0
        %1637 = vmatpush1.bf16.msra.mxu0 %v1005
        %1638 = vmatprep.subr.bf16.mxu0 0
        %1639 = vmatpush1.bf16.msra.mxu0 %v1006
        %1640 = vmatprep.subr.bf16.mxu0 0
        %1641 = vmatpush1.bf16.msra.mxu0 %v1007
        %1642 = vmatprep.subr.bf16.mxu0 0
        %1643 = vmatpush1.bf16.msra.mxu0 %v1008
        %1644 = vmatprep.subr.bf16.mxu0 0
        %1645 = vmatpush1.bf16.msra.mxu0 %v1009
        %1646 = vmatprep.subr.bf16.mxu0 0
        %1647 = vmatpush1.bf16.msra.mxu0 %v1010
        %1648 = vmatprep.subr.bf16.mxu0 0
        %1649 = vmatpush1.bf16.msra.mxu0 %v1011
        %1650 = vmatprep.subr.bf16.mxu0 0
        %1651 = vmatpush1.bf16.msra.mxu0 %v1012
        %1652 = vmatprep.subr.bf16.mxu0 0
        %1653 = vmatpush1.bf16.msra.mxu0 %v1013
        %1654 = vmatprep.mubr.bf16.mxu0 %v1514
        %1655 = vmatmul.mubr.bf16.gmra.mrb[0].mxu0 %v1500
        %v1656 = vpop.f32.mrb[0].mxu0
        %v1657 = vadd.f32 %v1617, %v1656
        %v1658 = vpop.f32.mrb[0].mxu0
        %v1659 = vpop.f32.mrb[0].mxu0
        %v1660 = vpop.f32.mrb[0].mxu0
        %1661 = vdwg.mxu0
        %1662 = vmatprep.subr.bf16.mxu0 0
        %1663 = vmatpush1.bf16.msra.mxu0 %v1014
        %1664 = vmatprep.subr.bf16.mxu0 0
        %1665 = vmatpush1.bf16.msra.mxu0 %v1015
        %1666 = vmatprep.subr.bf16.mxu0 0
        %1667 = vmatpush1.bf16.msra.mxu0 %v1016
        %1668 = vmatprep.subr.bf16.mxu0 0
        %1669 = vmatpush1.bf16.msra.mxu0 %v1017
        %1670 = vmatprep.subr.bf16.mxu0 0
        %1671 = vmatpush1.bf16.msra.mxu0 %v1018
        %1672 = vmatprep.subr.bf16.mxu0 0
        %1673 = vmatpush1.bf16.msra.mxu0 %v1019
        %1674 = vmatprep.subr.bf16.mxu0 0
        %1675 = vmatpush1.bf16.msra.mxu0 %v1020
        %1676 = vmatprep.subr.bf16.mxu0 0
        %1677 = vmatpush1.bf16.msra.mxu0 %v1021
        %1678 = vmatprep.subr.bf16.mxu0 0
        %1679 = vmatpush1.bf16.msra.mxu0 %v1022
        %1680 = vmatprep.subr.bf16.mxu0 0
        %1681 = vmatpush1.bf16.msra.mxu0 %v1023
        %1682 = vmatprep.subr.bf16.mxu0 0
        %1683 = vmatpush1.bf16.msra.mxu0 %v1024
        %1684 = vmatprep.subr.bf16.mxu0 0
        %1685 = vmatpush1.bf16.msra.mxu0 %v1025
        %1686 = vmatprep.subr.bf16.mxu0 0
        %1687 = vmatpush1.bf16.msra.mxu0 %v1026
        %1688 = vmatprep.subr.bf16.mxu0 0
        %1689 = vmatpush1.bf16.msra.mxu0 %v1027
        %1690 = vmatprep.subr.bf16.mxu0 0
        %1691 = vmatpush1.bf16.msra.mxu0 %v1028
        %1692 = vmatprep.subr.bf16.mxu0 0
        %1693 = vmatpush1.bf16.msra.mxu0 %v1029
        %1694 = vmatprep.mubr.bf16.mxu0 %v1518
        %1695 = vmatmul.mubr.bf16.gmra.mrb[0].mxu0 %v1516
        %v1696 = vpop.f32.mrb[0].mxu0
        %v1697 = vadd.f32 %v1657, %v1696
        %v1698 = vpop.f32.mrb[0].mxu0
        %v1699 = vpop.f32.mrb[0].mxu0
        %v1700 = vpop.f32.mrb[0].mxu0
        %1701 = vdwg.mxu0
        %1702 = vmatprep.subr.bf16.mxu0 0
        %1703 = vmatpush1.bf16.msra.mxu0 %v1030
        %1704 = vmatprep.subr.bf16.mxu0 0
        %1705 = vmatpush1.bf16.msra.mxu0 %v1031
        %1706 = vmatprep.subr.bf16.mxu0 0
        %1707 = vmatpush1.bf16.msra.mxu0 %v1032
        %1708 = vmatprep.subr.bf16.mxu0 0
        %1709 = vmatpush1.bf16.msra.mxu0 %v1033
        %1710 = vmatprep.subr.bf16.mxu0 0
        %1711 = vmatpush1.bf16.msra.mxu0 %v1034
        %1712 = vmatprep.subr.bf16.mxu0 0
        %1713 = vmatpush1.bf16.msra.mxu0 %v1035
        %1714 = vmatprep.subr.bf16.mxu0 0
        %1715 = vmatpush1.bf16.msra.mxu0 %v1036
        %1716 = vmatprep.subr.bf16.mxu0 0
        %1717 = vmatpush1.bf16.msra.mxu0 %v1037
        %1718 = vmatprep.subr.bf16.mxu0 0
        %1719 = vmatpush1.bf16.msra.mxu0 0
        %1720 = vmatprep.subr.bf16.mxu0 0
        %1721 = vmatpush1.bf16.msra.mxu0 0
        %1722 = vmatprep.subr.bf16.mxu0 0
        %1723 = vmatpush1.bf16.msra.mxu0 0
        %1724 = vmatprep.subr.bf16.mxu0 0
        %1725 = vmatpush1.bf16.msra.mxu0 0
        %1726 = vmatprep.subr.bf16.mxu0 0
        %1727 = vmatpush1.bf16.msra.mxu0 0
        %1728 = vmatprep.subr.bf16.mxu0 0
        %1729 = vmatpush1.bf16.msra.mxu0 0
        %1730 = vmatprep.subr.bf16.mxu0 0
        %1731 = vmatpush1.bf16.msra.mxu0 0
        %1732 = vmatprep.subr.bf16.mxu0 0
        %1733 = vmatpush1.bf16.msra.mxu0 0
        %1734 = vmatprep.mubr.bf16.mxu0 0
        %1735 = vmatmul.mubr.bf16.gmra.mrb[0].mxu0 %v1532
        %v1736 = vpop.f32.mrb[0].mxu0
        %v1737 = vadd.f32 %v1697, %v1736
        %v1738 = vpop.f32.mrb[0].mxu0
        %v1739 = vpop.f32.mrb[0].mxu0
        %v1740 = vpop.f32.mrb[0].mxu0
        %1741 = vdwg.mxu0
        %v1742 = vmax.f32 %v1737, 0.0
        %v1743 = vpack.c.bf16 %v1742, %v1742
        %s1744 = scalar_lea.vmem %s380, 128 [#allocation8]
        %v1745 = vld [vmem:[%s1744] sm:$0xff]
        %v1746 = vld [vmem:[%s1744 + $0x8] sm:$0xff]
        %v1747 = vld [vmem:[%s1744 + $0x10] sm:$0xff]
        %v1748 = vld [vmem:[%s1744 + $0x18] sm:$0xff]
        %v1749 = vld [vmem:[%s1744 + $0x20] sm:$0xff]
        %v1750 = vld [vmem:[%s1744 + $0x28] sm:$0xff]
        %v1751 = vld [vmem:[%s1744 + $0x30] sm:$0xff]
        %v1752 = vld [vmem:[%s1744 + $0x38] sm:$0xff]
        %v1753 = vld [vmem:[%s1744 + $0x40] sm:$0xff]
        %v1754 = vld [vmem:[%s1744 + $0x48] sm:$0xff]
        %v1755 = vld [vmem:[%s1744 + $0x50] sm:$0xff]
        %v1756 = vld [vmem:[%s1744 + $0x58] sm:$0xff]
        %v1757 = vld [vmem:[%s1744 + $0x60] sm:$0xff]
        %v1758 = vld [vmem:[%s1744 + $0x68] sm:$0xff]
        %v1759 = vld [vmem:[%s1744 + $0x70] sm:$0xff]
        %v1760 = vld [vmem:[%s1744 + $0x78] sm:$0xff]
        %v1761 = vunpack.c.l.s8.bf16 %v1745
        %v1762 = vunpack.c.l.s8.bf16 %v1746
        %v1763 = vunpack.c.l.s8.bf16 %v1747
        %v1764 = vunpack.c.l.s8.bf16 %v1748
        %v1765 = vunpack.c.h.s8.bf16 %v1745
        %v1766 = vunpack.c.h.s8.bf16 %v1746
        %v1767 = vunpack.c.h.s8.bf16 %v1747
        %v1768 = vunpack.c.h.s8.bf16 %v1748
        %v1769 = vunpack.c.l.s8.bf16 %v1749
        %v1770 = vunpack.c.l.s8.bf16 %v1750
        %v1771 = vunpack.c.l.s8.bf16 %v1751
        %v1772 = vunpack.c.l.s8.bf16 %v1752
        %v1773 = vunpack.c.h.s8.bf16 %v1749
        %v1774 = vunpack.c.h.s8.bf16 %v1750
        %v1775 = vunpack.c.h.s8.bf16 %v1751
        %v1776 = vunpack.c.h.s8.bf16 %v1752
        %v1777 = vunpack.c.l.s8.bf16 %v1753
        %v1778 = vunpack.c.l.s8.bf16 %v1754
        %v1779 = vunpack.c.l.s8.bf16 %v1755
        %v1780 = vunpack.c.l.s8.bf16 %v1756
        %v1781 = vunpack.c.h.s8.bf16 %v1753
        %v1782 = vunpack.c.h.s8.bf16 %v1754
        %v1783 = vunpack.c.h.s8.bf16 %v1755
        %v1784 = vunpack.c.h.s8.bf16 %v1756
        %v1785 = vunpack.c.l.s8.bf16 %v1757
        %v1786 = vunpack.c.l.s8.bf16 %v1758
        %v1787 = vunpack.c.l.s8.bf16 %v1759
        %v1788 = vunpack.c.l.s8.bf16 %v1760
        %v1789 = vunpack.c.h.s8.bf16 %v1757
        %v1790 = vunpack.c.h.s8.bf16 %v1758
        %v1791 = vunpack.c.h.s8.bf16 %v1759
        %v1792 = vunpack.c.h.s8.bf16 %v1760
        %1793 = vmatprep.subr.bf16.mxu0 %v1762
        %1794 = vmatpush1.bf16.msra.mxu0 %v1761
        %1795 = vmatprep.subr.bf16.mxu0 %v1766
        %1796 = vmatpush1.bf16.msra.mxu0 %v1765
        %1797 = vmatprep.subr.bf16.mxu0 %v1770
        %1798 = vmatpush1.bf16.msra.mxu0 %v1769
        %1799 = vmatprep.subr.bf16.mxu0 %v1774
        %1800 = vmatpush1.bf16.msra.mxu0 %v1773
        %1801 = vmatprep.subr.bf16.mxu0 %v1778
        %1802 = vmatpush1.bf16.msra.mxu0 %v1777
        %1803 = vmatprep.subr.bf16.mxu0 %v1782
        %1804 = vmatpush1.bf16.msra.mxu0 %v1781
        %1805 = vmatprep.subr.bf16.mxu0 %v1786
        %1806 = vmatpush1.bf16.msra.mxu0 %v1785
        %1807 = vmatprep.subr.bf16.mxu0 %v1790
        %1808 = vmatpush1.bf16.msra.mxu0 %v1789
        %1809 = vmatprep.subr.bf16.mxu0 0
        %1810 = vmatpush1.bf16.msra.mxu0 0
        %1811 = vmatprep.subr.bf16.mxu0 0
        %1812 = vmatpush1.bf16.msra.mxu0 0
        %1813 = vmatprep.subr.bf16.mxu0 0
        %1814 = vmatpush1.bf16.msra.mxu0 0
        %1815 = vmatprep.subr.bf16.mxu0 0
        %1816 = vmatpush1.bf16.msra.mxu0 0
        %1817 = vmatprep.subr.bf16.mxu0 0
        %1818 = vmatpush1.bf16.msra.mxu0 0
        %1819 = vmatprep.subr.bf16.mxu0 0
        %1820 = vmatpush1.bf16.msra.mxu0 0
        %1821 = vmatprep.subr.bf16.mxu0 0
        %1822 = vmatpush1.bf16.msra.mxu0 0
        %1823 = vmatprep.subr.bf16.mxu0 0
        %1824 = vmatpush1.bf16.msra.mxu0 0
        %1825 = vmatprep.mubr.bf16.mxu0 0
        %1826 = vmatmul.mubr.bf16.gmra.mrb[0].mxu0 %v1743
        %v1827 = vpop.f32.mrb[0].mxu0
        %v1828 = vadd.f32 0.0, %v1827
        %v1829 = vpop.f32.mrb[0].mxu0
        %v1830 = vadd.f32 0.0, %v1829
        %v1831 = vpop.f32.mrb[0].mxu0
        %v1832 = vpop.f32.mrb[0].mxu0
        %1833 = vdwg.mxu0
        %1834 = vmatprep.subr.bf16.mxu0 %v1764
        %1835 = vmatpush1.bf16.msra.mxu0 %v1763
        %1836 = vmatprep.subr.bf16.mxu0 %v1768
        %1837 = vmatpush1.bf16.msra.mxu0 %v1767
        %1838 = vmatprep.subr.bf16.mxu0 %v1772
        %1839 = vmatpush1.bf16.msra.mxu0 %v1771
        %1840 = vmatprep.subr.bf16.mxu0 %v1776
        %1841 = vmatpush1.bf16.msra.mxu0 %v1775
        %1842 = vmatprep.subr.bf16.mxu0 %v1780
        %1843 = vmatpush1.bf16.msra.mxu0 %v1779
        %1844 = vmatprep.subr.bf16.mxu0 %v1784
        %1845 = vmatpush1.bf16.msra.mxu0 %v1783
        %1846 = vmatprep.subr.bf16.mxu0 %v1788
        %1847 = vmatpush1.bf16.msra.mxu0 %v1787
        %1848 = vmatprep.subr.bf16.mxu0 %v1792
        %1849 = vmatpush1.bf16.msra.mxu0 %v1791
        %1850 = vmatprep.subr.bf16.mxu0 0
        %1851 = vmatpush1.bf16.msra.mxu0 0
        %1852 = vmatprep.subr.bf16.mxu0 0
        %1853 = vmatpush1.bf16.msra.mxu0 0
        %1854 = vmatprep.subr.bf16.mxu0 0
        %1855 = vmatpush1.bf16.msra.mxu0 0
        %1856 = vmatprep.subr.bf16.mxu0 0
        %1857 = vmatpush1.bf16.msra.mxu0 0
        %1858 = vmatprep.subr.bf16.mxu0 0
        %1859 = vmatpush1.bf16.msra.mxu0 0
        %1860 = vmatprep.subr.bf16.mxu0 0
        %1861 = vmatpush1.bf16.msra.mxu0 0
        %1862 = vmatprep.subr.bf16.mxu0 0
        %1863 = vmatpush1.bf16.msra.mxu0 0
        %1864 = vmatprep.subr.bf16.mxu0 0
        %1865 = vmatpush1.bf16.msra.mxu0 0
        %1866 = vmatprep.mubr.bf16.mxu0 0
        %1867 = vmatmul.mubr.bf16.gmra.mrb[0].mxu0 %v1743
        %v1868 = vpop.f32.mrb[0].mxu0
        %v1869 = vadd.f32 0.0, %v1868
        %v1870 = vpop.f32.mrb[0].mxu0
        %v1871 = vadd.f32 0.0, %v1870
        %v1872 = vpop.f32.mrb[0].mxu0
        %v1873 = vpop.f32.mrb[0].mxu0
        %1874 = vdwg.mxu0
        %v1879 = vcombine.low %v1828, %v1830
        %v1880 = vcombine.low %v1869, %v1871
        %v1882 = vunpack.c.l.s4 1983009808
        %v1883 = vunpack.c.0.s8 %v1882
        %v1884 = vlaneseq
        %v1885 = vshrl.u32 %v1884, 7
        %v1886 = vsub.s32 %v1883, %v1885
        %v1887 = vrot.slane %v1879, %v1886
        %v1889 = vunpack.c.l.s4 1983009808
        %v1890 = vunpack.c.0.s8 %v1889
        %v1891 = vlaneseq
        %v1892 = vshrl.u32 %v1891, 7
        %v1893 = vsub.s32 %v1890, %v1892
        %v1894 = vrot.slane %v1880, %v1893
        %v1895 = vcombine.low %v1887, %v1894
        %v1897 = vadd.f32 %v1464, %v1895
        %s1898 = scalar_lea.vmem %s441, 18
        %v1899 = vld [vmem:[%s1898] sm:$0xff]
        %v1900 = vld [vmem:[%s1898 + $0x8] sm:$0x1]
        %v1903 = vcombine.high %v1899, %v1899
        %v1905 = vunpack.c.l.s4 1966171168
        %v1906 = vunpack.c.0.s8 %v1905
        %v1907 = vlaneseq
        %v1908 = vshrl.u32 %v1907, 7
        %v1909 = vsub.s32 %v1906, %v1908
        %v1910 = vrot.slane %v1899, %v1909
        %v1912 = vunpack.c.l.s4 1966171168
        %v1913 = vunpack.c.0.s8 %v1912
        %v1914 = vlaneseq
        %v1915 = vshrl.u32 %v1914, 7
        %v1916 = vsub.s32 %v1913, %v1915
        %v1917 = vrot.slane %v1903, %v1916
        %v1918 = vcombine.high %v1910, %v1910
        %v1919 = vcombine.high %v1917, %v1917
        %v1921 = vunpack.c.l.s4 1966171168
        %v1922 = vunpack.c.0.s8 %v1921
        %v1923 = vlaneseq
        %v1924 = vshrl.u32 %v1923, 7
        %v1925 = vsub.s32 %v1922, %v1924
        %v1926 = vrot.slane %v1910, %v1925
        %v1928 = vunpack.c.l.s4 1966171168
        %v1929 = vunpack.c.0.s8 %v1928
        %v1930 = vlaneseq
        %v1931 = vshrl.u32 %v1930, 7
        %v1932 = vsub.s32 %v1929, %v1931
        %v1933 = vrot.slane %v1917, %v1932
        %v1935 = vunpack.c.l.s4 1966171168
        %v1936 = vunpack.c.0.s8 %v1935
        %v1937 = vlaneseq
        %v1938 = vshrl.u32 %v1937, 7
        %v1939 = vsub.s32 %v1936, %v1938
        %v1940 = vrot.slane %v1918, %v1939
        %v1942 = vunpack.c.l.s4 1966171168
        %v1943 = vunpack.c.0.s8 %v1942
        %v1944 = vlaneseq
        %v1945 = vshrl.u32 %v1944, 7
        %v1946 = vsub.s32 %v1943, %v1945
        %v1947 = vrot.slane %v1919, %v1946
        %v1948 = vcombine.high %v1926, %v1926
        %v1949 = vcombine.high %v1933, %v1933
        %v1950 = vcombine.high %v1940, %v1940
        %v1951 = vcombine.high %v1947, %v1947
        %v1953 = vunpack.c.l.s4 1966171168
        %v1954 = vunpack.c.0.s8 %v1953
        %v1955 = vlaneseq
        %v1956 = vshrl.u32 %v1955, 7
        %v1957 = vsub.s32 %v1954, %v1956
        %v1958 = vrot.slane %v1900, %v1957
        %v1960 = vunpack.c.l.s4 1966171168
        %v1961 = vunpack.c.0.s8 %v1960
        %v1962 = vlaneseq
        %v1963 = vshrl.u32 %v1962, 7
        %v1964 = vsub.s32 %v1961, %v1963
        %v1965 = vrot.slane %v1958, %v1964
        %1975 = vmatprep.subr.bf16.mxu0 0
        %1976 = vmatpush1.bf16.msra.mxu0 %v966
        %1977 = vmatprep.subr.bf16.mxu0 0
        %1978 = vmatpush1.bf16.msra.mxu0 %v967
        %1979 = vmatprep.subr.bf16.mxu0 0
        %1980 = vmatpush1.bf16.msra.mxu0 %v968
        %1981 = vmatprep.subr.bf16.mxu0 0
        %1982 = vmatpush1.bf16.msra.mxu0 %v969
        %1983 = vmatprep.subr.bf16.mxu0 0
        %1984 = vmatpush1.bf16.msra.mxu0 %v970
        %1985 = vmatprep.subr.bf16.mxu0 0
        %1986 = vmatpush1.bf16.msra.mxu0 %v971
        %1987 = vmatprep.subr.bf16.mxu0 0
        %1988 = vmatpush1.bf16.msra.mxu0 %v972
        %1989 = vmatprep.subr.bf16.mxu0 0
        %1990 = vmatpush1.bf16.msra.mxu0 %v973
        %1991 = vmatprep.subr.bf16.mxu0 0
        %1992 = vmatpush1.bf16.msra.mxu0 %v974
        %1993 = vmatprep.subr.bf16.mxu0 0
        %1994 = vmatpush1.bf16.msra.mxu0 %v975
        %1995 = vmatprep.subr.bf16.mxu0 0
        %1996 = vmatpush1.bf16.msra.mxu0 %v976
        %1997 = vmatprep.subr.bf16.mxu0 0
        %1998 = vmatpush1.bf16.msra.mxu0 %v977
        %1999 = vmatprep.subr.bf16.mxu0 0
        %2000 = vmatpush1.bf16.msra.mxu0 %v978
        %2001 = vmatprep.subr.bf16.mxu0 0
        %2002 = vmatpush1.bf16.msra.mxu0 %v979
        %2003 = vmatprep.subr.bf16.mxu0 0
        %2004 = vmatpush1.bf16.msra.mxu0 %v980
        %2005 = vmatprep.subr.bf16.mxu0 0
        %2006 = vmatpush1.bf16.msra.mxu0 %v981
        %2007 = vmatprep.mubr.bf16.mxu0 %v1940
        %2008 = vmatmul.mubr.bf16.gmra.mrb[0].mxu0 %v1926
        %v2009 = vpop.f32.mrb[0].mxu0
        %v2010 = vadd.f32 %v602, %v2009
        %v2011 = vpop.f32.mrb[0].mxu0
        %v2012 = vpop.f32.mrb[0].mxu0
        %v2013 = vpop.f32.mrb[0].mxu0
        %2014 = vdwg.mxu0
        %2015 = vmatprep.subr.bf16.mxu0 0
        %2016 = vmatpush1.bf16.msra.mxu0 %v982
        %2017 = vmatprep.subr.bf16.mxu0 0
        %2018 = vmatpush1.bf16.msra.mxu0 %v983
        %2019 = vmatprep.subr.bf16.mxu0 0
        %2020 = vmatpush1.bf16.msra.mxu0 %v984
        %2021 = vmatprep.subr.bf16.mxu0 0
        %2022 = vmatpush1.bf16.msra.mxu0 %v985
        %2023 = vmatprep.subr.bf16.mxu0 0
        %2024 = vmatpush1.bf16.msra.mxu0 %v986
        %2025 = vmatprep.subr.bf16.mxu0 0
        %2026 = vmatpush1.bf16.msra.mxu0 %v987
        %2027 = vmatprep.subr.bf16.mxu0 0
        %2028 = vmatpush1.bf16.msra.mxu0 %v988
        %2029 = vmatprep.subr.bf16.mxu0 0
        %2030 = vmatpush1.bf16.msra.mxu0 %v989
        %2031 = vmatprep.subr.bf16.mxu0 0
        %2032 = vmatpush1.bf16.msra.mxu0 %v990
        %2033 = vmatprep.subr.bf16.mxu0 0
        %2034 = vmatpush1.bf16.msra.mxu0 %v991
        %2035 = vmatprep.subr.bf16.mxu0 0
        %2036 = vmatpush1.bf16.msra.mxu0 %v992
        %2037 = vmatprep.subr.bf16.mxu0 0
        %2038 = vmatpush1.bf16.msra.mxu0 %v993
        %2039 = vmatprep.subr.bf16.mxu0 0
        %2040 = vmatpush1.bf16.msra.mxu0 %v994
        %2041 = vmatprep.subr.bf16.mxu0 0
        %2042 = vmatpush1.bf16.msra.mxu0 %v995
        %2043 = vmatprep.subr.bf16.mxu0 0
        %2044 = vmatpush1.bf16.msra.mxu0 %v996
        %2045 = vmatprep.subr.bf16.mxu0 0
        %2046 = vmatpush1.bf16.msra.mxu0 %v997
        %2047 = vmatprep.mubr.bf16.mxu0 %v1950
        %2048 = vmatmul.mubr.bf16.gmra.mrb[0].mxu0 %v1948
        %v2049 = vpop.f32.mrb[0].mxu0
        %v2050 = vadd.f32 %v2010, %v2049
        %v2051 = vpop.f32.mrb[0].mxu0
        %v2052 = vpop.f32.mrb[0].mxu0
        %v2053 = vpop.f32.mrb[0].mxu0
        %2054 = vdwg.mxu0
        %2055 = vmatprep.subr.bf16.mxu0 0
        %2056 = vmatpush1.bf16.msra.mxu0 %v998
        %2057 = vmatprep.subr.bf16.mxu0 0
        %2058 = vmatpush1.bf16.msra.mxu0 %v999
        %2059 = vmatprep.subr.bf16.mxu0 0
        %2060 = vmatpush1.bf16.msra.mxu0 %v1000
        %2061 = vmatprep.subr.bf16.mxu0 0
        %2062 = vmatpush1.bf16.msra.mxu0 %v1001
        %2063 = vmatprep.subr.bf16.mxu0 0
        %2064 = vmatpush1.bf16.msra.mxu0 %v1002
        %2065 = vmatprep.subr.bf16.mxu0 0
        %2066 = vmatpush1.bf16.msra.mxu0 %v1003
        %2067 = vmatprep.subr.bf16.mxu0 0
        %2068 = vmatpush1.bf16.msra.mxu0 %v1004
        %2069 = vmatprep.subr.bf16.mxu0 0
        %2070 = vmatpush1.bf16.msra.mxu0 %v1005
        %2071 = vmatprep.subr.bf16.mxu0 0
        %2072 = vmatpush1.bf16.msra.mxu0 %v1006
        %2073 = vmatprep.subr.bf16.mxu0 0
        %2074 = vmatpush1.bf16.msra.mxu0 %v1007
        %2075 = vmatprep.subr.bf16.mxu0 0
        %2076 = vmatpush1.bf16.msra.mxu0 %v1008
        %2077 = vmatprep.subr.bf16.mxu0 0
        %2078 = vmatpush1.bf16.msra.mxu0 %v1009
        %2079 = vmatprep.subr.bf16.mxu0 0
        %2080 = vmatpush1.bf16.msra.mxu0 %v1010
        %2081 = vmatprep.subr.bf16.mxu0 0
        %2082 = vmatpush1.bf16.msra.mxu0 %v1011
        %2083 = vmatprep.subr.bf16.mxu0 0
        %2084 = vmatpush1.bf16.msra.mxu0 %v1012
        %2085 = vmatprep.subr.bf16.mxu0 0
        %2086 = vmatpush1.bf16.msra.mxu0 %v1013
        %2087 = vmatprep.mubr.bf16.mxu0 %v1947
        %2088 = vmatmul.mubr.bf16.gmra.mrb[0].mxu0 %v1933
        %v2089 = vpop.f32.mrb[0].mxu0
        %v2090 = vadd.f32 %v2050, %v2089
        %v2091 = vpop.f32.mrb[0].mxu0
        %v2092 = vpop.f32.mrb[0].mxu0
        %v2093 = vpop.f32.mrb[0].mxu0
        %2094 = vdwg.mxu0
        %2095 = vmatprep.subr.bf16.mxu0 0
        %2096 = vmatpush1.bf16.msra.mxu0 %v1014
        %2097 = vmatprep.subr.bf16.mxu0 0
        %2098 = vmatpush1.bf16.msra.mxu0 %v1015
        %2099 = vmatprep.subr.bf16.mxu0 0
        %2100 = vmatpush1.bf16.msra.mxu0 %v1016
        %2101 = vmatprep.subr.bf16.mxu0 0
        %2102 = vmatpush1.bf16.msra.mxu0 %v1017
        %2103 = vmatprep.subr.bf16.mxu0 0
        %2104 = vmatpush1.bf16.msra.mxu0 %v1018
        %2105 = vmatprep.subr.bf16.mxu0 0
        %2106 = vmatpush1.bf16.msra.mxu0 %v1019
        %2107 = vmatprep.subr.bf16.mxu0 0
        %2108 = vmatpush1.bf16.msra.mxu0 %v1020
        %2109 = vmatprep.subr.bf16.mxu0 0
        %2110 = vmatpush1.bf16.msra.mxu0 %v1021
        %2111 = vmatprep.subr.bf16.mxu0 0
        %2112 = vmatpush1.bf16.msra.mxu0 %v1022
        %2113 = vmatprep.subr.bf16.mxu0 0
        %2114 = vmatpush1.bf16.msra.mxu0 %v1023
        %2115 = vmatprep.subr.bf16.mxu0 0
        %2116 = vmatpush1.bf16.msra.mxu0 %v1024
        %2117 = vmatprep.subr.bf16.mxu0 0
        %2118 = vmatpush1.bf16.msra.mxu0 %v1025
        %2119 = vmatprep.subr.bf16.mxu0 0
        %2120 = vmatpush1.bf16.msra.mxu0 %v1026
        %2121 = vmatprep.subr.bf16.mxu0 0
        %2122 = vmatpush1.bf16.msra.mxu0 %v1027
        %2123 = vmatprep.subr.bf16.mxu0 0
        %2124 = vmatpush1.bf16.msra.mxu0 %v1028
        %2125 = vmatprep.subr.bf16.mxu0 0
        %2126 = vmatpush1.bf16.msra.mxu0 %v1029
        %2127 = vmatprep.mubr.bf16.mxu0 %v1951
        %2128 = vmatmul.mubr.bf16.gmra.mrb[0].mxu0 %v1949
        %v2129 = vpop.f32.mrb[0].mxu0
        %v2130 = vadd.f32 %v2090, %v2129
        %v2131 = vpop.f32.mrb[0].mxu0
        %v2132 = vpop.f32.mrb[0].mxu0
        %v2133 = vpop.f32.mrb[0].mxu0
        %2134 = vdwg.mxu0
        %2135 = vmatprep.subr.bf16.mxu0 0
        %2136 = vmatpush1.bf16.msra.mxu0 %v1030
        %2137 = vmatprep.subr.bf16.mxu0 0
        %2138 = vmatpush1.bf16.msra.mxu0 %v1031
        %2139 = vmatprep.subr.bf16.mxu0 0
        %2140 = vmatpush1.bf16.msra.mxu0 %v1032
        %2141 = vmatprep.subr.bf16.mxu0 0
        %2142 = vmatpush1.bf16.msra.mxu0 %v1033
        %2143 = vmatprep.subr.bf16.mxu0 0
        %2144 = vmatpush1.bf16.msra.mxu0 %v1034
        %2145 = vmatprep.subr.bf16.mxu0 0
        %2146 = vmatpush1.bf16.msra.mxu0 %v1035
        %2147 = vmatprep.subr.bf16.mxu0 0
        %2148 = vmatpush1.bf16.msra.mxu0 %v1036
        %2149 = vmatprep.subr.bf16.mxu0 0
        %2150 = vmatpush1.bf16.msra.mxu0 %v1037
        %2151 = vmatprep.subr.bf16.mxu0 0
        %2152 = vmatpush1.bf16.msra.mxu0 0
        %2153 = vmatprep.subr.bf16.mxu0 0
        %2154 = vmatpush1.bf16.msra.mxu0 0
        %2155 = vmatprep.subr.bf16.mxu0 0
        %2156 = vmatpush1.bf16.msra.mxu0 0
        %2157 = vmatprep.subr.bf16.mxu0 0
        %2158 = vmatpush1.bf16.msra.mxu0 0
        %2159 = vmatprep.subr.bf16.mxu0 0
        %2160 = vmatpush1.bf16.msra.mxu0 0
        %2161 = vmatprep.subr.bf16.mxu0 0
        %2162 = vmatpush1.bf16.msra.mxu0 0
        %2163 = vmatprep.subr.bf16.mxu0 0
        %2164 = vmatpush1.bf16.msra.mxu0 0
        %2165 = vmatprep.subr.bf16.mxu0 0
        %2166 = vmatpush1.bf16.msra.mxu0 0
        %2167 = vmatprep.mubr.bf16.mxu0 0
        %2168 = vmatmul.mubr.bf16.gmra.mrb[0].mxu0 %v1965
        %v2169 = vpop.f32.mrb[0].mxu0
        %v2170 = vadd.f32 %v2130, %v2169
        %v2171 = vpop.f32.mrb[0].mxu0
        %v2172 = vpop.f32.mrb[0].mxu0
        %v2173 = vpop.f32.mrb[0].mxu0
        %2174 = vdwg.mxu0
        %v2175 = vmax.f32 %v2170, 0.0
        %v2176 = vpack.c.bf16 %v2175, %v2175
        %s2177 = scalar_lea.vmem %s380, 256 [#allocation8]
        %v2178 = vld [vmem:[%s2177] sm:$0xff]
        %v2179 = vld [vmem:[%s2177 + $0x8] sm:$0xff]
        %v2180 = vld [vmem:[%s2177 + $0x10] sm:$0xff]
        %v2181 = vld [vmem:[%s2177 + $0x18] sm:$0xff]
        %v2182 = vld [vmem:[%s2177 + $0x20] sm:$0xff]
        %v2183 = vld [vmem:[%s2177 + $0x28] sm:$0xff]
        %v2184 = vld [vmem:[%s2177 + $0x30] sm:$0xff]
        %v2185 = vld [vmem:[%s2177 + $0x38] sm:$0xff]
        %v2186 = vld [vmem:[%s2177 + $0x40] sm:$0xff]
        %v2187 = vld [vmem:[%s2177 + $0x48] sm:$0xff]
        %v2188 = vld [vmem:[%s2177 + $0x50] sm:$0xff]
        %v2189 = vld [vmem:[%s2177 + $0x58] sm:$0xff]
        %v2190 = vld [vmem:[%s2177 + $0x60] sm:$0xff]
        %v2191 = vld [vmem:[%s2177 + $0x68] sm:$0xff]
        %v2192 = vld [vmem:[%s2177 + $0x70] sm:$0xff]
        %v2193 = vld [vmem:[%s2177 + $0x78] sm:$0xff]
        %v2194 = vunpack.c.l.s8.bf16 %v2178
        %v2195 = vunpack.c.l.s8.bf16 %v2179
        %v2196 = vunpack.c.l.s8.bf16 %v2180
        %v2197 = vunpack.c.l.s8.bf16 %v2181
        %v2198 = vunpack.c.h.s8.bf16 %v2178
        %v2199 = vunpack.c.h.s8.bf16 %v2179
        %v2200 = vunpack.c.h.s8.bf16 %v2180
        %v2201 = vunpack.c.h.s8.bf16 %v2181
        %v2202 = vunpack.c.l.s8.bf16 %v2182
        %v2203 = vunpack.c.l.s8.bf16 %v2183
        %v2204 = vunpack.c.l.s8.bf16 %v2184
        %v2205 = vunpack.c.l.s8.bf16 %v2185
        %v2206 = vunpack.c.h.s8.bf16 %v2182
        %v2207 = vunpack.c.h.s8.bf16 %v2183
        %v2208 = vunpack.c.h.s8.bf16 %v2184
        %v2209 = vunpack.c.h.s8.bf16 %v2185
        %v2210 = vunpack.c.l.s8.bf16 %v2186
        %v2211 = vunpack.c.l.s8.bf16 %v2187
        %v2212 = vunpack.c.l.s8.bf16 %v2188
        %v2213 = vunpack.c.l.s8.bf16 %v2189
        %v2214 = vunpack.c.h.s8.bf16 %v2186
        %v2215 = vunpack.c.h.s8.bf16 %v2187
        %v2216 = vunpack.c.h.s8.bf16 %v2188
        %v2217 = vunpack.c.h.s8.bf16 %v2189
        %v2218 = vunpack.c.l.s8.bf16 %v2190
        %v2219 = vunpack.c.l.s8.bf16 %v2191
        %v2220 = vunpack.c.l.s8.bf16 %v2192
        %v2221 = vunpack.c.l.s8.bf16 %v2193
        %v2222 = vunpack.c.h.s8.bf16 %v2190
        %v2223 = vunpack.c.h.s8.bf16 %v2191
        %v2224 = vunpack.c.h.s8.bf16 %v2192
        %v2225 = vunpack.c.h.s8.bf16 %v2193
        %2226 = vmatprep.subr.bf16.mxu0 %v2195
        %2227 = vmatpush1.bf16.msra.mxu0 %v2194
        %2228 = vmatprep.subr.bf16.mxu0 %v2199
        %2229 = vmatpush1.bf16.msra.mxu0 %v2198
        %2230 = vmatprep.subr.bf16.mxu0 %v2203
        %2231 = vmatpush1.bf16.msra.mxu0 %v2202
        %2232 = vmatprep.subr.bf16.mxu0 %v2207
        %2233 = vmatpush1.bf16.msra.mxu0 %v2206
        %2234 = vmatprep.subr.bf16.mxu0 %v2211
        %2235 = vmatpush1.bf16.msra.mxu0 %v2210
        %2236 = vmatprep.subr.bf16.mxu0 %v2215
        %2237 = vmatpush1.bf16.msra.mxu0 %v2214
        %2238 = vmatprep.subr.bf16.mxu0 %v2219
        %2239 = vmatpush1.bf16.msra.mxu0 %v2218
        %2240 = vmatprep.subr.bf16.mxu0 %v2223
        %2241 = vmatpush1.bf16.msra.mxu0 %v2222
        %2242 = vmatprep.subr.bf16.mxu0 0
        %2243 = vmatpush1.bf16.msra.mxu0 0
        %2244 = vmatprep.subr.bf16.mxu0 0
        %2245 = vmatpush1.bf16.msra.mxu0 0
        %2246 = vmatprep.subr.bf16.mxu0 0
        %2247 = vmatpush1.bf16.msra.mxu0 0
        %2248 = vmatprep.subr.bf16.mxu0 0
        %2249 = vmatpush1.bf16.msra.mxu0 0
        %2250 = vmatprep.subr.bf16.mxu0 0
        %2251 = vmatpush1.bf16.msra.mxu0 0
        %2252 = vmatprep.subr.bf16.mxu0 0
        %2253 = vmatpush1.bf16.msra.mxu0 0
        %2254 = vmatprep.subr.bf16.mxu0 0
        %2255 = vmatpush1.bf16.msra.mxu0 0
        %2256 = vmatprep.subr.bf16.mxu0 0
        %2257 = vmatpush1.bf16.msra.mxu0 0
        %2258 = vmatprep.mubr.bf16.mxu0 0
        %2259 = vmatmul.mubr.bf16.gmra.mrb[0].mxu0 %v2176
        %v2260 = vpop.f32.mrb[0].mxu0
        %v2261 = vadd.f32 0.0, %v2260
        %v2262 = vpop.f32.mrb[0].mxu0
        %v2263 = vadd.f32 0.0, %v2262
        %v2264 = vpop.f32.mrb[0].mxu0
        %v2265 = vpop.f32.mrb[0].mxu0
        %2266 = vdwg.mxu0
        %2267 = vmatprep.subr.bf16.mxu0 %v2197
        %2268 = vmatpush1.bf16.msra.mxu0 %v2196
        %2269 = vmatprep.subr.bf16.mxu0 %v2201
        %2270 = vmatpush1.bf16.msra.mxu0 %v2200
        %2271 = vmatprep.subr.bf16.mxu0 %v2205
        %2272 = vmatpush1.bf16.msra.mxu0 %v2204
        %2273 = vmatprep.subr.bf16.mxu0 %v2209
        %2274 = vmatpush1.bf16.msra.mxu0 %v2208
        %2275 = vmatprep.subr.bf16.mxu0 %v2213
        %2276 = vmatpush1.bf16.msra.mxu0 %v2212
        %2277 = vmatprep.subr.bf16.mxu0 %v2217
        %2278 = vmatpush1.bf16.msra.mxu0 %v2216
        %2279 = vmatprep.subr.bf16.mxu0 %v2221
        %2280 = vmatpush1.bf16.msra.mxu0 %v2220
        %2281 = vmatprep.subr.bf16.mxu0 %v2225
        %2282 = vmatpush1.bf16.msra.mxu0 %v2224
        %2283 = vmatprep.subr.bf16.mxu0 0
        %2284 = vmatpush1.bf16.msra.mxu0 0
        %2285 = vmatprep.subr.bf16.mxu0 0
        %2286 = vmatpush1.bf16.msra.mxu0 0
        %2287 = vmatprep.subr.bf16.mxu0 0
        %2288 = vmatpush1.bf16.msra.mxu0 0
        %2289 = vmatprep.subr.bf16.mxu0 0
        %2290 = vmatpush1.bf16.msra.mxu0 0
        %2291 = vmatprep.subr.bf16.mxu0 0
        %2292 = vmatpush1.bf16.msra.mxu0 0
        %2293 = vmatprep.subr.bf16.mxu0 0
        %2294 = vmatpush1.bf16.msra.mxu0 0
        %2295 = vmatprep.subr.bf16.mxu0 0
        %2296 = vmatpush1.bf16.msra.mxu0 0
        %2297 = vmatprep.subr.bf16.mxu0 0
        %2298 = vmatpush1.bf16.msra.mxu0 0
        %2299 = vmatprep.mubr.bf16.mxu0 0
        %2300 = vmatmul.mubr.bf16.gmra.mrb[0].mxu0 %v2176
        %v2301 = vpop.f32.mrb[0].mxu0
        %v2302 = vadd.f32 0.0, %v2301
        %v2303 = vpop.f32.mrb[0].mxu0
        %v2304 = vadd.f32 0.0, %v2303
        %v2305 = vpop.f32.mrb[0].mxu0
        %v2306 = vpop.f32.mrb[0].mxu0
        %2307 = vdwg.mxu0
        %v2312 = vcombine.low %v2261, %v2263
        %v2313 = vcombine.low %v2302, %v2304
        %v2315 = vunpack.c.l.s4 1983009808
        %v2316 = vunpack.c.0.s8 %v2315
        %v2317 = vlaneseq
        %v2318 = vshrl.u32 %v2317, 7
        %v2319 = vsub.s32 %v2316, %v2318
        %v2320 = vrot.slane %v2312, %v2319
        %v2322 = vunpack.c.l.s4 1983009808
        %v2323 = vunpack.c.0.s8 %v2322
        %v2324 = vlaneseq
        %v2325 = vshrl.u32 %v2324, 7
        %v2326 = vsub.s32 %v2323, %v2325
        %v2327 = vrot.slane %v2313, %v2326
        %v2328 = vcombine.low %v2320, %v2327
        %v2330 = vadd.f32 %v1897, %v2328
        %s2331 = scalar_lea.vmem %s441, 27
        %v2332 = vld [vmem:[%s2331] sm:$0xff]
        %v2333 = vld [vmem:[%s2331 + $0x8] sm:$0x1]
        %v2336 = vcombine.high %v2332, %v2332
        %v2338 = vunpack.c.l.s4 1966171168
        %v2339 = vunpack.c.0.s8 %v2338
        %v2340 = vlaneseq
        %v2341 = vshrl.u32 %v2340, 7
        %v2342 = vsub.s32 %v2339, %v2341
        %v2343 = vrot.slane %v2332, %v2342
        %v2345 = vunpack.c.l.s4 1966171168
        %v2346 = vunpack.c.0.s8 %v2345
        %v2347 = vlaneseq
        %v2348 = vshrl.u32 %v2347, 7
        %v2349 = vsub.s32 %v2346, %v2348
        %v2350 = vrot.slane %v2336, %v2349
        %v2351 = vcombine.high %v2343, %v2343
        %v2352 = vcombine.high %v2350, %v2350
        %v2354 = vunpack.c.l.s4 1966171168
        %v2355 = vunpack.c.0.s8 %v2354
        %v2356 = vlaneseq
        %v2357 = vshrl.u32 %v2356, 7
        %v2358 = vsub.s32 %v2355, %v2357
        %v2359 = vrot.slane %v2343, %v2358
        %v2361 = vunpack.c.l.s4 1966171168
        %v2362 = vunpack.c.0.s8 %v2361
        %v2363 = vlaneseq
        %v2364 = vshrl.u32 %v2363, 7
        %v2365 = vsub.s32 %v2362, %v2364
        %v2366 = vrot.slane %v2350, %v2365
        %v2368 = vunpack.c.l.s4 1966171168
        %v2369 = vunpack.c.0.s8 %v2368
        %v2370 = vlaneseq
        %v2371 = vshrl.u32 %v2370, 7
        %v2372 = vsub.s32 %v2369, %v2371
        %v2373 = vrot.slane %v2351, %v2372
        %v2375 = vunpack.c.l.s4 1966171168
        %v2376 = vunpack.c.0.s8 %v2375
        %v2377 = vlaneseq
        %v2378 = vshrl.u32 %v2377, 7
        %v2379 = vsub.s32 %v2376, %v2378
        %v2380 = vrot.slane %v2352, %v2379
        %v2381 = vcombine.high %v2359, %v2359
        %v2382 = vcombine.high %v2366, %v2366
        %v2383 = vcombine.high %v2373, %v2373
        %v2384 = vcombine.high %v2380, %v2380
        %v2386 = vunpack.c.l.s4 1966171168
        %v2387 = vunpack.c.0.s8 %v2386
        %v2388 = vlaneseq
        %v2389 = vshrl.u32 %v2388, 7
        %v2390 = vsub.s32 %v2387, %v2389
        %v2391 = vrot.slane %v2333, %v2390
        %v2393 = vunpack.c.l.s4 1966171168
        %v2394 = vunpack.c.0.s8 %v2393
        %v2395 = vlaneseq
        %v2396 = vshrl.u32 %v2395, 7
        %v2397 = vsub.s32 %v2394, %v2396
        %v2398 = vrot.slane %v2391, %v2397
        %2408 = vmatprep.subr.bf16.mxu0 0
        %2409 = vmatpush1.bf16.msra.mxu0 %v966
        %2410 = vmatprep.subr.bf16.mxu0 0
        %2411 = vmatpush1.bf16.msra.mxu0 %v967
        %2412 = vmatprep.subr.bf16.mxu0 0
        %2413 = vmatpush1.bf16.msra.mxu0 %v968
        %2414 = vmatprep.subr.bf16.mxu0 0
        %2415 = vmatpush1.bf16.msra.mxu0 %v969
        %2416 = vmatprep.subr.bf16.mxu0 0
        %2417 = vmatpush1.bf16.msra.mxu0 %v970
        %2418 = vmatprep.subr.bf16.mxu0 0
        %2419 = vmatpush1.bf16.msra.mxu0 %v971
        %2420 = vmatprep.subr.bf16.mxu0 0
        %2421 = vmatpush1.bf16.msra.mxu0 %v972
        %2422 = vmatprep.subr.bf16.mxu0 0
        %2423 = vmatpush1.bf16.msra.mxu0 %v973
        %2424 = vmatprep.subr.bf16.mxu0 0
        %2425 = vmatpush1.bf16.msra.mxu0 %v974
        %2426 = vmatprep.subr.bf16.mxu0 0
        %2427 = vmatpush1.bf16.msra.mxu0 %v975
        %2428 = vmatprep.subr.bf16.mxu0 0
        %2429 = vmatpush1.bf16.msra.mxu0 %v976
        %2430 = vmatprep.subr.bf16.mxu0 0
        %2431 = vmatpush1.bf16.msra.mxu0 %v977
        %2432 = vmatprep.subr.bf16.mxu0 0
        %2433 = vmatpush1.bf16.msra.mxu0 %v978
        %2434 = vmatprep.subr.bf16.mxu0 0
        %2435 = vmatpush1.bf16.msra.mxu0 %v979
        %2436 = vmatprep.subr.bf16.mxu0 0
        %2437 = vmatpush1.bf16.msra.mxu0 %v980
        %2438 = vmatprep.subr.bf16.mxu0 0
        %2439 = vmatpush1.bf16.msra.mxu0 %v981
        %2440 = vmatprep.mubr.bf16.mxu0 %v2373
        %2441 = vmatmul.mubr.bf16.gmra.mrb[0].mxu0 %v2359
        %v2442 = vpop.f32.mrb[0].mxu0
        %v2443 = vadd.f32 %v602, %v2442
        %v2444 = vpop.f32.mrb[0].mxu0
        %v2445 = vpop.f32.mrb[0].mxu0
        %v2446 = vpop.f32.mrb[0].mxu0
        %2447 = vdwg.mxu0
        %2448 = vmatprep.subr.bf16.mxu0 0
        %2449 = vmatpush1.bf16.msra.mxu0 %v982
        %2450 = vmatprep.subr.bf16.mxu0 0
        %2451 = vmatpush1.bf16.msra.mxu0 %v983
        %2452 = vmatprep.subr.bf16.mxu0 0
        %2453 = vmatpush1.bf16.msra.mxu0 %v984
        %2454 = vmatprep.subr.bf16.mxu0 0
        %2455 = vmatpush1.bf16.msra.mxu0 %v985
        %2456 = vmatprep.subr.bf16.mxu0 0
        %2457 = vmatpush1.bf16.msra.mxu0 %v986
        %2458 = vmatprep.subr.bf16.mxu0 0
        %2459 = vmatpush1.bf16.msra.mxu0 %v987
        %2460 = vmatprep.subr.bf16.mxu0 0
        %2461 = vmatpush1.bf16.msra.mxu0 %v988
        %2462 = vmatprep.subr.bf16.mxu0 0
        %2463 = vmatpush1.bf16.msra.mxu0 %v989
        %2464 = vmatprep.subr.bf16.mxu0 0
        %2465 = vmatpush1.bf16.msra.mxu0 %v990
        %2466 = vmatprep.subr.bf16.mxu0 0
        %2467 = vmatpush1.bf16.msra.mxu0 %v991
        %2468 = vmatprep.subr.bf16.mxu0 0
        %2469 = vmatpush1.bf16.msra.mxu0 %v992
        %2470 = vmatprep.subr.bf16.mxu0 0
        %2471 = vmatpush1.bf16.msra.mxu0 %v993
        %2472 = vmatprep.subr.bf16.mxu0 0
        %2473 = vmatpush1.bf16.msra.mxu0 %v994
        %2474 = vmatprep.subr.bf16.mxu0 0
        %2475 = vmatpush1.bf16.msra.mxu0 %v995
        %2476 = vmatprep.subr.bf16.mxu0 0
        %2477 = vmatpush1.bf16.msra.mxu0 %v996
        %2478 = vmatprep.subr.bf16.mxu0 0
        %2479 = vmatpush1.bf16.msra.mxu0 %v997
        %2480 = vmatprep.mubr.bf16.mxu0 %v2383
        %2481 = vmatmul.mubr.bf16.gmra.mrb[0].mxu0 %v2381
        %v2482 = vpop.f32.mrb[0].mxu0
        %v2483 = vadd.f32 %v2443, %v2482
        %v2484 = vpop.f32.mrb[0].mxu0
        %v2485 = vpop.f32.mrb[0].mxu0
        %v2486 = vpop.f32.mrb[0].mxu0
        %2487 = vdwg.mxu0
        %2488 = vmatprep.subr.bf16.mxu0 0
        %2489 = vmatpush1.bf16.msra.mxu0 %v998
        %2490 = vmatprep.subr.bf16.mxu0 0
        %2491 = vmatpush1.bf16.msra.mxu0 %v999
        %2492 = vmatprep.subr.bf16.mxu0 0
        %2493 = vmatpush1.bf16.msra.mxu0 %v1000
        %2494 = vmatprep.subr.bf16.mxu0 0
        %2495 = vmatpush1.bf16.msra.mxu0 %v1001
        %2496 = vmatprep.subr.bf16.mxu0 0
        %2497 = vmatpush1.bf16.msra.mxu0 %v1002
        %2498 = vmatprep.subr.bf16.mxu0 0
        %2499 = vmatpush1.bf16.msra.mxu0 %v1003
        %2500 = vmatprep.subr.bf16.mxu0 0
        %2501 = vmatpush1.bf16.msra.mxu0 %v1004
        %2502 = vmatprep.subr.bf16.mxu0 0
        %2503 = vmatpush1.bf16.msra.mxu0 %v1005
        %2504 = vmatprep.subr.bf16.mxu0 0
        %2505 = vmatpush1.bf16.msra.mxu0 %v1006
        %2506 = vmatprep.subr.bf16.mxu0 0
        %2507 = vmatpush1.bf16.msra.mxu0 %v1007
        %2508 = vmatprep.subr.bf16.mxu0 0
        %2509 = vmatpush1.bf16.msra.mxu0 %v1008
        %2510 = vmatprep.subr.bf16.mxu0 0
        %2511 = vmatpush1.bf16.msra.mxu0 %v1009
        %2512 = vmatprep.subr.bf16.mxu0 0
        %2513 = vmatpush1.bf16.msra.mxu0 %v1010
        %2514 = vmatprep.subr.bf16.mxu0 0
        %2515 = vmatpush1.bf16.msra.mxu0 %v1011
        %2516 = vmatprep.subr.bf16.mxu0 0
        %2517 = vmatpush1.bf16.msra.mxu0 %v1012
        %2518 = vmatprep.subr.bf16.mxu0 0
        %2519 = vmatpush1.bf16.msra.mxu0 %v1013
        %2520 = vmatprep.mubr.bf16.mxu0 %v2380
        %2521 = vmatmul.mubr.bf16.gmra.mrb[0].mxu0 %v2366
        %v2522 = vpop.f32.mrb[0].mxu0
        %v2523 = vadd.f32 %v2483, %v2522
        %v2524 = vpop.f32.mrb[0].mxu0
        %v2525 = vpop.f32.mrb[0].mxu0
        %v2526 = vpop.f32.mrb[0].mxu0
        %2527 = vdwg.mxu0
        %2528 = vmatprep.subr.bf16.mxu0 0
        %2529 = vmatpush1.bf16.msra.mxu0 %v1014
        %2530 = vmatprep.subr.bf16.mxu0 0
        %2531 = vmatpush1.bf16.msra.mxu0 %v1015
        %2532 = vmatprep.subr.bf16.mxu0 0
        %2533 = vmatpush1.bf16.msra.mxu0 %v1016
        %2534 = vmatprep.subr.bf16.mxu0 0
        %2535 = vmatpush1.bf16.msra.mxu0 %v1017
        %2536 = vmatprep.subr.bf16.mxu0 0
        %2537 = vmatpush1.bf16.msra.mxu0 %v1018
        %2538 = vmatprep.subr.bf16.mxu0 0
        %2539 = vmatpush1.bf16.msra.mxu0 %v1019
        %2540 = vmatprep.subr.bf16.mxu0 0
        %2541 = vmatpush1.bf16.msra.mxu0 %v1020
        %2542 = vmatprep.subr.bf16.mxu0 0
        %2543 = vmatpush1.bf16.msra.mxu0 %v1021
        %2544 = vmatprep.subr.bf16.mxu0 0
        %2545 = vmatpush1.bf16.msra.mxu0 %v1022
        %2546 = vmatprep.subr.bf16.mxu0 0
        %2547 = vmatpush1.bf16.msra.mxu0 %v1023
        %2548 = vmatprep.subr.bf16.mxu0 0
        %2549 = vmatpush1.bf16.msra.mxu0 %v1024
        %2550 = vmatprep.subr.bf16.mxu0 0
        %2551 = vmatpush1.bf16.msra.mxu0 %v1025
        %2552 = vmatprep.subr.bf16.mxu0 0
        %2553 = vmatpush1.bf16.msra.mxu0 %v1026
        %2554 = vmatprep.subr.bf16.mxu0 0
        %2555 = vmatpush1.bf16.msra.mxu0 %v1027
        %2556 = vmatprep.subr.bf16.mxu0 0
        %2557 = vmatpush1.bf16.msra.mxu0 %v1028
        %2558 = vmatprep.subr.bf16.mxu0 0
        %2559 = vmatpush1.bf16.msra.mxu0 %v1029
        %2560 = vmatprep.mubr.bf16.mxu0 %v2384
        %2561 = vmatmul.mubr.bf16.gmra.mrb[0].mxu0 %v2382
        %v2562 = vpop.f32.mrb[0].mxu0
        %v2563 = vadd.f32 %v2523, %v2562
        %v2564 = vpop.f32.mrb[0].mxu0
        %v2565 = vpop.f32.mrb[0].mxu0
        %v2566 = vpop.f32.mrb[0].mxu0
        %2567 = vdwg.mxu0
        %2568 = vmatprep.subr.bf16.mxu0 0
        %2569 = vmatpush1.bf16.msra.mxu0 %v1030
        %2570 = vmatprep.subr.bf16.mxu0 0
        %2571 = vmatpush1.bf16.msra.mxu0 %v1031
        %2572 = vmatprep.subr.bf16.mxu0 0
        %2573 = vmatpush1.bf16.msra.mxu0 %v1032
        %2574 = vmatprep.subr.bf16.mxu0 0
        %2575 = vmatpush1.bf16.msra.mxu0 %v1033
        %2576 = vmatprep.subr.bf16.mxu0 0
        %2577 = vmatpush1.bf16.msra.mxu0 %v1034
        %2578 = vmatprep.subr.bf16.mxu0 0
        %2579 = vmatpush1.bf16.msra.mxu0 %v1035
        %2580 = vmatprep.subr.bf16.mxu0 0
        %2581 = vmatpush1.bf16.msra.mxu0 %v1036
        %2582 = vmatprep.subr.bf16.mxu0 0
        %2583 = vmatpush1.bf16.msra.mxu0 %v1037
        %2584 = vmatprep.subr.bf16.mxu0 0
        %2585 = vmatpush1.bf16.msra.mxu0 0
        %2586 = vmatprep.subr.bf16.mxu0 0
        %2587 = vmatpush1.bf16.msra.mxu0 0
        %2588 = vmatprep.subr.bf16.mxu0 0
        %2589 = vmatpush1.bf16.msra.mxu0 0
        %2590 = vmatprep.subr.bf16.mxu0 0
        %2591 = vmatpush1.bf16.msra.mxu0 0
        %2592 = vmatprep.subr.bf16.mxu0 0
        %2593 = vmatpush1.bf16.msra.mxu0 0
        %2594 = vmatprep.subr.bf16.mxu0 0
        %2595 = vmatpush1.bf16.msra.mxu0 0
        %2596 = vmatprep.subr.bf16.mxu0 0
        %2597 = vmatpush1.bf16.msra.mxu0 0
        %2598 = vmatprep.subr.bf16.mxu0 0
        %2599 = vmatpush1.bf16.msra.mxu0 0
        %2600 = vmatprep.mubr.bf16.mxu0 0
        %2601 = vmatmul.mubr.bf16.gmra.mrb[0].mxu0 %v2398
        %v2602 = vpop.f32.mrb[0].mxu0
        %v2603 = vadd.f32 %v2563, %v2602
        %v2604 = vpop.f32.mrb[0].mxu0
        %v2605 = vpop.f32.mrb[0].mxu0
        %v2606 = vpop.f32.mrb[0].mxu0
        %2607 = vdwg.mxu0
        %v2608 = vmax.f32 %v2603, 0.0
        %v2609 = vpack.c.bf16 %v2608, %v2608
        %s2610 = scalar_lea.vmem %s380, 384 [#allocation8]
        %v2611 = vld [vmem:[%s2610] sm:$0xff]
        %v2612 = vld [vmem:[%s2610 + $0x8] sm:$0xff]
        %v2613 = vld [vmem:[%s2610 + $0x10] sm:$0xff]
        %v2614 = vld [vmem:[%s2610 + $0x18] sm:$0xff]
        %v2615 = vld [vmem:[%s2610 + $0x20] sm:$0xff]
        %v2616 = vld [vmem:[%s2610 + $0x28] sm:$0xff]
        %v2617 = vld [vmem:[%s2610 + $0x30] sm:$0xff]
        %v2618 = vld [vmem:[%s2610 + $0x38] sm:$0xff]
        %v2619 = vld [vmem:[%s2610 + $0x40] sm:$0xff]
        %v2620 = vld [vmem:[%s2610 + $0x48] sm:$0xff]
        %v2621 = vld [vmem:[%s2610 + $0x50] sm:$0xff]
        %v2622 = vld [vmem:[%s2610 + $0x58] sm:$0xff]
        %v2623 = vld [vmem:[%s2610 + $0x60] sm:$0xff]
        %v2624 = vld [vmem:[%s2610 + $0x68] sm:$0xff]
        %v2625 = vld [vmem:[%s2610 + $0x70] sm:$0xff]
        %v2626 = vld [vmem:[%s2610 + $0x78] sm:$0xff]
        %v2627 = vunpack.c.l.s8.bf16 %v2611
        %v2628 = vunpack.c.l.s8.bf16 %v2612
        %v2629 = vunpack.c.l.s8.bf16 %v2613
        %v2630 = vunpack.c.l.s8.bf16 %v2614
        %v2631 = vunpack.c.h.s8.bf16 %v2611
        %v2632 = vunpack.c.h.s8.bf16 %v2612
        %v2633 = vunpack.c.h.s8.bf16 %v2613
        %v2634 = vunpack.c.h.s8.bf16 %v2614
        %v2635 = vunpack.c.l.s8.bf16 %v2615
        %v2636 = vunpack.c.l.s8.bf16 %v2616
        %v2637 = vunpack.c.l.s8.bf16 %v2617
        %v2638 = vunpack.c.l.s8.bf16 %v2618
        %v2639 = vunpack.c.h.s8.bf16 %v2615
        %v2640 = vunpack.c.h.s8.bf16 %v2616
        %v2641 = vunpack.c.h.s8.bf16 %v2617
        %v2642 = vunpack.c.h.s8.bf16 %v2618
        %v2643 = vunpack.c.l.s8.bf16 %v2619
        %v2644 = vunpack.c.l.s8.bf16 %v2620
        %v2645 = vunpack.c.l.s8.bf16 %v2621
        %v2646 = vunpack.c.l.s8.bf16 %v2622
        %v2647 = vunpack.c.h.s8.bf16 %v2619
        %v2648 = vunpack.c.h.s8.bf16 %v2620
        %v2649 = vunpack.c.h.s8.bf16 %v2621
        %v2650 = vunpack.c.h.s8.bf16 %v2622
        %v2651 = vunpack.c.l.s8.bf16 %v2623
        %v2652 = vunpack.c.l.s8.bf16 %v2624
        %v2653 = vunpack.c.l.s8.bf16 %v2625
        %v2654 = vunpack.c.l.s8.bf16 %v2626
        %v2655 = vunpack.c.h.s8.bf16 %v2623
        %v2656 = vunpack.c.h.s8.bf16 %v2624
        %v2657 = vunpack.c.h.s8.bf16 %v2625
        %v2658 = vunpack.c.h.s8.bf16 %v2626
        %2659 = vmatprep.subr.bf16.mxu0 %v2628
        %2660 = vmatpush1.bf16.msra.mxu0 %v2627
        %2661 = vmatprep.subr.bf16.mxu0 %v2632
        %2662 = vmatpush1.bf16.msra.mxu0 %v2631
        %2663 = vmatprep.subr.bf16.mxu0 %v2636
        %2664 = vmatpush1.bf16.msra.mxu0 %v2635
        %2665 = vmatprep.subr.bf16.mxu0 %v2640
        %2666 = vmatpush1.bf16.msra.mxu0 %v2639
        %2667 = vmatprep.subr.bf16.mxu0 %v2644
        %2668 = vmatpush1.bf16.msra.mxu0 %v2643
        %2669 = vmatprep.subr.bf16.mxu0 %v2648
        %2670 = vmatpush1.bf16.msra.mxu0 %v2647
        %2671 = vmatprep.subr.bf16.mxu0 %v2652
        %2672 = vmatpush1.bf16.msra.mxu0 %v2651
        %2673 = vmatprep.subr.bf16.mxu0 %v2656
        %2674 = vmatpush1.bf16.msra.mxu0 %v2655
        %2675 = vmatprep.subr.bf16.mxu0 0
        %2676 = vmatpush1.bf16.msra.mxu0 0
        %2677 = vmatprep.subr.bf16.mxu0 0
        %2678 = vmatpush1.bf16.msra.mxu0 0
        %2679 = vmatprep.subr.bf16.mxu0 0
        %2680 = vmatpush1.bf16.msra.mxu0 0
        %2681 = vmatprep.subr.bf16.mxu0 0
        %2682 = vmatpush1.bf16.msra.mxu0 0
        %2683 = vmatprep.subr.bf16.mxu0 0
        %2684 = vmatpush1.bf16.msra.mxu0 0
        %2685 = vmatprep.subr.bf16.mxu0 0
        %2686 = vmatpush1.bf16.msra.mxu0 0
        %2687 = vmatprep.subr.bf16.mxu0 0
        %2688 = vmatpush1.bf16.msra.mxu0 0
        %2689 = vmatprep.subr.bf16.mxu0 0
        %2690 = vmatpush1.bf16.msra.mxu0 0
        %2691 = vmatprep.mubr.bf16.mxu0 0
        %2692 = vmatmul.mubr.bf16.gmra.mrb[0].mxu0 %v2609
        %v2693 = vpop.f32.mrb[0].mxu0
        %v2694 = vadd.f32 0.0, %v2693
        %v2695 = vpop.f32.mrb[0].mxu0
        %v2696 = vadd.f32 0.0, %v2695
        %v2697 = vpop.f32.mrb[0].mxu0
        %v2698 = vpop.f32.mrb[0].mxu0
        %2699 = vdwg.mxu0
        %2700 = vmatprep.subr.bf16.mxu0 %v2630
        %2701 = vmatpush1.bf16.msra.mxu0 %v2629
        %2702 = vmatprep.subr.bf16.mxu0 %v2634
        %2703 = vmatpush1.bf16.msra.mxu0 %v2633
        %2704 = vmatprep.subr.bf16.mxu0 %v2638
        %2705 = vmatpush1.bf16.msra.mxu0 %v2637
        %2706 = vmatprep.subr.bf16.mxu0 %v2642
        %2707 = vmatpush1.bf16.msra.mxu0 %v2641
        %2708 = vmatprep.subr.bf16.mxu0 %v2646
        %2709 = vmatpush1.bf16.msra.mxu0 %v2645
        %2710 = vmatprep.subr.bf16.mxu0 %v2650
        %2711 = vmatpush1.bf16.msra.mxu0 %v2649
        %2712 = vmatprep.subr.bf16.mxu0 %v2654
        %2713 = vmatpush1.bf16.msra.mxu0 %v2653
        %2714 = vmatprep.subr.bf16.mxu0 %v2658
        %2715 = vmatpush1.bf16.msra.mxu0 %v2657
        %2716 = vmatprep.subr.bf16.mxu0 0
        %2717 = vmatpush1.bf16.msra.mxu0 0
        %2718 = vmatprep.subr.bf16.mxu0 0
        %2719 = vmatpush1.bf16.msra.mxu0 0
        %2720 = vmatprep.subr.bf16.mxu0 0
        %2721 = vmatpush1.bf16.msra.mxu0 0
        %2722 = vmatprep.subr.bf16.mxu0 0
        %2723 = vmatpush1.bf16.msra.mxu0 0
        %2724 = vmatprep.subr.bf16.mxu0 0
        %2725 = vmatpush1.bf16.msra.mxu0 0
        %2726 = vmatprep.subr.bf16.mxu0 0
        %2727 = vmatpush1.bf16.msra.mxu0 0
        %2728 = vmatprep.subr.bf16.mxu0 0
        %2729 = vmatpush1.bf16.msra.mxu0 0
        %2730 = vmatprep.subr.bf16.mxu0 0
        %2731 = vmatpush1.bf16.msra.mxu0 0
        %2732 = vmatprep.mubr.bf16.mxu0 0
        %2733 = vmatmul.mubr.bf16.gmra.mrb[0].mxu0 %v2609
        %v2734 = vpop.f32.mrb[0].mxu0
        %v2735 = vadd.f32 0.0, %v2734
        %v2736 = vpop.f32.mrb[0].mxu0
        %v2737 = vadd.f32 0.0, %v2736
        %v2738 = vpop.f32.mrb[0].mxu0
        %v2739 = vpop.f32.mrb[0].mxu0
        %2740 = vdwg.mxu0
        %v2745 = vcombine.low %v2694, %v2696
        %v2746 = vcombine.low %v2735, %v2737
        %v2748 = vunpack.c.l.s4 1983009808
        %v2749 = vunpack.c.0.s8 %v2748
        %v2750 = vlaneseq
        %v2751 = vshrl.u32 %v2750, 7
        %v2752 = vsub.s32 %v2749, %v2751
        %v2753 = vrot.slane %v2745, %v2752
        %v2755 = vunpack.c.l.s4 1983009808
        %v2756 = vunpack.c.0.s8 %v2755
        %v2757 = vlaneseq
        %v2758 = vshrl.u32 %v2757, 7
        %v2759 = vsub.s32 %v2756, %v2758
        %v2760 = vrot.slane %v2746, %v2759
        %v2761 = vcombine.low %v2753, %v2760
        %v2763 = vadd.f32 %v2330, %v2761
        %s2764 = scalar_lea.vmem %s441, 36
        %v2765 = vld [vmem:[%s2764] sm:$0xff]
        %v2766 = vld [vmem:[%s2764 + $0x8] sm:$0x1]
        %v2769 = vcombine.high %v2765, %v2765
        %v2771 = vunpack.c.l.s4 1966171168
        %v2772 = vunpack.c.0.s8 %v2771
        %v2773 = vlaneseq
        %v2774 = vshrl.u32 %v2773, 7
        %v2775 = vsub.s32 %v2772, %v2774
        %v2776 = vrot.slane %v2765, %v2775
        %v2778 = vunpack.c.l.s4 1966171168
        %v2779 = vunpack.c.0.s8 %v2778
        %v2780 = vlaneseq
        %v2781 = vshrl.u32 %v2780, 7
        %v2782 = vsub.s32 %v2779, %v2781
        %v2783 = vrot.slane %v2769, %v2782
        %v2784 = vcombine.high %v2776, %v2776
        %v2785 = vcombine.high %v2783, %v2783
        %v2787 = vunpack.c.l.s4 1966171168
        %v2788 = vunpack.c.0.s8 %v2787
        %v2789 = vlaneseq
        %v2790 = vshrl.u32 %v2789, 7
        %v2791 = vsub.s32 %v2788, %v2790
        %v2792 = vrot.slane %v2776, %v2791
        %v2794 = vunpack.c.l.s4 1966171168
        %v2795 = vunpack.c.0.s8 %v2794
        %v2796 = vlaneseq
        %v2797 = vshrl.u32 %v2796, 7
        %v2798 = vsub.s32 %v2795, %v2797
        %v2799 = vrot.slane %v2783, %v2798
        %v2801 = vunpack.c.l.s4 1966171168
        %v2802 = vunpack.c.0.s8 %v2801
        %v2803 = vlaneseq
        %v2804 = vshrl.u32 %v2803, 7
        %v2805 = vsub.s32 %v2802, %v2804
        %v2806 = vrot.slane %v2784, %v2805
        %v2808 = vunpack.c.l.s4 1966171168
        %v2809 = vunpack.c.0.s8 %v2808
        %v2810 = vlaneseq
        %v2811 = vshrl.u32 %v2810, 7
        %v2812 = vsub.s32 %v2809, %v2811
        %v2813 = vrot.slane %v2785, %v2812
        %v2814 = vcombine.high %v2792, %v2792
        %v2815 = vcombine.high %v2799, %v2799
        %v2816 = vcombine.high %v2806, %v2806
        %v2817 = vcombine.high %v2813, %v2813
        %v2819 = vunpack.c.l.s4 1966171168
        %v2820 = vunpack.c.0.s8 %v2819
        %v2821 = vlaneseq
        %v2822 = vshrl.u32 %v2821, 7
        %v2823 = vsub.s32 %v2820, %v2822
        %v2824 = vrot.slane %v2766, %v2823
        %v2826 = vunpack.c.l.s4 1966171168
        %v2827 = vunpack.c.0.s8 %v2826
        %v2828 = vlaneseq
        %v2829 = vshrl.u32 %v2828, 7
        %v2830 = vsub.s32 %v2827, %v2829
        %v2831 = vrot.slane %v2824, %v2830
        %2841 = vmatprep.subr.bf16.mxu0 0
        %2842 = vmatpush1.bf16.msra.mxu0 %v966
        %2843 = vmatprep.subr.bf16.mxu0 0
        %2844 = vmatpush1.bf16.msra.mxu0 %v967
        %2845 = vmatprep.subr.bf16.mxu0 0
        %2846 = vmatpush1.bf16.msra.mxu0 %v968
        %2847 = vmatprep.subr.bf16.mxu0 0
        %2848 = vmatpush1.bf16.msra.mxu0 %v969
        %2849 = vmatprep.subr.bf16.mxu0 0
        %2850 = vmatpush1.bf16.msra.mxu0 %v970
        %2851 = vmatprep.subr.bf16.mxu0 0
        %2852 = vmatpush1.bf16.msra.mxu0 %v971
        %2853 = vmatprep.subr.bf16.mxu0 0
        %2854 = vmatpush1.bf16.msra.mxu0 %v972
        %2855 = vmatprep.subr.bf16.mxu0 0
        %2856 = vmatpush1.bf16.msra.mxu0 %v973
        %2857 = vmatprep.subr.bf16.mxu0 0
        %2858 = vmatpush1.bf16.msra.mxu0 %v974
        %2859 = vmatprep.subr.bf16.mxu0 0
        %2860 = vmatpush1.bf16.msra.mxu0 %v975
        %2861 = vmatprep.subr.bf16.mxu0 0
        %2862 = vmatpush1.bf16.msra.mxu0 %v976
        %2863 = vmatprep.subr.bf16.mxu0 0
        %2864 = vmatpush1.bf16.msra.mxu0 %v977
        %2865 = vmatprep.subr.bf16.mxu0 0
        %2866 = vmatpush1.bf16.msra.mxu0 %v978
        %2867 = vmatprep.subr.bf16.mxu0 0
        %2868 = vmatpush1.bf16.msra.mxu0 %v979
        %2869 = vmatprep.subr.bf16.mxu0 0
        %2870 = vmatpush1.bf16.msra.mxu0 %v980
        %2871 = vmatprep.subr.bf16.mxu0 0
        %2872 = vmatpush1.bf16.msra.mxu0 %v981
        %2873 = vmatprep.mubr.bf16.mxu0 %v2806
        %2874 = vmatmul.mubr.bf16.gmra.mrb[0].mxu0 %v2792
        %v2875 = vpop.f32.mrb[0].mxu0
        %v2876 = vadd.f32 %v602, %v2875
        %v2877 = vpop.f32.mrb[0].mxu0
        %v2878 = vpop.f32.mrb[0].mxu0
        %v2879 = vpop.f32.mrb[0].mxu0
        %2880 = vdwg.mxu0
        %2881 = vmatprep.subr.bf16.mxu0 0
        %2882 = vmatpush1.bf16.msra.mxu0 %v982
        %2883 = vmatprep.subr.bf16.mxu0 0
        %2884 = vmatpush1.bf16.msra.mxu0 %v983
        %2885 = vmatprep.subr.bf16.mxu0 0
        %2886 = vmatpush1.bf16.msra.mxu0 %v984
        %2887 = vmatprep.subr.bf16.mxu0 0
        %2888 = vmatpush1.bf16.msra.mxu0 %v985
        %2889 = vmatprep.subr.bf16.mxu0 0
        %2890 = vmatpush1.bf16.msra.mxu0 %v986
        %2891 = vmatprep.subr.bf16.mxu0 0
        %2892 = vmatpush1.bf16.msra.mxu0 %v987
        %2893 = vmatprep.subr.bf16.mxu0 0
        %2894 = vmatpush1.bf16.msra.mxu0 %v988
        %2895 = vmatprep.subr.bf16.mxu0 0
        %2896 = vmatpush1.bf16.msra.mxu0 %v989
        %2897 = vmatprep.subr.bf16.mxu0 0
        %2898 = vmatpush1.bf16.msra.mxu0 %v990
        %2899 = vmatprep.subr.bf16.mxu0 0
        %2900 = vmatpush1.bf16.msra.mxu0 %v991
        %2901 = vmatprep.subr.bf16.mxu0 0
        %2902 = vmatpush1.bf16.msra.mxu0 %v992
        %2903 = vmatprep.subr.bf16.mxu0 0
        %2904 = vmatpush1.bf16.msra.mxu0 %v993
        %2905 = vmatprep.subr.bf16.mxu0 0
        %2906 = vmatpush1.bf16.msra.mxu0 %v994
        %2907 = vmatprep.subr.bf16.mxu0 0
        %2908 = vmatpush1.bf16.msra.mxu0 %v995
        %2909 = vmatprep.subr.bf16.mxu0 0
        %2910 = vmatpush1.bf16.msra.mxu0 %v996
        %2911 = vmatprep.subr.bf16.mxu0 0
        %2912 = vmatpush1.bf16.msra.mxu0 %v997
        %2913 = vmatprep.mubr.bf16.mxu0 %v2816
        %2914 = vmatmul.mubr.bf16.gmra.mrb[0].mxu0 %v2814
        %v2915 = vpop.f32.mrb[0].mxu0
        %v2916 = vadd.f32 %v2876, %v2915
        %v2917 = vpop.f32.mrb[0].mxu0
        %v2918 = vpop.f32.mrb[0].mxu0
        %v2919 = vpop.f32.mrb[0].mxu0
        %2920 = vdwg.mxu0
        %2921 = vmatprep.subr.bf16.mxu0 0
        %2922 = vmatpush1.bf16.msra.mxu0 %v998
        %2923 = vmatprep.subr.bf16.mxu0 0
        %2924 = vmatpush1.bf16.msra.mxu0 %v999
        %2925 = vmatprep.subr.bf16.mxu0 0
        %2926 = vmatpush1.bf16.msra.mxu0 %v1000
        %2927 = vmatprep.subr.bf16.mxu0 0
        %2928 = vmatpush1.bf16.msra.mxu0 %v1001
        %2929 = vmatprep.subr.bf16.mxu0 0
        %2930 = vmatpush1.bf16.msra.mxu0 %v1002
        %2931 = vmatprep.subr.bf16.mxu0 0
        %2932 = vmatpush1.bf16.msra.mxu0 %v1003
        %2933 = vmatprep.subr.bf16.mxu0 0
        %2934 = vmatpush1.bf16.msra.mxu0 %v1004
        %2935 = vmatprep.subr.bf16.mxu0 0
        %2936 = vmatpush1.bf16.msra.mxu0 %v1005
        %2937 = vmatprep.subr.bf16.mxu0 0
        %2938 = vmatpush1.bf16.msra.mxu0 %v1006
        %2939 = vmatprep.subr.bf16.mxu0 0
        %2940 = vmatpush1.bf16.msra.mxu0 %v1007
        %2941 = vmatprep.subr.bf16.mxu0 0
        %2942 = vmatpush1.bf16.msra.mxu0 %v1008
        %2943 = vmatprep.subr.bf16.mxu0 0
        %2944 = vmatpush1.bf16.msra.mxu0 %v1009
        %2945 = vmatprep.subr.bf16.mxu0 0
        %2946 = vmatpush1.bf16.msra.mxu0 %v1010
        %2947 = vmatprep.subr.bf16.mxu0 0
        %2948 = vmatpush1.bf16.msra.mxu0 %v1011
        %2949 = vmatprep.subr.bf16.mxu0 0
        %2950 = vmatpush1.bf16.msra.mxu0 %v1012
        %2951 = vmatprep.subr.bf16.mxu0 0
        %2952 = vmatpush1.bf16.msra.mxu0 %v1013
        %2953 = vmatprep.mubr.bf16.mxu0 %v2813
        %2954 = vmatmul.mubr.bf16.gmra.mrb[0].mxu0 %v2799
        %v2955 = vpop.f32.mrb[0].mxu0
        %v2956 = vadd.f32 %v2916, %v2955
        %v2957 = vpop.f32.mrb[0].mxu0
        %v2958 = vpop.f32.mrb[0].mxu0
        %v2959 = vpop.f32.mrb[0].mxu0
        %2960 = vdwg.mxu0
        %2961 = vmatprep.subr.bf16.mxu0 0
        %2962 = vmatpush1.bf16.msra.mxu0 %v1014
        %2963 = vmatprep.subr.bf16.mxu0 0
        %2964 = vmatpush1.bf16.msra.mxu0 %v1015
        %2965 = vmatprep.subr.bf16.mxu0 0
        %2966 = vmatpush1.bf16.msra.mxu0 %v1016
        %2967 = vmatprep.subr.bf16.mxu0 0
        %2968 = vmatpush1.bf16.msra.mxu0 %v1017
        %2969 = vmatprep.subr.bf16.mxu0 0
        %2970 = vmatpush1.bf16.msra.mxu0 %v1018
        %2971 = vmatprep.subr.bf16.mxu0 0
        %2972 = vmatpush1.bf16.msra.mxu0 %v1019
        %2973 = vmatprep.subr.bf16.mxu0 0
        %2974 = vmatpush1.bf16.msra.mxu0 %v1020
        %2975 = vmatprep.subr.bf16.mxu0 0
        %2976 = vmatpush1.bf16.msra.mxu0 %v1021
        %2977 = vmatprep.subr.bf16.mxu0 0
        %2978 = vmatpush1.bf16.msra.mxu0 %v1022
        %2979 = vmatprep.subr.bf16.mxu0 0
        %2980 = vmatpush1.bf16.msra.mxu0 %v1023
        %2981 = vmatprep.subr.bf16.mxu0 0
        %2982 = vmatpush1.bf16.msra.mxu0 %v1024
        %2983 = vmatprep.subr.bf16.mxu0 0
        %2984 = vmatpush1.bf16.msra.mxu0 %v1025
        %2985 = vmatprep.subr.bf16.mxu0 0
        %2986 = vmatpush1.bf16.msra.mxu0 %v1026
        %2987 = vmatprep.subr.bf16.mxu0 0
        %2988 = vmatpush1.bf16.msra.mxu0 %v1027
        %2989 = vmatprep.subr.bf16.mxu0 0
        %2990 = vmatpush1.bf16.msra.mxu0 %v1028
        %2991 = vmatprep.subr.bf16.mxu0 0
        %2992 = vmatpush1.bf16.msra.mxu0 %v1029
        %2993 = vmatprep.mubr.bf16.mxu0 %v2817
        %2994 = vmatmul.mubr.bf16.gmra.mrb[0].mxu0 %v2815
        %v2995 = vpop.f32.mrb[0].mxu0
        %v2996 = vadd.f32 %v2956, %v2995
        %v2997 = vpop.f32.mrb[0].mxu0
        %v2998 = vpop.f32.mrb[0].mxu0
        %v2999 = vpop.f32.mrb[0].mxu0
        %3000 = vdwg.mxu0
        %3001 = vmatprep.subr.bf16.mxu0 0
        %3002 = vmatpush1.bf16.msra.mxu0 %v1030
        %3003 = vmatprep.subr.bf16.mxu0 0
        %3004 = vmatpush1.bf16.msra.mxu0 %v1031
        %3005 = vmatprep.subr.bf16.mxu0 0
        %3006 = vmatpush1.bf16.msra.mxu0 %v1032
        %3007 = vmatprep.subr.bf16.mxu0 0
        %3008 = vmatpush1.bf16.msra.mxu0 %v1033
        %3009 = vmatprep.subr.bf16.mxu0 0
        %3010 = vmatpush1.bf16.msra.mxu0 %v1034
        %3011 = vmatprep.subr.bf16.mxu0 0
        %3012 = vmatpush1.bf16.msra.mxu0 %v1035
        %3013 = vmatprep.subr.bf16.mxu0 0
        %3014 = vmatpush1.bf16.msra.mxu0 %v1036
        %3015 = vmatprep.subr.bf16.mxu0 0
        %3016 = vmatpush1.bf16.msra.mxu0 %v1037
        %3017 = vmatprep.subr.bf16.mxu0 0
        %3018 = vmatpush1.bf16.msra.mxu0 0
        %3019 = vmatprep.subr.bf16.mxu0 0
        %3020 = vmatpush1.bf16.msra.mxu0 0
        %3021 = vmatprep.subr.bf16.mxu0 0
        %3022 = vmatpush1.bf16.msra.mxu0 0
        %3023 = vmatprep.subr.bf16.mxu0 0
        %3024 = vmatpush1.bf16.msra.mxu0 0
        %3025 = vmatprep.subr.bf16.mxu0 0
        %3026 = vmatpush1.bf16.msra.mxu0 0
        %3027 = vmatprep.subr.bf16.mxu0 0
        %3028 = vmatpush1.bf16.msra.mxu0 0
        %3029 = vmatprep.subr.bf16.mxu0 0
        %3030 = vmatpush1.bf16.msra.mxu0 0
        %3031 = vmatprep.subr.bf16.mxu0 0
        %3032 = vmatpush1.bf16.msra.mxu0 0
        %3033 = vmatprep.mubr.bf16.mxu0 0
        %3034 = vmatmul.mubr.bf16.gmra.mrb[0].mxu0 %v2831
        %v3035 = vpop.f32.mrb[0].mxu0
        %v3036 = vadd.f32 %v2996, %v3035
        %v3037 = vpop.f32.mrb[0].mxu0
        %v3038 = vpop.f32.mrb[0].mxu0
        %v3039 = vpop.f32.mrb[0].mxu0
        %3040 = vdwg.mxu0
        %v3041 = vmax.f32 %v3036, 0.0
        %v3042 = vpack.c.bf16 %v3041, %v3041
        %s3043 = scalar_lea.vmem %s380, 512 [#allocation8]
        %v3044 = vld [vmem:[%s3043] sm:$0xff]
        %v3045 = vld [vmem:[%s3043 + $0x8] sm:$0xff]
        %v3046 = vld [vmem:[%s3043 + $0x10] sm:$0xff]
        %v3047 = vld [vmem:[%s3043 + $0x18] sm:$0xff]
        %v3048 = vld [vmem:[%s3043 + $0x20] sm:$0xff]
        %v3049 = vld [vmem:[%s3043 + $0x28] sm:$0xff]
        %v3050 = vld [vmem:[%s3043 + $0x30] sm:$0xff]
        %v3051 = vld [vmem:[%s3043 + $0x38] sm:$0xff]
        %v3052 = vld [vmem:[%s3043 + $0x40] sm:$0xff]
        %v3053 = vld [vmem:[%s3043 + $0x48] sm:$0xff]
        %v3054 = vld [vmem:[%s3043 + $0x50] sm:$0xff]
        %v3055 = vld [vmem:[%s3043 + $0x58] sm:$0xff]
        %v3056 = vld [vmem:[%s3043 + $0x60] sm:$0xff]
        %v3057 = vld [vmem:[%s3043 + $0x68] sm:$0xff]
        %v3058 = vld [vmem:[%s3043 + $0x70] sm:$0xff]
        %v3059 = vld [vmem:[%s3043 + $0x78] sm:$0xff]
        %v3060 = vunpack.c.l.s8.bf16 %v3044
        %v3061 = vunpack.c.l.s8.bf16 %v3045
        %v3062 = vunpack.c.l.s8.bf16 %v3046
        %v3063 = vunpack.c.l.s8.bf16 %v3047
        %v3064 = vunpack.c.h.s8.bf16 %v3044
        %v3065 = vunpack.c.h.s8.bf16 %v3045
        %v3066 = vunpack.c.h.s8.bf16 %v3046
        %v3067 = vunpack.c.h.s8.bf16 %v3047
        %v3068 = vunpack.c.l.s8.bf16 %v3048
        %v3069 = vunpack.c.l.s8.bf16 %v3049
        %v3070 = vunpack.c.l.s8.bf16 %v3050
        %v3071 = vunpack.c.l.s8.bf16 %v3051
        %v3072 = vunpack.c.h.s8.bf16 %v3048
        %v3073 = vunpack.c.h.s8.bf16 %v3049
        %v3074 = vunpack.c.h.s8.bf16 %v3050
        %v3075 = vunpack.c.h.s8.bf16 %v3051
        %v3076 = vunpack.c.l.s8.bf16 %v3052
        %v3077 = vunpack.c.l.s8.bf16 %v3053
        %v3078 = vunpack.c.l.s8.bf16 %v3054
        %v3079 = vunpack.c.l.s8.bf16 %v3055
        %v3080 = vunpack.c.h.s8.bf16 %v3052
        %v3081 = vunpack.c.h.s8.bf16 %v3053
        %v3082 = vunpack.c.h.s8.bf16 %v3054
        %v3083 = vunpack.c.h.s8.bf16 %v3055
        %v3084 = vunpack.c.l.s8.bf16 %v3056
        %v3085 = vunpack.c.l.s8.bf16 %v3057
        %v3086 = vunpack.c.l.s8.bf16 %v3058
        %v3087 = vunpack.c.l.s8.bf16 %v3059
        %v3088 = vunpack.c.h.s8.bf16 %v3056
        %v3089 = vunpack.c.h.s8.bf16 %v3057
        %v3090 = vunpack.c.h.s8.bf16 %v3058
        %v3091 = vunpack.c.h.s8.bf16 %v3059
        %3092 = vmatprep.subr.bf16.mxu0 %v3061
        %3093 = vmatpush1.bf16.msra.mxu0 %v3060
        %3094 = vmatprep.subr.bf16.mxu0 %v3065
        %3095 = vmatpush1.bf16.msra.mxu0 %v3064
        %3096 = vmatprep.subr.bf16.mxu0 %v3069
        %3097 = vmatpush1.bf16.msra.mxu0 %v3068
        %3098 = vmatprep.subr.bf16.mxu0 %v3073
        %3099 = vmatpush1.bf16.msra.mxu0 %v3072
        %3100 = vmatprep.subr.bf16.mxu0 %v3077
        %3101 = vmatpush1.bf16.msra.mxu0 %v3076
        %3102 = vmatprep.subr.bf16.mxu0 %v3081
        %3103 = vmatpush1.bf16.msra.mxu0 %v3080
        %3104 = vmatprep.subr.bf16.mxu0 %v3085
        %3105 = vmatpush1.bf16.msra.mxu0 %v3084
        %3106 = vmatprep.subr.bf16.mxu0 %v3089
        %3107 = vmatpush1.bf16.msra.mxu0 %v3088
        %3108 = vmatprep.subr.bf16.mxu0 0
        %3109 = vmatpush1.bf16.msra.mxu0 0
        %3110 = vmatprep.subr.bf16.mxu0 0
        %3111 = vmatpush1.bf16.msra.mxu0 0
        %3112 = vmatprep.subr.bf16.mxu0 0
        %3113 = vmatpush1.bf16.msra.mxu0 0
        %3114 = vmatprep.subr.bf16.mxu0 0
        %3115 = vmatpush1.bf16.msra.mxu0 0
        %3116 = vmatprep.subr.bf16.mxu0 0
        %3117 = vmatpush1.bf16.msra.mxu0 0
        %3118 = vmatprep.subr.bf16.mxu0 0
        %3119 = vmatpush1.bf16.msra.mxu0 0
        %3120 = vmatprep.subr.bf16.mxu0 0
        %3121 = vmatpush1.bf16.msra.mxu0 0
        %3122 = vmatprep.subr.bf16.mxu0 0
        %3123 = vmatpush1.bf16.msra.mxu0 0
        %3124 = vmatprep.mubr.bf16.mxu0 0
        %3125 = vmatmul.mubr.bf16.gmra.mrb[0].mxu0 %v3042
        %v3126 = vpop.f32.mrb[0].mxu0
        %v3127 = vadd.f32 0.0, %v3126
        %v3128 = vpop.f32.mrb[0].mxu0
        %v3129 = vadd.f32 0.0, %v3128
        %v3130 = vpop.f32.mrb[0].mxu0
        %v3131 = vpop.f32.mrb[0].mxu0
        %3132 = vdwg.mxu0
        %3133 = vmatprep.subr.bf16.mxu0 %v3063
        %3134 = vmatpush1.bf16.msra.mxu0 %v3062
        %3135 = vmatprep.subr.bf16.mxu0 %v3067
        %3136 = vmatpush1.bf16.msra.mxu0 %v3066
        %3137 = vmatprep.subr.bf16.mxu0 %v3071
        %3138 = vmatpush1.bf16.msra.mxu0 %v3070
        %3139 = vmatprep.subr.bf16.mxu0 %v3075
        %3140 = vmatpush1.bf16.msra.mxu0 %v3074
        %3141 = vmatprep.subr.bf16.mxu0 %v3079
        %3142 = vmatpush1.bf16.msra.mxu0 %v3078
        %3143 = vmatprep.subr.bf16.mxu0 %v3083
        %3144 = vmatpush1.bf16.msra.mxu0 %v3082
        %3145 = vmatprep.subr.bf16.mxu0 %v3087
        %3146 = vmatpush1.bf16.msra.mxu0 %v3086
        %3147 = vmatprep.subr.bf16.mxu0 %v3091
        %3148 = vmatpush1.bf16.msra.mxu0 %v3090
        %3149 = vmatprep.subr.bf16.mxu0 0
        %3150 = vmatpush1.bf16.msra.mxu0 0
        %3151 = vmatprep.subr.bf16.mxu0 0
        %3152 = vmatpush1.bf16.msra.mxu0 0
        %3153 = vmatprep.subr.bf16.mxu0 0
        %3154 = vmatpush1.bf16.msra.mxu0 0
        %3155 = vmatprep.subr.bf16.mxu0 0
        %3156 = vmatpush1.bf16.msra.mxu0 0
        %3157 = vmatprep.subr.bf16.mxu0 0
        %3158 = vmatpush1.bf16.msra.mxu0 0
        %3159 = vmatprep.subr.bf16.mxu0 0
        %3160 = vmatpush1.bf16.msra.mxu0 0
        %3161 = vmatprep.subr.bf16.mxu0 0
        %3162 = vmatpush1.bf16.msra.mxu0 0
        %3163 = vmatprep.subr.bf16.mxu0 0
        %3164 = vmatpush1.bf16.msra.mxu0 0
        %3165 = vmatprep.mubr.bf16.mxu0 0
        %3166 = vmatmul.mubr.bf16.gmra.mrb[0].mxu0 %v3042
        %v3167 = vpop.f32.mrb[0].mxu0
        %v3168 = vadd.f32 0.0, %v3167
        %v3169 = vpop.f32.mrb[0].mxu0
        %v3170 = vadd.f32 0.0, %v3169
        %v3171 = vpop.f32.mrb[0].mxu0
        %v3172 = vpop.f32.mrb[0].mxu0
        %3173 = vdwg.mxu0
        %v3178 = vcombine.low %v3127, %v3129
        %v3179 = vcombine.low %v3168, %v3170
        %v3181 = vunpack.c.l.s4 1983009808
        %v3182 = vunpack.c.0.s8 %v3181
        %v3183 = vlaneseq
        %v3184 = vshrl.u32 %v3183, 7
        %v3185 = vsub.s32 %v3182, %v3184
        %v3186 = vrot.slane %v3178, %v3185
        %v3188 = vunpack.c.l.s4 1983009808
        %v3189 = vunpack.c.0.s8 %v3188
        %v3190 = vlaneseq
        %v3191 = vshrl.u32 %v3190, 7
        %v3192 = vsub.s32 %v3189, %v3191
        %v3193 = vrot.slane %v3179, %v3192
        %v3194 = vcombine.low %v3186, %v3193
        %v3196 = vadd.f32 %v2763, %v3194
        %s3197 = scalar_lea.vmem %s441, 45
        %v3198 = vld [vmem:[%s3197] sm:$0xff]
        %v3199 = vld [vmem:[%s3197 + $0x8] sm:$0x1]
        %v3202 = vcombine.high %v3198, %v3198
        %v3204 = vunpack.c.l.s4 1966171168
        %v3205 = vunpack.c.0.s8 %v3204
        %v3206 = vlaneseq
        %v3207 = vshrl.u32 %v3206, 7
        %v3208 = vsub.s32 %v3205, %v3207
        %v3209 = vrot.slane %v3198, %v3208
        %v3211 = vunpack.c.l.s4 1966171168
        %v3212 = vunpack.c.0.s8 %v3211
        %v3213 = vlaneseq
        %v3214 = vshrl.u32 %v3213, 7
        %v3215 = vsub.s32 %v3212, %v3214
        %v3216 = vrot.slane %v3202, %v3215
        %v3217 = vcombine.high %v3209, %v3209
        %v3218 = vcombine.high %v3216, %v3216
        %v3220 = vunpack.c.l.s4 1966171168
        %v3221 = vunpack.c.0.s8 %v3220
        %v3222 = vlaneseq
        %v3223 = vshrl.u32 %v3222, 7
        %v3224 = vsub.s32 %v3221, %v3223
        %v3225 = vrot.slane %v3209, %v3224
        %v3227 = vunpack.c.l.s4 1966171168
        %v3228 = vunpack.c.0.s8 %v3227
        %v3229 = vlaneseq
        %v3230 = vshrl.u32 %v3229, 7
        %v3231 = vsub.s32 %v3228, %v3230
        %v3232 = vrot.slane %v3216, %v3231
        %v3234 = vunpack.c.l.s4 1966171168
        %v3235 = vunpack.c.0.s8 %v3234
        %v3236 = vlaneseq
        %v3237 = vshrl.u32 %v3236, 7
        %v3238 = vsub.s32 %v3235, %v3237
        %v3239 = vrot.slane %v3217, %v3238
        %v3241 = vunpack.c.l.s4 1966171168
        %v3242 = vunpack.c.0.s8 %v3241
        %v3243 = vlaneseq
        %v3244 = vshrl.u32 %v3243, 7
        %v3245 = vsub.s32 %v3242, %v3244
        %v3246 = vrot.slane %v3218, %v3245
        %v3247 = vcombine.high %v3225, %v3225
        %v3248 = vcombine.high %v3232, %v3232
        %v3249 = vcombine.high %v3239, %v3239
        %v3250 = vcombine.high %v3246, %v3246
        %v3252 = vunpack.c.l.s4 1966171168
        %v3253 = vunpack.c.0.s8 %v3252
        %v3254 = vlaneseq
        %v3255 = vshrl.u32 %v3254, 7
        %v3256 = vsub.s32 %v3253, %v3255
        %v3257 = vrot.slane %v3199, %v3256
        %v3259 = vunpack.c.l.s4 1966171168
        %v3260 = vunpack.c.0.s8 %v3259
        %v3261 = vlaneseq
        %v3262 = vshrl.u32 %v3261, 7
        %v3263 = vsub.s32 %v3260, %v3262
        %v3264 = vrot.slane %v3257, %v3263
        %3274 = vmatprep.subr.bf16.mxu0 0
        %3275 = vmatpush1.bf16.msra.mxu0 %v966
        %3276 = vmatprep.subr.bf16.mxu0 0
        %3277 = vmatpush1.bf16.msra.mxu0 %v967
        %3278 = vmatprep.subr.bf16.mxu0 0
        %3279 = vmatpush1.bf16.msra.mxu0 %v968
        %3280 = vmatprep.subr.bf16.mxu0 0
        %3281 = vmatpush1.bf16.msra.mxu0 %v969
        %3282 = vmatprep.subr.bf16.mxu0 0
        %3283 = vmatpush1.bf16.msra.mxu0 %v970
        %3284 = vmatprep.subr.bf16.mxu0 0
        %3285 = vmatpush1.bf16.msra.mxu0 %v971
        %3286 = vmatprep.subr.bf16.mxu0 0
        %3287 = vmatpush1.bf16.msra.mxu0 %v972
        %3288 = vmatprep.subr.bf16.mxu0 0
        %3289 = vmatpush1.bf16.msra.mxu0 %v973
        %3290 = vmatprep.subr.bf16.mxu0 0
        %3291 = vmatpush1.bf16.msra.mxu0 %v974
        %3292 = vmatprep.subr.bf16.mxu0 0
        %3293 = vmatpush1.bf16.msra.mxu0 %v975
        %3294 = vmatprep.subr.bf16.mxu0 0
        %3295 = vmatpush1.bf16.msra.mxu0 %v976
        %3296 = vmatprep.subr.bf16.mxu0 0
        %3297 = vmatpush1.bf16.msra.mxu0 %v977
        %3298 = vmatprep.subr.bf16.mxu0 0
        %3299 = vmatpush1.bf16.msra.mxu0 %v978
        %3300 = vmatprep.subr.bf16.mxu0 0
        %3301 = vmatpush1.bf16.msra.mxu0 %v979
        %3302 = vmatprep.subr.bf16.mxu0 0
        %3303 = vmatpush1.bf16.msra.mxu0 %v980
        %3304 = vmatprep.subr.bf16.mxu0 0
        %3305 = vmatpush1.bf16.msra.mxu0 %v981
        %3306 = vmatprep.mubr.bf16.mxu0 %v3239
        %3307 = vmatmul.mubr.bf16.gmra.mrb[0].mxu0 %v3225
        %v3308 = vpop.f32.mrb[0].mxu0
        %v3309 = vadd.f32 %v602, %v3308
        %v3310 = vpop.f32.mrb[0].mxu0
        %v3311 = vpop.f32.mrb[0].mxu0
        %v3312 = vpop.f32.mrb[0].mxu0
        %3313 = vdwg.mxu0
        %3314 = vmatprep.subr.bf16.mxu0 0
        %3315 = vmatpush1.bf16.msra.mxu0 %v982
        %3316 = vmatprep.subr.bf16.mxu0 0
        %3317 = vmatpush1.bf16.msra.mxu0 %v983
        %3318 = vmatprep.subr.bf16.mxu0 0
        %3319 = vmatpush1.bf16.msra.mxu0 %v984
        %3320 = vmatprep.subr.bf16.mxu0 0
        %3321 = vmatpush1.bf16.msra.mxu0 %v985
        %3322 = vmatprep.subr.bf16.mxu0 0
        %3323 = vmatpush1.bf16.msra.mxu0 %v986
        %3324 = vmatprep.subr.bf16.mxu0 0
        %3325 = vmatpush1.bf16.msra.mxu0 %v987
        %3326 = vmatprep.subr.bf16.mxu0 0
        %3327 = vmatpush1.bf16.msra.mxu0 %v988
        %3328 = vmatprep.subr.bf16.mxu0 0
        %3329 = vmatpush1.bf16.msra.mxu0 %v989
        %3330 = vmatprep.subr.bf16.mxu0 0
        %3331 = vmatpush1.bf16.msra.mxu0 %v990
        %3332 = vmatprep.subr.bf16.mxu0 0
        %3333 = vmatpush1.bf16.msra.mxu0 %v991
        %3334 = vmatprep.subr.bf16.mxu0 0
        %3335 = vmatpush1.bf16.msra.mxu0 %v992
        %3336 = vmatprep.subr.bf16.mxu0 0
        %3337 = vmatpush1.bf16.msra.mxu0 %v993
        %3338 = vmatprep.subr.bf16.mxu0 0
        %3339 = vmatpush1.bf16.msra.mxu0 %v994
        %3340 = vmatprep.subr.bf16.mxu0 0
        %3341 = vmatpush1.bf16.msra.mxu0 %v995
        %3342 = vmatprep.subr.bf16.mxu0 0
        %3343 = vmatpush1.bf16.msra.mxu0 %v996
        %3344 = vmatprep.subr.bf16.mxu0 0
        %3345 = vmatpush1.bf16.msra.mxu0 %v997
        %3346 = vmatprep.mubr.bf16.mxu0 %v3249
        %3347 = vmatmul.mubr.bf16.gmra.mrb[0].mxu0 %v3247
        %v3348 = vpop.f32.mrb[0].mxu0
        %v3349 = vadd.f32 %v3309, %v3348
        %v3350 = vpop.f32.mrb[0].mxu0
        %v3351 = vpop.f32.mrb[0].mxu0
        %v3352 = vpop.f32.mrb[0].mxu0
        %3353 = vdwg.mxu0
        %3354 = vmatprep.subr.bf16.mxu0 0
        %3355 = vmatpush1.bf16.msra.mxu0 %v998
        %3356 = vmatprep.subr.bf16.mxu0 0
        %3357 = vmatpush1.bf16.msra.mxu0 %v999
        %3358 = vmatprep.subr.bf16.mxu0 0
        %3359 = vmatpush1.bf16.msra.mxu0 %v1000
        %3360 = vmatprep.subr.bf16.mxu0 0
        %3361 = vmatpush1.bf16.msra.mxu0 %v1001
        %3362 = vmatprep.subr.bf16.mxu0 0
        %3363 = vmatpush1.bf16.msra.mxu0 %v1002
        %3364 = vmatprep.subr.bf16.mxu0 0
        %3365 = vmatpush1.bf16.msra.mxu0 %v1003
        %3366 = vmatprep.subr.bf16.mxu0 0
        %3367 = vmatpush1.bf16.msra.mxu0 %v1004
        %3368 = vmatprep.subr.bf16.mxu0 0
        %3369 = vmatpush1.bf16.msra.mxu0 %v1005
        %3370 = vmatprep.subr.bf16.mxu0 0
        %3371 = vmatpush1.bf16.msra.mxu0 %v1006
        %3372 = vmatprep.subr.bf16.mxu0 0
        %3373 = vmatpush1.bf16.msra.mxu0 %v1007
        %3374 = vmatprep.subr.bf16.mxu0 0
        %3375 = vmatpush1.bf16.msra.mxu0 %v1008
        %3376 = vmatprep.subr.bf16.mxu0 0
        %3377 = vmatpush1.bf16.msra.mxu0 %v1009
        %3378 = vmatprep.subr.bf16.mxu0 0
        %3379 = vmatpush1.bf16.msra.mxu0 %v1010
        %3380 = vmatprep.subr.bf16.mxu0 0
        %3381 = vmatpush1.bf16.msra.mxu0 %v1011
        %3382 = vmatprep.subr.bf16.mxu0 0
        %3383 = vmatpush1.bf16.msra.mxu0 %v1012
        %3384 = vmatprep.subr.bf16.mxu0 0
        %3385 = vmatpush1.bf16.msra.mxu0 %v1013
        %3386 = vmatprep.mubr.bf16.mxu0 %v3246
        %3387 = vmatmul.mubr.bf16.gmra.mrb[0].mxu0 %v3232
        %v3388 = vpop.f32.mrb[0].mxu0
        %v3389 = vadd.f32 %v3349, %v3388
        %v3390 = vpop.f32.mrb[0].mxu0
        %v3391 = vpop.f32.mrb[0].mxu0
        %v3392 = vpop.f32.mrb[0].mxu0
        %3393 = vdwg.mxu0
        %3394 = vmatprep.subr.bf16.mxu0 0
        %3395 = vmatpush1.bf16.msra.mxu0 %v1014
        %3396 = vmatprep.subr.bf16.mxu0 0
        %3397 = vmatpush1.bf16.msra.mxu0 %v1015
        %3398 = vmatprep.subr.bf16.mxu0 0
        %3399 = vmatpush1.bf16.msra.mxu0 %v1016
        %3400 = vmatprep.subr.bf16.mxu0 0
        %3401 = vmatpush1.bf16.msra.mxu0 %v1017
        %3402 = vmatprep.subr.bf16.mxu0 0
        %3403 = vmatpush1.bf16.msra.mxu0 %v1018
        %3404 = vmatprep.subr.bf16.mxu0 0
        %3405 = vmatpush1.bf16.msra.mxu0 %v1019
        %3406 = vmatprep.subr.bf16.mxu0 0
        %3407 = vmatpush1.bf16.msra.mxu0 %v1020
        %3408 = vmatprep.subr.bf16.mxu0 0
        %3409 = vmatpush1.bf16.msra.mxu0 %v1021
        %3410 = vmatprep.subr.bf16.mxu0 0
        %3411 = vmatpush1.bf16.msra.mxu0 %v1022
        %3412 = vmatprep.subr.bf16.mxu0 0
        %3413 = vmatpush1.bf16.msra.mxu0 %v1023
        %3414 = vmatprep.subr.bf16.mxu0 0
        %3415 = vmatpush1.bf16.msra.mxu0 %v1024
        %3416 = vmatprep.subr.bf16.mxu0 0
        %3417 = vmatpush1.bf16.msra.mxu0 %v1025
        %3418 = vmatprep.subr.bf16.mxu0 0
        %3419 = vmatpush1.bf16.msra.mxu0 %v1026
        %3420 = vmatprep.subr.bf16.mxu0 0
        %3421 = vmatpush1.bf16.msra.mxu0 %v1027
        %3422 = vmatprep.subr.bf16.mxu0 0
        %3423 = vmatpush1.bf16.msra.mxu0 %v1028
        %3424 = vmatprep.subr.bf16.mxu0 0
        %3425 = vmatpush1.bf16.msra.mxu0 %v1029
        %3426 = vmatprep.mubr.bf16.mxu0 %v3250
        %3427 = vmatmul.mubr.bf16.gmra.mrb[0].mxu0 %v3248
        %v3428 = vpop.f32.mrb[0].mxu0
        %v3429 = vadd.f32 %v3389, %v3428
        %v3430 = vpop.f32.mrb[0].mxu0
        %v3431 = vpop.f32.mrb[0].mxu0
        %v3432 = vpop.f32.mrb[0].mxu0
        %3433 = vdwg.mxu0
        %3434 = vmatprep.subr.bf16.mxu0 0
        %3435 = vmatpush1.bf16.msra.mxu0 %v1030
        %3436 = vmatprep.subr.bf16.mxu0 0
        %3437 = vmatpush1.bf16.msra.mxu0 %v1031
        %3438 = vmatprep.subr.bf16.mxu0 0
        %3439 = vmatpush1.bf16.msra.mxu0 %v1032
        %3440 = vmatprep.subr.bf16.mxu0 0
        %3441 = vmatpush1.bf16.msra.mxu0 %v1033
        %3442 = vmatprep.subr.bf16.mxu0 0
        %3443 = vmatpush1.bf16.msra.mxu0 %v1034
        %3444 = vmatprep.subr.bf16.mxu0 0
        %3445 = vmatpush1.bf16.msra.mxu0 %v1035
        %3446 = vmatprep.subr.bf16.mxu0 0
        %3447 = vmatpush1.bf16.msra.mxu0 %v1036
        %3448 = vmatprep.subr.bf16.mxu0 0
        %3449 = vmatpush1.bf16.msra.mxu0 %v1037
        %3450 = vmatprep.subr.bf16.mxu0 0
        %3451 = vmatpush1.bf16.msra.mxu0 0
        %3452 = vmatprep.subr.bf16.mxu0 0
        %3453 = vmatpush1.bf16.msra.mxu0 0
        %3454 = vmatprep.subr.bf16.mxu0 0
        %3455 = vmatpush1.bf16.msra.mxu0 0
        %3456 = vmatprep.subr.bf16.mxu0 0
        %3457 = vmatpush1.bf16.msra.mxu0 0
        %3458 = vmatprep.subr.bf16.mxu0 0
        %3459 = vmatpush1.bf16.msra.mxu0 0
        %3460 = vmatprep.subr.bf16.mxu0 0
        %3461 = vmatpush1.bf16.msra.mxu0 0
        %3462 = vmatprep.subr.bf16.mxu0 0
        %3463 = vmatpush1.bf16.msra.mxu0 0
        %3464 = vmatprep.subr.bf16.mxu0 0
        %3465 = vmatpush1.bf16.msra.mxu0 0
        %3466 = vmatprep.mubr.bf16.mxu0 0
        %3467 = vmatmul.mubr.bf16.gmra.mrb[0].mxu0 %v3264
        %v3468 = vpop.f32.mrb[0].mxu0
        %v3469 = vadd.f32 %v3429, %v3468
        %v3470 = vpop.f32.mrb[0].mxu0
        %v3471 = vpop.f32.mrb[0].mxu0
        %v3472 = vpop.f32.mrb[0].mxu0
        %3473 = vdwg.mxu0
        %v3474 = vmax.f32 %v3469, 0.0
        %v3475 = vpack.c.bf16 %v3474, %v3474
        %s3476 = scalar_lea.vmem %s380, 640 [#allocation8]
        %v3477 = vld [vmem:[%s3476] sm:$0xff]
        %v3478 = vld [vmem:[%s3476 + $0x8] sm:$0xff]
        %v3479 = vld [vmem:[%s3476 + $0x10] sm:$0xff]
        %v3480 = vld [vmem:[%s3476 + $0x18] sm:$0xff]
        %v3481 = vld [vmem:[%s3476 + $0x20] sm:$0xff]
        %v3482 = vld [vmem:[%s3476 + $0x28] sm:$0xff]
        %v3483 = vld [vmem:[%s3476 + $0x30] sm:$0xff]
        %v3484 = vld [vmem:[%s3476 + $0x38] sm:$0xff]
        %v3485 = vld [vmem:[%s3476 + $0x40] sm:$0xff]
        %v3486 = vld [vmem:[%s3476 + $0x48] sm:$0xff]
        %v3487 = vld [vmem:[%s3476 + $0x50] sm:$0xff]
        %v3488 = vld [vmem:[%s3476 + $0x58] sm:$0xff]
        %v3489 = vld [vmem:[%s3476 + $0x60] sm:$0xff]
        %v3490 = vld [vmem:[%s3476 + $0x68] sm:$0xff]
        %v3491 = vld [vmem:[%s3476 + $0x70] sm:$0xff]
        %v3492 = vld [vmem:[%s3476 + $0x78] sm:$0xff]
        %v3493 = vunpack.c.l.s8.bf16 %v3477
        %v3494 = vunpack.c.l.s8.bf16 %v3478
        %v3495 = vunpack.c.l.s8.bf16 %v3479
        %v3496 = vunpack.c.l.s8.bf16 %v3480
        %v3497 = vunpack.c.h.s8.bf16 %v3477
        %v3498 = vunpack.c.h.s8.bf16 %v3478
        %v3499 = vunpack.c.h.s8.bf16 %v3479
        %v3500 = vunpack.c.h.s8.bf16 %v3480
        %v3501 = vunpack.c.l.s8.bf16 %v3481
        %v3502 = vunpack.c.l.s8.bf16 %v3482
        %v3503 = vunpack.c.l.s8.bf16 %v3483
        %v3504 = vunpack.c.l.s8.bf16 %v3484
        %v3505 = vunpack.c.h.s8.bf16 %v3481
        %v3506 = vunpack.c.h.s8.bf16 %v3482
        %v3507 = vunpack.c.h.s8.bf16 %v3483
        %v3508 = vunpack.c.h.s8.bf16 %v3484
        %v3509 = vunpack.c.l.s8.bf16 %v3485
        %v3510 = vunpack.c.l.s8.bf16 %v3486
        %v3511 = vunpack.c.l.s8.bf16 %v3487
        %v3512 = vunpack.c.l.s8.bf16 %v3488
        %v3513 = vunpack.c.h.s8.bf16 %v3485
        %v3514 = vunpack.c.h.s8.bf16 %v3486
        %v3515 = vunpack.c.h.s8.bf16 %v3487
        %v3516 = vunpack.c.h.s8.bf16 %v3488
        %v3517 = vunpack.c.l.s8.bf16 %v3489
        %v3518 = vunpack.c.l.s8.bf16 %v3490
        %v3519 = vunpack.c.l.s8.bf16 %v3491
        %v3520 = vunpack.c.l.s8.bf16 %v3492
        %v3521 = vunpack.c.h.s8.bf16 %v3489
        %v3522 = vunpack.c.h.s8.bf16 %v3490
        %v3523 = vunpack.c.h.s8.bf16 %v3491
        %v3524 = vunpack.c.h.s8.bf16 %v3492
        %3525 = vmatprep.subr.bf16.mxu0 %v3494
        %3526 = vmatpush1.bf16.msra.mxu0 %v3493
        %3527 = vmatprep.subr.bf16.mxu0 %v3498
        %3528 = vmatpush1.bf16.msra.mxu0 %v3497
        %3529 = vmatprep.subr.bf16.mxu0 %v3502
        %3530 = vmatpush1.bf16.msra.mxu0 %v3501
        %3531 = vmatprep.subr.bf16.mxu0 %v3506
        %3532 = vmatpush1.bf16.msra.mxu0 %v3505
        %3533 = vmatprep.subr.bf16.mxu0 %v3510
        %3534 = vmatpush1.bf16.msra.mxu0 %v3509
        %3535 = vmatprep.subr.bf16.mxu0 %v3514
        %3536 = vmatpush1.bf16.msra.mxu0 %v3513
        %3537 = vmatprep.subr.bf16.mxu0 %v3518
        %3538 = vmatpush1.bf16.msra.mxu0 %v3517
        %3539 = vmatprep.subr.bf16.mxu0 %v3522
        %3540 = vmatpush1.bf16.msra.mxu0 %v3521
        %3541 = vmatprep.subr.bf16.mxu0 0
        %3542 = vmatpush1.bf16.msra.mxu0 0
        %3543 = vmatprep.subr.bf16.mxu0 0
        %3544 = vmatpush1.bf16.msra.mxu0 0
        %3545 = vmatprep.subr.bf16.mxu0 0
        %3546 = vmatpush1.bf16.msra.mxu0 0
        %3547 = vmatprep.subr.bf16.mxu0 0
        %3548 = vmatpush1.bf16.msra.mxu0 0
        %3549 = vmatprep.subr.bf16.mxu0 0
        %3550 = vmatpush1.bf16.msra.mxu0 0
        %3551 = vmatprep.subr.bf16.mxu0 0
        %3552 = vmatpush1.bf16.msra.mxu0 0
        %3553 = vmatprep.subr.bf16.mxu0 0
        %3554 = vmatpush1.bf16.msra.mxu0 0
        %3555 = vmatprep.subr.bf16.mxu0 0
        %3556 = vmatpush1.bf16.msra.mxu0 0
        %3557 = vmatprep.mubr.bf16.mxu0 0
        %3558 = vmatmul.mubr.bf16.gmra.mrb[0].mxu0 %v3475
        %v3559 = vpop.f32.mrb[0].mxu0
        %v3560 = vadd.f32 0.0, %v3559
        %v3561 = vpop.f32.mrb[0].mxu0
        %v3562 = vadd.f32 0.0, %v3561
        %v3563 = vpop.f32.mrb[0].mxu0
        %v3564 = vpop.f32.mrb[0].mxu0
        %3565 = vdwg.mxu0
        %3566 = vmatprep.subr.bf16.mxu0 %v3496
        %3567 = vmatpush1.bf16.msra.mxu0 %v3495
        %3568 = vmatprep.subr.bf16.mxu0 %v3500
        %3569 = vmatpush1.bf16.msra.mxu0 %v3499
        %3570 = vmatprep.subr.bf16.mxu0 %v3504
        %3571 = vmatpush1.bf16.msra.mxu0 %v3503
        %3572 = vmatprep.subr.bf16.mxu0 %v3508
        %3573 = vmatpush1.bf16.msra.mxu0 %v3507
        %3574 = vmatprep.subr.bf16.mxu0 %v3512
        %3575 = vmatpush1.bf16.msra.mxu0 %v3511
        %3576 = vmatprep.subr.bf16.mxu0 %v3516
        %3577 = vmatpush1.bf16.msra.mxu0 %v3515
        %3578 = vmatprep.subr.bf16.mxu0 %v3520
        %3579 = vmatpush1.bf16.msra.mxu0 %v3519
        %3580 = vmatprep.subr.bf16.mxu0 %v3524
        %3581 = vmatpush1.bf16.msra.mxu0 %v3523
        %3582 = vmatprep.subr.bf16.mxu0 0
        %3583 = vmatpush1.bf16.msra.mxu0 0
        %3584 = vmatprep.subr.bf16.mxu0 0
        %3585 = vmatpush1.bf16.msra.mxu0 0
        %3586 = vmatprep.subr.bf16.mxu0 0
        %3587 = vmatpush1.bf16.msra.mxu0 0
        %3588 = vmatprep.subr.bf16.mxu0 0
        %3589 = vmatpush1.bf16.msra.mxu0 0
        %3590 = vmatprep.subr.bf16.mxu0 0
        %3591 = vmatpush1.bf16.msra.mxu0 0
        %3592 = vmatprep.subr.bf16.mxu0 0
        %3593 = vmatpush1.bf16.msra.mxu0 0
        %3594 = vmatprep.subr.bf16.mxu0 0
        %3595 = vmatpush1.bf16.msra.mxu0 0
        %3596 = vmatprep.subr.bf16.mxu0 0
        %3597 = vmatpush1.bf16.msra.mxu0 0
        %3598 = vmatprep.mubr.bf16.mxu0 0
        %3599 = vmatmul.mubr.bf16.gmra.mrb[0].mxu0 %v3475
        %v3600 = vpop.f32.mrb[0].mxu0
        %v3601 = vadd.f32 0.0, %v3600
        %v3602 = vpop.f32.mrb[0].mxu0
        %v3603 = vadd.f32 0.0, %v3602
        %v3604 = vpop.f32.mrb[0].mxu0
        %v3605 = vpop.f32.mrb[0].mxu0
        %3606 = vdwg.mxu0
        %v3611 = vcombine.low %v3560, %v3562
        %v3612 = vcombine.low %v3601, %v3603
        %v3614 = vunpack.c.l.s4 1983009808
        %v3615 = vunpack.c.0.s8 %v3614
        %v3616 = vlaneseq
        %v3617 = vshrl.u32 %v3616, 7
        %v3618 = vsub.s32 %v3615, %v3617
        %v3619 = vrot.slane %v3611, %v3618
        %v3621 = vunpack.c.l.s4 1983009808
        %v3622 = vunpack.c.0.s8 %v3621
        %v3623 = vlaneseq
        %v3624 = vshrl.u32 %v3623, 7
        %v3625 = vsub.s32 %v3622, %v3624
        %v3626 = vrot.slane %v3612, %v3625
        %v3627 = vcombine.low %v3619, %v3626
        %v3629 = vadd.f32 %v3196, %v3627
        %s3630 = scalar_lea.vmem %s441, 54
        %v3631 = vld [vmem:[%s3630] sm:$0xff]
        %v3632 = vld [vmem:[%s3630 + $0x8] sm:$0x1]
        %v3635 = vcombine.high %v3631, %v3631
        %v3637 = vunpack.c.l.s4 1966171168
        %v3638 = vunpack.c.0.s8 %v3637
        %v3639 = vlaneseq
        %v3640 = vshrl.u32 %v3639, 7
        %v3641 = vsub.s32 %v3638, %v3640
        %v3642 = vrot.slane %v3631, %v3641
        %v3644 = vunpack.c.l.s4 1966171168
        %v3645 = vunpack.c.0.s8 %v3644
        %v3646 = vlaneseq
        %v3647 = vshrl.u32 %v3646, 7
        %v3648 = vsub.s32 %v3645, %v3647
        %v3649 = vrot.slane %v3635, %v3648
        %v3650 = vcombine.high %v3642, %v3642
        %v3651 = vcombine.high %v3649, %v3649
        %v3653 = vunpack.c.l.s4 1966171168
        %v3654 = vunpack.c.0.s8 %v3653
        %v3655 = vlaneseq
        %v3656 = vshrl.u32 %v3655, 7
        %v3657 = vsub.s32 %v3654, %v3656
        %v3658 = vrot.slane %v3642, %v3657
        %v3660 = vunpack.c.l.s4 1966171168
        %v3661 = vunpack.c.0.s8 %v3660
        %v3662 = vlaneseq
        %v3663 = vshrl.u32 %v3662, 7
        %v3664 = vsub.s32 %v3661, %v3663
        %v3665 = vrot.slane %v3649, %v3664
        %v3667 = vunpack.c.l.s4 1966171168
        %v3668 = vunpack.c.0.s8 %v3667
        %v3669 = vlaneseq
        %v3670 = vshrl.u32 %v3669, 7
        %v3671 = vsub.s32 %v3668, %v3670
        %v3672 = vrot.slane %v3650, %v3671
        %v3674 = vunpack.c.l.s4 1966171168
        %v3675 = vunpack.c.0.s8 %v3674
        %v3676 = vlaneseq
        %v3677 = vshrl.u32 %v3676, 7
        %v3678 = vsub.s32 %v3675, %v3677
        %v3679 = vrot.slane %v3651, %v3678
        %v3680 = vcombine.high %v3658, %v3658
        %v3681 = vcombine.high %v3665, %v3665
        %v3682 = vcombine.high %v3672, %v3672
        %v3683 = vcombine.high %v3679, %v3679
        %v3685 = vunpack.c.l.s4 1966171168
        %v3686 = vunpack.c.0.s8 %v3685
        %v3687 = vlaneseq
        %v3688 = vshrl.u32 %v3687, 7
        %v3689 = vsub.s32 %v3686, %v3688
        %v3690 = vrot.slane %v3632, %v3689
        %v3692 = vunpack.c.l.s4 1966171168
        %v3693 = vunpack.c.0.s8 %v3692
        %v3694 = vlaneseq
        %v3695 = vshrl.u32 %v3694, 7
        %v3696 = vsub.s32 %v3693, %v3695
        %v3697 = vrot.slane %v3690, %v3696
        %3707 = vmatprep.subr.bf16.mxu0 0
        %3708 = vmatpush1.bf16.msra.mxu0 %v966
        %3709 = vmatprep.subr.bf16.mxu0 0
        %3710 = vmatpush1.bf16.msra.mxu0 %v967
        %3711 = vmatprep.subr.bf16.mxu0 0
        %3712 = vmatpush1.bf16.msra.mxu0 %v968
        %3713 = vmatprep.subr.bf16.mxu0 0
        %3714 = vmatpush1.bf16.msra.mxu0 %v969
        %3715 = vmatprep.subr.bf16.mxu0 0
        %3716 = vmatpush1.bf16.msra.mxu0 %v970
        %3717 = vmatprep.subr.bf16.mxu0 0
        %3718 = vmatpush1.bf16.msra.mxu0 %v971
        %3719 = vmatprep.subr.bf16.mxu0 0
        %3720 = vmatpush1.bf16.msra.mxu0 %v972
        %3721 = vmatprep.subr.bf16.mxu0 0
        %3722 = vmatpush1.bf16.msra.mxu0 %v973
        %3723 = vmatprep.subr.bf16.mxu0 0
        %3724 = vmatpush1.bf16.msra.mxu0 %v974
        %3725 = vmatprep.subr.bf16.mxu0 0
        %3726 = vmatpush1.bf16.msra.mxu0 %v975
        %3727 = vmatprep.subr.bf16.mxu0 0
        %3728 = vmatpush1.bf16.msra.mxu0 %v976
        %3729 = vmatprep.subr.bf16.mxu0 0
        %3730 = vmatpush1.bf16.msra.mxu0 %v977
        %3731 = vmatprep.subr.bf16.mxu0 0
        %3732 = vmatpush1.bf16.msra.mxu0 %v978
        %3733 = vmatprep.subr.bf16.mxu0 0
        %3734 = vmatpush1.bf16.msra.mxu0 %v979
        %3735 = vmatprep.subr.bf16.mxu0 0
        %3736 = vmatpush1.bf16.msra.mxu0 %v980
        %3737 = vmatprep.subr.bf16.mxu0 0
        %3738 = vmatpush1.bf16.msra.mxu0 %v981
        %3739 = vmatprep.mubr.bf16.mxu0 %v3672
        %3740 = vmatmul.mubr.bf16.gmra.mrb[0].mxu0 %v3658
        %v3741 = vpop.f32.mrb[0].mxu0
        %v3742 = vadd.f32 %v602, %v3741
        %v3743 = vpop.f32.mrb[0].mxu0
        %v3744 = vpop.f32.mrb[0].mxu0
        %v3745 = vpop.f32.mrb[0].mxu0
        %3746 = vdwg.mxu0
        %3747 = vmatprep.subr.bf16.mxu0 0
        %3748 = vmatpush1.bf16.msra.mxu0 %v982
        %3749 = vmatprep.subr.bf16.mxu0 0
        %3750 = vmatpush1.bf16.msra.mxu0 %v983
        %3751 = vmatprep.subr.bf16.mxu0 0
        %3752 = vmatpush1.bf16.msra.mxu0 %v984
        %3753 = vmatprep.subr.bf16.mxu0 0
        %3754 = vmatpush1.bf16.msra.mxu0 %v985
        %3755 = vmatprep.subr.bf16.mxu0 0
        %3756 = vmatpush1.bf16.msra.mxu0 %v986
        %3757 = vmatprep.subr.bf16.mxu0 0
        %3758 = vmatpush1.bf16.msra.mxu0 %v987
        %3759 = vmatprep.subr.bf16.mxu0 0
        %3760 = vmatpush1.bf16.msra.mxu0 %v988
        %3761 = vmatprep.subr.bf16.mxu0 0
        %3762 = vmatpush1.bf16.msra.mxu0 %v989
        %3763 = vmatprep.subr.bf16.mxu0 0
        %3764 = vmatpush1.bf16.msra.mxu0 %v990
        %3765 = vmatprep.subr.bf16.mxu0 0
        %3766 = vmatpush1.bf16.msra.mxu0 %v991
        %3767 = vmatprep.subr.bf16.mxu0 0
        %3768 = vmatpush1.bf16.msra.mxu0 %v992
        %3769 = vmatprep.subr.bf16.mxu0 0
        %3770 = vmatpush1.bf16.msra.mxu0 %v993
        %3771 = vmatprep.subr.bf16.mxu0 0
        %3772 = vmatpush1.bf16.msra.mxu0 %v994
        %3773 = vmatprep.subr.bf16.mxu0 0
        %3774 = vmatpush1.bf16.msra.mxu0 %v995
        %3775 = vmatprep.subr.bf16.mxu0 0
        %3776 = vmatpush1.bf16.msra.mxu0 %v996
        %3777 = vmatprep.subr.bf16.mxu0 0
        %3778 = vmatpush1.bf16.msra.mxu0 %v997
        %3779 = vmatprep.mubr.bf16.mxu0 %v3682
        %3780 = vmatmul.mubr.bf16.gmra.mrb[0].mxu0 %v3680
        %v3781 = vpop.f32.mrb[0].mxu0
        %v3782 = vadd.f32 %v3742, %v3781
        %v3783 = vpop.f32.mrb[0].mxu0
        %v3784 = vpop.f32.mrb[0].mxu0
        %v3785 = vpop.f32.mrb[0].mxu0
        %3786 = vdwg.mxu0
        %3787 = vmatprep.subr.bf16.mxu0 0
        %3788 = vmatpush1.bf16.msra.mxu0 %v998
        %3789 = vmatprep.subr.bf16.mxu0 0
        %3790 = vmatpush1.bf16.msra.mxu0 %v999
        %3791 = vmatprep.subr.bf16.mxu0 0
        %3792 = vmatpush1.bf16.msra.mxu0 %v1000
        %3793 = vmatprep.subr.bf16.mxu0 0
        %3794 = vmatpush1.bf16.msra.mxu0 %v1001
        %3795 = vmatprep.subr.bf16.mxu0 0
        %3796 = vmatpush1.bf16.msra.mxu0 %v1002
        %3797 = vmatprep.subr.bf16.mxu0 0
        %3798 = vmatpush1.bf16.msra.mxu0 %v1003
        %3799 = vmatprep.subr.bf16.mxu0 0
        %3800 = vmatpush1.bf16.msra.mxu0 %v1004
        %3801 = vmatprep.subr.bf16.mxu0 0
        %3802 = vmatpush1.bf16.msra.mxu0 %v1005
        %3803 = vmatprep.subr.bf16.mxu0 0
        %3804 = vmatpush1.bf16.msra.mxu0 %v1006
        %3805 = vmatprep.subr.bf16.mxu0 0
        %3806 = vmatpush1.bf16.msra.mxu0 %v1007
        %3807 = vmatprep.subr.bf16.mxu0 0
        %3808 = vmatpush1.bf16.msra.mxu0 %v1008
        %3809 = vmatprep.subr.bf16.mxu0 0
        %3810 = vmatpush1.bf16.msra.mxu0 %v1009
        %3811 = vmatprep.subr.bf16.mxu0 0
        %3812 = vmatpush1.bf16.msra.mxu0 %v1010
        %3813 = vmatprep.subr.bf16.mxu0 0
        %3814 = vmatpush1.bf16.msra.mxu0 %v1011
        %3815 = vmatprep.subr.bf16.mxu0 0
        %3816 = vmatpush1.bf16.msra.mxu0 %v1012
        %3817 = vmatprep.subr.bf16.mxu0 0
        %3818 = vmatpush1.bf16.msra.mxu0 %v1013
        %3819 = vmatprep.mubr.bf16.mxu0 %v3679
        %3820 = vmatmul.mubr.bf16.gmra.mrb[0].mxu0 %v3665
        %v3821 = vpop.f32.mrb[0].mxu0
        %v3822 = vadd.f32 %v3782, %v3821
        %v3823 = vpop.f32.mrb[0].mxu0
        %v3824 = vpop.f32.mrb[0].mxu0
        %v3825 = vpop.f32.mrb[0].mxu0
        %3826 = vdwg.mxu0
        %3827 = vmatprep.subr.bf16.mxu0 0
        %3828 = vmatpush1.bf16.msra.mxu0 %v1014
        %3829 = vmatprep.subr.bf16.mxu0 0
        %3830 = vmatpush1.bf16.msra.mxu0 %v1015
        %3831 = vmatprep.subr.bf16.mxu0 0
        %3832 = vmatpush1.bf16.msra.mxu0 %v1016
        %3833 = vmatprep.subr.bf16.mxu0 0
        %3834 = vmatpush1.bf16.msra.mxu0 %v1017
        %3835 = vmatprep.subr.bf16.mxu0 0
        %3836 = vmatpush1.bf16.msra.mxu0 %v1018
        %3837 = vmatprep.subr.bf16.mxu0 0
        %3838 = vmatpush1.bf16.msra.mxu0 %v1019
        %3839 = vmatprep.subr.bf16.mxu0 0
        %3840 = vmatpush1.bf16.msra.mxu0 %v1020
        %3841 = vmatprep.subr.bf16.mxu0 0
        %3842 = vmatpush1.bf16.msra.mxu0 %v1021
        %3843 = vmatprep.subr.bf16.mxu0 0
        %3844 = vmatpush1.bf16.msra.mxu0 %v1022
        %3845 = vmatprep.subr.bf16.mxu0 0
        %3846 = vmatpush1.bf16.msra.mxu0 %v1023
        %3847 = vmatprep.subr.bf16.mxu0 0
        %3848 = vmatpush1.bf16.msra.mxu0 %v1024
        %3849 = vmatprep.subr.bf16.mxu0 0
        %3850 = vmatpush1.bf16.msra.mxu0 %v1025
        %3851 = vmatprep.subr.bf16.mxu0 0
        %3852 = vmatpush1.bf16.msra.mxu0 %v1026
        %3853 = vmatprep.subr.bf16.mxu0 0
        %3854 = vmatpush1.bf16.msra.mxu0 %v1027
        %3855 = vmatprep.subr.bf16.mxu0 0
        %3856 = vmatpush1.bf16.msra.mxu0 %v1028
        %3857 = vmatprep.subr.bf16.mxu0 0
        %3858 = vmatpush1.bf16.msra.mxu0 %v1029
        %3859 = vmatprep.mubr.bf16.mxu0 %v3683
        %3860 = vmatmul.mubr.bf16.gmra.mrb[0].mxu0 %v3681
        %v3861 = vpop.f32.mrb[0].mxu0
        %v3862 = vadd.f32 %v3822, %v3861
        %v3863 = vpop.f32.mrb[0].mxu0
        %v3864 = vpop.f32.mrb[0].mxu0
        %v3865 = vpop.f32.mrb[0].mxu0
        %3866 = vdwg.mxu0
        %3867 = vmatprep.subr.bf16.mxu0 0
        %3868 = vmatpush1.bf16.msra.mxu0 %v1030
        %3869 = vmatprep.subr.bf16.mxu0 0
        %3870 = vmatpush1.bf16.msra.mxu0 %v1031
        %3871 = vmatprep.subr.bf16.mxu0 0
        %3872 = vmatpush1.bf16.msra.mxu0 %v1032
        %3873 = vmatprep.subr.bf16.mxu0 0
        %3874 = vmatpush1.bf16.msra.mxu0 %v1033
        %3875 = vmatprep.subr.bf16.mxu0 0
        %3876 = vmatpush1.bf16.msra.mxu0 %v1034
        %3877 = vmatprep.subr.bf16.mxu0 0
        %3878 = vmatpush1.bf16.msra.mxu0 %v1035
        %3879 = vmatprep.subr.bf16.mxu0 0
        %3880 = vmatpush1.bf16.msra.mxu0 %v1036
        %3881 = vmatprep.subr.bf16.mxu0 0
        %3882 = vmatpush1.bf16.msra.mxu0 %v1037
        %3883 = vmatprep.subr.bf16.mxu0 0
        %3884 = vmatpush1.bf16.msra.mxu0 0
        %3885 = vmatprep.subr.bf16.mxu0 0
        %3886 = vmatpush1.bf16.msra.mxu0 0
        %3887 = vmatprep.subr.bf16.mxu0 0
        %3888 = vmatpush1.bf16.msra.mxu0 0
        %3889 = vmatprep.subr.bf16.mxu0 0
        %3890 = vmatpush1.bf16.msra.mxu0 0
        %3891 = vmatprep.subr.bf16.mxu0 0
        %3892 = vmatpush1.bf16.msra.mxu0 0
        %3893 = vmatprep.subr.bf16.mxu0 0
        %3894 = vmatpush1.bf16.msra.mxu0 0
        %3895 = vmatprep.subr.bf16.mxu0 0
        %3896 = vmatpush1.bf16.msra.mxu0 0
        %3897 = vmatprep.subr.bf16.mxu0 0
        %3898 = vmatpush1.bf16.msra.mxu0 0
        %3899 = vmatprep.mubr.bf16.mxu0 0
        %3900 = vmatmul.mubr.bf16.gmra.mrb[0].mxu0 %v3697
        %v3901 = vpop.f32.mrb[0].mxu0
        %v3902 = vadd.f32 %v3862, %v3901
        %v3903 = vpop.f32.mrb[0].mxu0
        %v3904 = vpop.f32.mrb[0].mxu0
        %v3905 = vpop.f32.mrb[0].mxu0
        %3906 = vdwg.mxu0
        %v3907 = vmax.f32 %v3902, 0.0
        %v3908 = vpack.c.bf16 %v3907, %v3907
        %s3909 = scalar_lea.vmem %s380, 768 [#allocation8]
        %v3910 = vld [vmem:[%s3909] sm:$0xff]
        %v3911 = vld [vmem:[%s3909 + $0x8] sm:$0xff]
        %v3912 = vld [vmem:[%s3909 + $0x10] sm:$0xff]
        %v3913 = vld [vmem:[%s3909 + $0x18] sm:$0xff]
        %v3914 = vld [vmem:[%s3909 + $0x20] sm:$0xff]
        %v3915 = vld [vmem:[%s3909 + $0x28] sm:$0xff]
        %v3916 = vld [vmem:[%s3909 + $0x30] sm:$0xff]
        %v3917 = vld [vmem:[%s3909 + $0x38] sm:$0xff]
        %v3918 = vld [vmem:[%s3909 + $0x40] sm:$0xff]
        %v3919 = vld [vmem:[%s3909 + $0x48] sm:$0xff]
        %v3920 = vld [vmem:[%s3909 + $0x50] sm:$0xff]
        %v3921 = vld [vmem:[%s3909 + $0x58] sm:$0xff]
        %v3922 = vld [vmem:[%s3909 + $0x60] sm:$0xff]
        %v3923 = vld [vmem:[%s3909 + $0x68] sm:$0xff]
        %v3924 = vld [vmem:[%s3909 + $0x70] sm:$0xff]
        %v3925 = vld [vmem:[%s3909 + $0x78] sm:$0xff]
        %v3926 = vunpack.c.l.s8.bf16 %v3910
        %v3927 = vunpack.c.l.s8.bf16 %v3911
        %v3928 = vunpack.c.l.s8.bf16 %v3912
        %v3929 = vunpack.c.l.s8.bf16 %v3913
        %v3930 = vunpack.c.h.s8.bf16 %v3910
        %v3931 = vunpack.c.h.s8.bf16 %v3911
        %v3932 = vunpack.c.h.s8.bf16 %v3912
        %v3933 = vunpack.c.h.s8.bf16 %v3913
        %v3934 = vunpack.c.l.s8.bf16 %v3914
        %v3935 = vunpack.c.l.s8.bf16 %v3915
        %v3936 = vunpack.c.l.s8.bf16 %v3916
        %v3937 = vunpack.c.l.s8.bf16 %v3917
        %v3938 = vunpack.c.h.s8.bf16 %v3914
        %v3939 = vunpack.c.h.s8.bf16 %v3915
        %v3940 = vunpack.c.h.s8.bf16 %v3916
        %v3941 = vunpack.c.h.s8.bf16 %v3917
        %v3942 = vunpack.c.l.s8.bf16 %v3918
        %v3943 = vunpack.c.l.s8.bf16 %v3919
        %v3944 = vunpack.c.l.s8.bf16 %v3920
        %v3945 = vunpack.c.l.s8.bf16 %v3921
        %v3946 = vunpack.c.h.s8.bf16 %v3918
        %v3947 = vunpack.c.h.s8.bf16 %v3919
        %v3948 = vunpack.c.h.s8.bf16 %v3920
        %v3949 = vunpack.c.h.s8.bf16 %v3921
        %v3950 = vunpack.c.l.s8.bf16 %v3922
        %v3951 = vunpack.c.l.s8.bf16 %v3923
        %v3952 = vunpack.c.l.s8.bf16 %v3924
        %v3953 = vunpack.c.l.s8.bf16 %v3925
        %v3954 = vunpack.c.h.s8.bf16 %v3922
        %v3955 = vunpack.c.h.s8.bf16 %v3923
        %v3956 = vunpack.c.h.s8.bf16 %v3924
        %v3957 = vunpack.c.h.s8.bf16 %v3925
        %3958 = vmatprep.subr.bf16.mxu0 %v3927
        %3959 = vmatpush1.bf16.msra.mxu0 %v3926
        %3960 = vmatprep.subr.bf16.mxu0 %v3931
        %3961 = vmatpush1.bf16.msra.mxu0 %v3930
        %3962 = vmatprep.subr.bf16.mxu0 %v3935
        %3963 = vmatpush1.bf16.msra.mxu0 %v3934
        %3964 = vmatprep.subr.bf16.mxu0 %v3939
        %3965 = vmatpush1.bf16.msra.mxu0 %v3938
        %3966 = vmatprep.subr.bf16.mxu0 %v3943
        %3967 = vmatpush1.bf16.msra.mxu0 %v3942
        %3968 = vmatprep.subr.bf16.mxu0 %v3947
        %3969 = vmatpush1.bf16.msra.mxu0 %v3946
        %3970 = vmatprep.subr.bf16.mxu0 %v3951
        %3971 = vmatpush1.bf16.msra.mxu0 %v3950
        %3972 = vmatprep.subr.bf16.mxu0 %v3955
        %3973 = vmatpush1.bf16.msra.mxu0 %v3954
        %3974 = vmatprep.subr.bf16.mxu0 0
        %3975 = vmatpush1.bf16.msra.mxu0 0
        %3976 = vmatprep.subr.bf16.mxu0 0
        %3977 = vmatpush1.bf16.msra.mxu0 0
        %3978 = vmatprep.subr.bf16.mxu0 0
        %3979 = vmatpush1.bf16.msra.mxu0 0
        %3980 = vmatprep.subr.bf16.mxu0 0
        %3981 = vmatpush1.bf16.msra.mxu0 0
        %3982 = vmatprep.subr.bf16.mxu0 0
        %3983 = vmatpush1.bf16.msra.mxu0 0
        %3984 = vmatprep.subr.bf16.mxu0 0
        %3985 = vmatpush1.bf16.msra.mxu0 0
        %3986 = vmatprep.subr.bf16.mxu0 0
        %3987 = vmatpush1.bf16.msra.mxu0 0
        %3988 = vmatprep.subr.bf16.mxu0 0
        %3989 = vmatpush1.bf16.msra.mxu0 0
        %3990 = vmatprep.mubr.bf16.mxu0 0
        %3991 = vmatmul.mubr.bf16.gmra.mrb[0].mxu0 %v3908
        %v3992 = vpop.f32.mrb[0].mxu0
        %v3993 = vadd.f32 0.0, %v3992
        %v3994 = vpop.f32.mrb[0].mxu0
        %v3995 = vadd.f32 0.0, %v3994
        %v3996 = vpop.f32.mrb[0].mxu0
        %v3997 = vpop.f32.mrb[0].mxu0
        %3998 = vdwg.mxu0
        %3999 = vmatprep.subr.bf16.mxu0 %v3929
        %4000 = vmatpush1.bf16.msra.mxu0 %v3928
        %4001 = vmatprep.subr.bf16.mxu0 %v3933
        %4002 = vmatpush1.bf16.msra.mxu0 %v3932
        %4003 = vmatprep.subr.bf16.mxu0 %v3937
        %4004 = vmatpush1.bf16.msra.mxu0 %v3936
        %4005 = vmatprep.subr.bf16.mxu0 %v3941
        %4006 = vmatpush1.bf16.msra.mxu0 %v3940
        %4007 = vmatprep.subr.bf16.mxu0 %v3945
        %4008 = vmatpush1.bf16.msra.mxu0 %v3944
        %4009 = vmatprep.subr.bf16.mxu0 %v3949
        %4010 = vmatpush1.bf16.msra.mxu0 %v3948
        %4011 = vmatprep.subr.bf16.mxu0 %v3953
        %4012 = vmatpush1.bf16.msra.mxu0 %v3952
        %4013 = vmatprep.subr.bf16.mxu0 %v3957
        %4014 = vmatpush1.bf16.msra.mxu0 %v3956
        %4015 = vmatprep.subr.bf16.mxu0 0
        %4016 = vmatpush1.bf16.msra.mxu0 0
        %4017 = vmatprep.subr.bf16.mxu0 0
        %4018 = vmatpush1.bf16.msra.mxu0 0
        %4019 = vmatprep.subr.bf16.mxu0 0
        %4020 = vmatpush1.bf16.msra.mxu0 0
        %4021 = vmatprep.subr.bf16.mxu0 0
        %4022 = vmatpush1.bf16.msra.mxu0 0
        %4023 = vmatprep.subr.bf16.mxu0 0
        %4024 = vmatpush1.bf16.msra.mxu0 0
        %4025 = vmatprep.subr.bf16.mxu0 0
        %4026 = vmatpush1.bf16.msra.mxu0 0
        %4027 = vmatprep.subr.bf16.mxu0 0
        %4028 = vmatpush1.bf16.msra.mxu0 0
        %4029 = vmatprep.subr.bf16.mxu0 0
        %4030 = vmatpush1.bf16.msra.mxu0 0
        %4031 = vmatprep.mubr.bf16.mxu0 0
        %4032 = vmatmul.mubr.bf16.gmra.mrb[0].mxu0 %v3908
        %v4033 = vpop.f32.mrb[0].mxu0
        %v4034 = vadd.f32 0.0, %v4033
        %v4035 = vpop.f32.mrb[0].mxu0
        %v4036 = vadd.f32 0.0, %v4035
        %v4037 = vpop.f32.mrb[0].mxu0
        %v4038 = vpop.f32.mrb[0].mxu0
        %4039 = vdwg.mxu0
        %v4044 = vcombine.low %v3993, %v3995
        %v4045 = vcombine.low %v4034, %v4036
        %v4047 = vunpack.c.l.s4 1983009808
        %v4048 = vunpack.c.0.s8 %v4047
        %v4049 = vlaneseq
        %v4050 = vshrl.u32 %v4049, 7
        %v4051 = vsub.s32 %v4048, %v4050
        %v4052 = vrot.slane %v4044, %v4051
        %v4054 = vunpack.c.l.s4 1983009808
        %v4055 = vunpack.c.0.s8 %v4054
        %v4056 = vlaneseq
        %v4057 = vshrl.u32 %v4056, 7
        %v4058 = vsub.s32 %v4055, %v4057
        %v4059 = vrot.slane %v4045, %v4058
        %v4060 = vcombine.low %v4052, %v4059
        %v4062 = vadd.f32 %v3629, %v4060
        %4063 = vst [vmem:[#allocation2] sm:$0xff] %v4062
        %p4064 = scmp.eq.s32.totalorder %s29, 6
        // Predicated region
        $region85: #{model_forward.3} parent=51 // pred_check
          %p4065 = pneg %p4064
        $region86: #{model_forward.3} parent=51 // pred_check_branch
          %4067 = sbr.rel (%p4065) target = $region88
        $region87: #{model_forward.3} parent=51 // pred_region
          %v4068 = vld [vmem:[#allocation2] sm:$0xff]
          %v4069 = vld [vmem:[#allocation9] sm:$0xf]
          %v4071 = vlaneseq
          %v4072 = vshrl.u32 %v4071, 7
          %v4073 = vsub.s32 0, %v4072
          %v4074 = vrot.slane %v4069, %v4073
          %v4075 = vlaneseq
          %v4076 = vshrl.u32 %v4075, 7
          %v4077 = vsub.s32 1, %v4076
          %v4078 = vrot.slane %v4069, %v4077
          %v4079 = vlaneseq
          %v4080 = vshrl.u32 %v4079, 7
          %v4081 = vsub.s32 2, %v4080
          %v4082 = vrot.slane %v4069, %v4081
          %v4083 = vlaneseq
          %v4084 = vshrl.u32 %v4083, 7
          %v4085 = vsub.s32 3, %v4084
          %v4086 = vrot.slane %v4069, %v4085
          %v4087 = vcombine.low %v4074, %v4078
          %v4088 = vcombine.low %v4082, %v4086
          %v4090 = vunpack.c.l.s4 1983009808
          %v4091 = vunpack.c.0.s8 %v4090
          %v4092 = vlaneseq
          %v4093 = vshrl.u32 %v4092, 7
          %v4094 = vsub.s32 %v4091, %v4093
          %v4095 = vrot.slane %v4087, %v4094
          %v4097 = vunpack.c.l.s4 1983009808
          %v4098 = vunpack.c.0.s8 %v4097
          %v4099 = vlaneseq
          %v4100 = vshrl.u32 %v4099, 7
          %v4101 = vsub.s32 %v4098, %v4100
          %v4102 = vrot.slane %v4088, %v4101
          %v4103 = vcombine.low %v4095, %v4102
          %v4105 = vmul.f32 %v4068, %v4103
          %v4106 = vld [vmem:[#allocation10] sm:$0xf]
          %v4108 = vlaneseq
          %v4109 = vshrl.u32 %v4108, 7
          %v4110 = vsub.s32 0, %v4109
          %v4111 = vrot.slane %v4106, %v4110
          %v4112 = vlaneseq
          %v4113 = vshrl.u32 %v4112, 7
          %v4114 = vsub.s32 1, %v4113
          %v4115 = vrot.slane %v4106, %v4114
          %v4116 = vlaneseq
          %v4117 = vshrl.u32 %v4116, 7
          %v4118 = vsub.s32 2, %v4117
          %v4119 = vrot.slane %v4106, %v4118
          %v4120 = vlaneseq
          %v4121 = vshrl.u32 %v4120, 7
          %v4122 = vsub.s32 3, %v4121
          %v4123 = vrot.slane %v4106, %v4122
          %v4124 = vcombine.low %v4111, %v4115
          %v4125 = vcombine.low %v4119, %v4123
          %v4127 = vunpack.c.l.s4 1983009808
          %v4128 = vunpack.c.0.s8 %v4127
          %v4129 = vlaneseq
          %v4130 = vshrl.u32 %v4129, 7
          %v4131 = vsub.s32 %v4128, %v4130
          %v4132 = vrot.slane %v4124, %v4131
          %v4134 = vunpack.c.l.s4 1983009808
          %v4135 = vunpack.c.0.s8 %v4134
          %v4136 = vlaneseq
          %v4137 = vshrl.u32 %v4136, 7
          %v4138 = vsub.s32 %v4135, %v4137
          %v4139 = vrot.slane %v4125, %v4138
          %v4140 = vcombine.low %v4132, %v4139
          %v4142 = vadd.f32 %v4105, %v4140
          %v4143 = vmax.f32 %v4142, 0.0
          %v4145 = vcombine.high %v4143, %v4143
          %v4147 = vunpack.c.l.s4 1983009808
          %v4148 = vunpack.c.0.s8 %v4147
          %v4149 = vlaneseq
          %v4150 = vshrl.u32 %v4149, 7
          %v4151 = vsub.s32 %v4148, %v4150
          %v4152 = vrot.slane %v4143, %v4151
          %v4154 = vunpack.c.l.s4 1983009808
          %v4155 = vunpack.c.0.s8 %v4154
          %v4156 = vlaneseq
          %v4157 = vshrl.u32 %v4156, 7
          %v4158 = vsub.s32 %v4155, %v4157
          %v4159 = vrot.slane %v4145, %v4158
          %v4160 = vcombine.high %v4152, %v4152
          %v4161 = vcombine.high %v4159, %v4159
          %v4166 = vpack.c.bf16 %v4152, %v4152
          %v4167 = vpack.c.bf16 %v4160, %v4160
          %v4168 = vpack.c.bf16 %v4159, %v4159
          %v4169 = vpack.c.bf16 %v4161, %v4161
          %v4170 = vld [vmem:[#allocation12] sm:$0xf]
          %v4171 = vld [vmem:[#allocation12 + $0x4] sm:$0xf]
          %v4172 = vld [vmem:[#allocation12 + $0x8] sm:$0xf]
          %v4173 = vld [vmem:[#allocation12 + $0xc] sm:$0xf]
          %v4174 = vld [vmem:[#allocation12 + $0x10] sm:$0xf]
          %v4175 = vld [vmem:[#allocation12 + $0x14] sm:$0xf]
          %v4176 = vld [vmem:[#allocation12 + $0x18] sm:$0xf]
          %v4177 = vld [vmem:[#allocation12 + $0x1c] sm:$0xf]
          %v4178 = vld [vmem:[#allocation12 + $0x20] sm:$0xf]
          %v4179 = vld [vmem:[#allocation12 + $0x24] sm:$0xf]
          %v4180 = vld [vmem:[#allocation12 + $0x28] sm:$0xf]
          %v4181 = vld [vmem:[#allocation12 + $0x2c] sm:$0xf]
          %v4182 = vld [vmem:[#allocation12 + $0x30] sm:$0xf]
          %v4183 = vld [vmem:[#allocation12 + $0x34] sm:$0xf]
          %v4184 = vld [vmem:[#allocation12 + $0x38] sm:$0xf]
          %v4185 = vld [vmem:[#allocation12 + $0x3c] sm:$0xf]
          %v4186 = vld [vmem:[#allocation12 + $0x40] sm:$0xf]
          %v4187 = vld [vmem:[#allocation12 + $0x44] sm:$0xf]
          %v4188 = vld [vmem:[#allocation12 + $0x48] sm:$0xf]
          %v4189 = vld [vmem:[#allocation12 + $0x4c] sm:$0xf]
          %v4190 = vld [vmem:[#allocation12 + $0x50] sm:$0xf]
          %v4191 = vld [vmem:[#allocation12 + $0x54] sm:$0xf]
          %v4192 = vld [vmem:[#allocation12 + $0x58] sm:$0xf]
          %v4193 = vld [vmem:[#allocation12 + $0x5c] sm:$0xf]
          %v4194 = vld [vmem:[#allocation12 + $0x60] sm:$0xf]
          %v4195 = vld [vmem:[#allocation12 + $0x64] sm:$0xf]
          %v4196 = vld [vmem:[#allocation12 + $0x68] sm:$0xf]
          %v4197 = vld [vmem:[#allocation12 + $0x6c] sm:$0xf]
          %v4198 = vld [vmem:[#allocation12 + $0x70] sm:$0xf]
          %v4199 = vld [vmem:[#allocation12 + $0x74] sm:$0xf]
          %v4200 = vld [vmem:[#allocation12 + $0x78] sm:$0xf]
          %v4201 = vld [vmem:[#allocation12 + $0x7c] sm:$0xf]
          %v4202 = vld [vmem:[#allocation12 + $0x80] sm:$0xf]
          %v4203 = vld [vmem:[#allocation12 + $0x84] sm:$0xf]
          %v4204 = vld [vmem:[#allocation12 + $0x88] sm:$0xf]
          %v4205 = vld [vmem:[#allocation12 + $0x8c] sm:$0xf]
          %v4206 = vld [vmem:[#allocation12 + $0x90] sm:$0xf]
          %v4207 = vld [vmem:[#allocation12 + $0x94] sm:$0xf]
          %v4208 = vld [vmem:[#allocation12 + $0x98] sm:$0xf]
          %v4209 = vld [vmem:[#allocation12 + $0x9c] sm:$0xf]
          %v4210 = vld [vmem:[#allocation12 + $0xa0] sm:$0xf]
          %v4211 = vld [vmem:[#allocation12 + $0xa4] sm:$0xf]
          %v4212 = vld [vmem:[#allocation12 + $0xa8] sm:$0xf]
          %v4213 = vld [vmem:[#allocation12 + $0xac] sm:$0xf]
          %v4214 = vld [vmem:[#allocation12 + $0xb0] sm:$0xf]
          %v4215 = vld [vmem:[#allocation12 + $0xb4] sm:$0xf]
          %v4216 = vld [vmem:[#allocation12 + $0xb8] sm:$0xf]
          %v4217 = vld [vmem:[#allocation12 + $0xbc] sm:$0xf]
          %v4218 = vld [vmem:[#allocation12 + $0xc0] sm:$0xf]
          %v4219 = vld [vmem:[#allocation12 + $0xc4] sm:$0xf]
          %v4220 = vld [vmem:[#allocation12 + $0xc8] sm:$0xf]
          %v4221 = vld [vmem:[#allocation12 + $0xcc] sm:$0xf]
          %v4222 = vld [vmem:[#allocation12 + $0xd0] sm:$0xf]
          %v4223 = vld [vmem:[#allocation12 + $0xd4] sm:$0xf]
          %v4224 = vld [vmem:[#allocation12 + $0xd8] sm:$0xf]
          %v4225 = vld [vmem:[#allocation12 + $0xdc] sm:$0xf]
          %v4226 = vld [vmem:[#allocation12 + $0xe0] sm:$0xf]
          %v4227 = vld [vmem:[#allocation12 + $0xe4] sm:$0xf]
          %v4228 = vld [vmem:[#allocation12 + $0xe8] sm:$0xf]
          %v4229 = vld [vmem:[#allocation12 + $0xec] sm:$0xf]
          %v4230 = vld [vmem:[#allocation12 + $0xf0] sm:$0xf]
          %v4231 = vld [vmem:[#allocation12 + $0xf4] sm:$0xf]
          %v4232 = vld [vmem:[#allocation12 + $0xf8] sm:$0xf]
          %v4233 = vld [vmem:[#allocation12 + $0xfc] sm:$0xf]
          %v4234 = vld [vmem:[#allocation13] sm:$0x1]
          %v4236 = vlaneseq
          %v4237 = vshrl.u32 %v4236, 7
          %v4238 = vsub.s32 0, %v4237
          %v4239 = vrot.slane %v4234, %v4238
          %v4305 = vunpack.c.l.b16 %v4170
          %v4306 = vunpack.c.l.b16 %v4171
          %v4307 = vunpack.c.l.b16 %v4172
          %v4308 = vunpack.c.l.b16 %v4173
          %v4309 = vunpack.c.l.b16 %v4174
          %v4310 = vunpack.c.l.b16 %v4175
          %v4311 = vunpack.c.l.b16 %v4176
          %v4312 = vunpack.c.l.b16 %v4177
          %v4313 = vunpack.c.l.b16 %v4178
          %v4314 = vunpack.c.l.b16 %v4179
          %v4315 = vunpack.c.l.b16 %v4180
          %v4316 = vunpack.c.l.b16 %v4181
          %v4317 = vunpack.c.l.b16 %v4182
          %v4318 = vunpack.c.l.b16 %v4183
          %v4319 = vunpack.c.l.b16 %v4184
          %v4320 = vunpack.c.l.b16 %v4185
          %v4321 = vunpack.c.l.b16 %v4186
          %v4322 = vunpack.c.l.b16 %v4187
          %v4323 = vunpack.c.l.b16 %v4188
          %v4324 = vunpack.c.l.b16 %v4189
          %v4325 = vunpack.c.l.b16 %v4190
          %v4326 = vunpack.c.l.b16 %v4191
          %v4327 = vunpack.c.l.b16 %v4192
          %v4328 = vunpack.c.l.b16 %v4193
          %v4329 = vunpack.c.l.b16 %v4194
          %v4330 = vunpack.c.l.b16 %v4195
          %v4331 = vunpack.c.l.b16 %v4196
          %v4332 = vunpack.c.l.b16 %v4197
          %v4333 = vunpack.c.l.b16 %v4198
          %v4334 = vunpack.c.l.b16 %v4199
          %v4335 = vunpack.c.l.b16 %v4200
          %v4336 = vunpack.c.l.b16 %v4201
          %v4337 = vunpack.c.l.b16 %v4202
          %v4338 = vunpack.c.l.b16 %v4203
          %v4339 = vunpack.c.l.b16 %v4204
          %v4340 = vunpack.c.l.b16 %v4205
          %v4341 = vunpack.c.l.b16 %v4206
          %v4342 = vunpack.c.l.b16 %v4207
          %v4343 = vunpack.c.l.b16 %v4208
          %v4344 = vunpack.c.l.b16 %v4209
          %v4345 = vunpack.c.l.b16 %v4210
          %v4346 = vunpack.c.l.b16 %v4211
          %v4347 = vunpack.c.l.b16 %v4212
          %v4348 = vunpack.c.l.b16 %v4213
          %v4349 = vunpack.c.l.b16 %v4214
          %v4350 = vunpack.c.l.b16 %v4215
          %v4351 = vunpack.c.l.b16 %v4216
          %v4352 = vunpack.c.l.b16 %v4217
          %v4353 = vunpack.c.l.b16 %v4218
          %v4354 = vunpack.c.l.b16 %v4219
          %v4355 = vunpack.c.l.b16 %v4220
          %v4356 = vunpack.c.l.b16 %v4221
          %v4357 = vunpack.c.l.b16 %v4222
          %v4358 = vunpack.c.l.b16 %v4223
          %v4359 = vunpack.c.l.b16 %v4224
          %v4360 = vunpack.c.l.b16 %v4225
          %v4361 = vunpack.c.l.b16 %v4226
          %v4362 = vunpack.c.l.b16 %v4227
          %v4363 = vunpack.c.l.b16 %v4228
          %v4364 = vunpack.c.l.b16 %v4229
          %v4365 = vunpack.c.l.b16 %v4230
          %v4366 = vunpack.c.l.b16 %v4231
          %v4367 = vunpack.c.l.b16 %v4232
          %v4368 = vunpack.c.l.b16 %v4233
          %v4369 = vpack.c.b16 %v4306, %v4305
          %v4370 = vpack.c.b16 %v4308, %v4307
          %v4371 = vpack.c.b16 %v4310, %v4309
          %v4372 = vpack.c.b16 %v4312, %v4311
          %v4373 = vpack.c.b16 %v4314, %v4313
          %v4374 = vpack.c.b16 %v4316, %v4315
          %v4375 = vpack.c.b16 %v4318, %v4317
          %v4376 = vpack.c.b16 %v4320, %v4319
          %v4377 = vpack.c.b16 %v4322, %v4321
          %v4378 = vpack.c.b16 %v4324, %v4323
          %v4379 = vpack.c.b16 %v4326, %v4325
          %v4380 = vpack.c.b16 %v4328, %v4327
          %v4381 = vpack.c.b16 %v4330, %v4329
          %v4382 = vpack.c.b16 %v4332, %v4331
          %v4383 = vpack.c.b16 %v4334, %v4333
          %v4384 = vpack.c.b16 %v4336, %v4335
          %v4385 = vpack.c.b16 %v4338, %v4337
          %v4386 = vpack.c.b16 %v4340, %v4339
          %v4387 = vpack.c.b16 %v4342, %v4341
          %v4388 = vpack.c.b16 %v4344, %v4343
          %v4389 = vpack.c.b16 %v4346, %v4345
          %v4390 = vpack.c.b16 %v4348, %v4347
          %v4391 = vpack.c.b16 %v4350, %v4349
          %v4392 = vpack.c.b16 %v4352, %v4351
          %v4393 = vpack.c.b16 %v4354, %v4353
          %v4394 = vpack.c.b16 %v4356, %v4355
          %v4395 = vpack.c.b16 %v4358, %v4357
          %v4396 = vpack.c.b16 %v4360, %v4359
          %v4397 = vpack.c.b16 %v4362, %v4361
          %v4398 = vpack.c.b16 %v4364, %v4363
          %v4399 = vpack.c.b16 %v4366, %v4365
          %v4400 = vpack.c.b16 %v4368, %v4367
          %4433 = vmatprep.subr.bf16.mxu0 0
          %4434 = vmatpush1.bf16.msra.mxu0 %v4369
          %4435 = vmatprep.subr.bf16.mxu0 0
          %4436 = vmatpush1.bf16.msra.mxu0 %v4370
          %4437 = vmatprep.subr.bf16.mxu0 0
          %4438 = vmatpush1.bf16.msra.mxu0 %v4371
          %4439 = vmatprep.subr.bf16.mxu0 0
          %4440 = vmatpush1.bf16.msra.mxu0 %v4372
          %4441 = vmatprep.subr.bf16.mxu0 0
          %4442 = vmatpush1.bf16.msra.mxu0 %v4373
          %4443 = vmatprep.subr.bf16.mxu0 0
          %4444 = vmatpush1.bf16.msra.mxu0 %v4374
          %4445 = vmatprep.subr.bf16.mxu0 0
          %4446 = vmatpush1.bf16.msra.mxu0 %v4375
          %4447 = vmatprep.subr.bf16.mxu0 0
          %4448 = vmatpush1.bf16.msra.mxu0 %v4376
          %4449 = vmatprep.subr.bf16.mxu0 0
          %4450 = vmatpush1.bf16.msra.mxu0 %v4377
          %4451 = vmatprep.subr.bf16.mxu0 0
          %4452 = vmatpush1.bf16.msra.mxu0 %v4378
          %4453 = vmatprep.subr.bf16.mxu0 0
          %4454 = vmatpush1.bf16.msra.mxu0 %v4379
          %4455 = vmatprep.subr.bf16.mxu0 0
          %4456 = vmatpush1.bf16.msra.mxu0 %v4380
          %4457 = vmatprep.subr.bf16.mxu0 0
          %4458 = vmatpush1.bf16.msra.mxu0 %v4381
          %4459 = vmatprep.subr.bf16.mxu0 0
          %4460 = vmatpush1.bf16.msra.mxu0 %v4382
          %4461 = vmatprep.subr.bf16.mxu0 0
          %4462 = vmatpush1.bf16.msra.mxu0 %v4383
          %4463 = vmatprep.subr.bf16.mxu0 0
          %4464 = vmatpush1.bf16.msra.mxu0 %v4384
          %4465 = vmatprep.mubr.bf16.mxu0 %v4167
          %4466 = vmatmul.mubr.bf16.gmra.mrb[0].mxu0 %v4166
          %v4467 = vpop.f32.mrb[0].mxu0
          %v4468 = vadd.f32 %v4239, %v4467
          %v4469 = vpop.f32.mrb[0].mxu0
          %v4470 = vpop.f32.mrb[0].mxu0
          %v4471 = vpop.f32.mrb[0].mxu0
          %4472 = vdwg.mxu0
          %4473 = vmatprep.subr.bf16.mxu0 0
          %4474 = vmatpush1.bf16.msra.mxu0 %v4385
          %4475 = vmatprep.subr.bf16.mxu0 0
          %4476 = vmatpush1.bf16.msra.mxu0 %v4386
          %4477 = vmatprep.subr.bf16.mxu0 0
          %4478 = vmatpush1.bf16.msra.mxu0 %v4387
          %4479 = vmatprep.subr.bf16.mxu0 0
          %4480 = vmatpush1.bf16.msra.mxu0 %v4388
          %4481 = vmatprep.subr.bf16.mxu0 0
          %4482 = vmatpush1.bf16.msra.mxu0 %v4389
          %4483 = vmatprep.subr.bf16.mxu0 0
          %4484 = vmatpush1.bf16.msra.mxu0 %v4390
          %4485 = vmatprep.subr.bf16.mxu0 0
          %4486 = vmatpush1.bf16.msra.mxu0 %v4391
          %4487 = vmatprep.subr.bf16.mxu0 0
          %4488 = vmatpush1.bf16.msra.mxu0 %v4392
          %4489 = vmatprep.subr.bf16.mxu0 0
          %4490 = vmatpush1.bf16.msra.mxu0 %v4393
          %4491 = vmatprep.subr.bf16.mxu0 0
          %4492 = vmatpush1.bf16.msra.mxu0 %v4394
          %4493 = vmatprep.subr.bf16.mxu0 0
          %4494 = vmatpush1.bf16.msra.mxu0 %v4395
          %4495 = vmatprep.subr.bf16.mxu0 0
          %4496 = vmatpush1.bf16.msra.mxu0 %v4396
          %4497 = vmatprep.subr.bf16.mxu0 0
          %4498 = vmatpush1.bf16.msra.mxu0 %v4397
          %4499 = vmatprep.subr.bf16.mxu0 0
          %4500 = vmatpush1.bf16.msra.mxu0 %v4398
          %4501 = vmatprep.subr.bf16.mxu0 0
          %4502 = vmatpush1.bf16.msra.mxu0 %v4399
          %4503 = vmatprep.subr.bf16.mxu0 0
          %4504 = vmatpush1.bf16.msra.mxu0 %v4400
          %4505 = vmatprep.mubr.bf16.mxu0 %v4169
          %4506 = vmatmul.mubr.bf16.gmra.mrb[0].mxu0 %v4168
          %v4507 = vpop.f32.mrb[0].mxu0
          %v4508 = vadd.f32 %v4468, %v4507
          %v4509 = vpop.f32.mrb[0].mxu0
          %v4510 = vpop.f32.mrb[0].mxu0
          %v4511 = vpop.f32.mrb[0].mxu0
          %4512 = vdwg.mxu0
          %4513 = vst [vmem:[#allocation15] sm:$0x3] %v4508
        $region88: #{model_forward.3} parent=51 // pred_fallthru
          _
        // Predicated region
        $region89: #{model_forward.3} parent=51 // pred_check
          %p4514 = pneg %p234
        $region90: #{model_forward.3} parent=51 // pred_check_branch
          %4516 = sbr.rel (%p4514) target = $region92
        $region91: #{model_forward.3} parent=51 // pred_region
          %s4518 = ssub.s32 32, 32
          %4519 = vsyncadd [#allocation5], %s4518
          %s4520 = smul.addr %s28, 32
          %s4521 = scalar_lea.hbm %s8, %s4520
          %s4523 = sshll.u32 [#allocation15], 4
          %s4524 = int_to_ptr.vmem [resolvable:$true] %s4523
          %4526 = dma.vmem_to_hbm [thread:$0]  %s4524, 32, %s4521, [#allocation5]
        $region92: #{model_forward.3} parent=51 // pred_fallthru
          _
        // Predicated region
        $region93: #{model_forward.3} parent=51 // pred_check
          %p4527 = pneg %p234
        $region94: #{model_forward.3} parent=51 // pred_check_branch
          %4529 = sbr.rel (%p4527) target = $region96
        $region95: #{model_forward.3} parent=51 // pred_region
          %4530 = dma.done [#allocation5], 32
        $region96: #{model_forward.3} parent=51 // pred_fallthru
          _
      $region52: #{model_forward.3} parent=5 // pred_fallthru
        _
      %p4531 = scmp.le.s32.totalorder 2, %s19
      // Predicated region
      $region97: #{model_forward.3} parent=5 // pred_check
        %p4532 = pneg %p4531
      $region98: #{model_forward.3} parent=5 // pred_check_branch
        %4534 = sbr.rel (%p4532) target = $region100
      $region99: #{model_forward.3} parent=5 // pred_region
        %s4535 = ssub.s32 %s19, 2
      $region100: #{model_forward.3} parent=5 // pred_fallthru
        _
    $region6: #{model_forward.3} parent=1 // loop_footer
      %s23 = sadd.s32 1, %s19
    $region7: #{model_forward.3} parent=1 // loop_footer_branch
      %18 = sbr.rel target = $region3
    $region8: #{model_forward.3} parent=1 // loop_exit
      _
    %4536 = vsyncpa [#allocation4], 1
    %s4537 = scalar_lea.sflag [#allocation4], 1
    %4538 = vsyncpa %s4537, 1
    %4539 = vsyncpa [#allocation7], 1
    %4540 = vsyncpa [#allocation11], 1
    %4541 = vsyncpa [#allocation14], 1
    %4542 = vsyncpa [#allocation5], 1
    %s4543 = scalar_lea.sflag [#allocation5], 1
    %4544 = vsyncpa %s4543, 1

</llo_original>
